<compile_context>
chip_gen: v7x
topology: tpu7x:2x2x1
jax: 0.10.0
libtpu: 0.0.40
codegen_flags: <defaults>
</compile_context>

<pallas_src>
import functools

import jax
import jax.numpy as jnp
from jax.experimental import pallas as pl
from jax.experimental.pallas import tpu as pltpu


def _round_up(n, m):
    return ((n + m - 1) // m) * m


def _imitation_lstm_kernel(x_ref, wi_ref, wh_ref, b_ref, wf_ref, bf_ref,
                           out_ref, gx_ref, h_ref, c_ref,
                           *, t_chunk, batch, hidden):
    H = hidden  # padded hidden (multiple of 128)

    # Init the recurrent carries on the first chunk only; scratch persists
    # across grid steps, so h/c thread through the whole sequence.
    @pl.when(pl.program_id(0) == 0)
    def _():
        h_ref[...] = jnp.zeros_like(h_ref)
        c_ref[...] = jnp.zeros_like(c_ref)

    # ---- Stage 1: input projection for the whole chunk in one MXU call. ----
    # x_ref: (T_chunk*B, D) bf16; gx_ref: (T_chunk*B, 4H) f32.
    gx_ref[...] = (jnp.dot(x_ref[...], wi_ref[...],
                           preferred_element_type=jnp.float32)
                   + b_ref[...])

    # ---- Stage 2: serial recurrence (one MXU push per step). ----
    def step(t, carry):
        row = pl.multiple_of(t * batch, batch)  # sublane-aligned (batch % 8 == 0)
        gates = (gx_ref[pl.ds(row, batch), :]
                 + jnp.dot(h_ref[...].astype(jnp.bfloat16), wh_ref[...],
                           preferred_element_type=jnp.float32))
        # Columns pre-permuted to [i, f, o, g]: two coalesced activations.
        sig = jax.nn.sigmoid(gates[:, :3 * H])
        g_g = jnp.tanh(gates[:, 3 * H:])
        i_g = sig[:, 0 * H:1 * H]
        f_g = sig[:, 1 * H:2 * H]
        o_g = sig[:, 2 * H:3 * H]

        c_new = f_g * c_ref[...] + i_g * g_g
        h_new = o_g * jnp.tanh(c_new)

        c_ref[...] = c_new
        h_ref[...] = h_new
        # Reuse the consumed i-gate columns of gx_ref as h_t storage (H is a
        # multiple of 128, so this is an unmasked lane-aligned store).
        gx_ref[pl.ds(row, batch), :H] = h_new
        return carry

    jax.lax.fori_loop(0, t_chunk, step, 0,
                      unroll=True if t_chunk <= 8 else 4)

    # ---- Stage 3: FC head for the whole chunk in one MXU call. ----
    out_ref[...] = (jnp.dot(gx_ref[:, :H].astype(jnp.bfloat16), wf_ref[...],
                            preferred_element_type=jnp.float32)
                    + bf_ref[...]).astype(out_ref.dtype)


def _pad_gate_blocks(a, H, H_pad):
    """Zero-pad each of the 4 gate blocks along axis 0 from H to H_pad rows."""
    parts = []
    for g in range(4):
        blk = a[g * H:(g + 1) * H]
        widths = [(0, H_pad - H)] + [(0, 0)] * (blk.ndim - 1)
        parts.append(jnp.pad(blk, widths))
    return jnp.concatenate(parts, axis=0)


def prepare_params(torch_params, hidden_dim):
    """torch-layout LSTM/Linear weights -> kernel layout: transposed, bias
    fused, gate columns permuted [i,f,g,o]->[i,f,o,g], hidden/action dims
    zero-padded to multiples of 128 lanes, MXU operands cast to bf16."""
    H = hidden_dim
    H_pad = _round_up(max(H, 128), 128)
    A = torch_params["w_fc"].shape[0]
    A_pad = _round_up(max(A, 128), 128)

    perm = jnp.concatenate([jnp.arange(0, 2 * H),        # i, f
                            jnp.arange(3 * H, 4 * H),    # o
                            jnp.arange(2 * H, 3 * H)])   # g
    w_ih = torch_params["w_ih"][perm]                                # (4H, D)
    w_hh = torch_params["w_hh"][perm]                                # (4H, H)
    b = (torch_params["b_ih"] + torch_params["b_hh"])[perm]          # (4H,)

    w_ih_p = _pad_gate_blocks(w_ih, H, H_pad)                        # (4H_pad, D)
    w_hh_p = _pad_gate_blocks(w_hh, H, H_pad)                        # (4H_pad, H)
    w_hh_p = jnp.pad(w_hh_p, ((0, 0), (0, H_pad - H)))               # (4H_pad, H_pad)
    b_p = _pad_gate_blocks(b, H, H_pad)                              # (4H_pad,)
    w_fc_p = jnp.pad(torch_params["w_fc"],
                     ((0, A_pad - A), (0, H_pad - H)))               # (A_pad, H_pad)
    b_fc_p = jnp.pad(torch_params["b_fc"], (0, A_pad - A))           # (A_pad,)

    return {
        "wi_t": w_ih_p.T.astype(jnp.bfloat16),        # (D, 4H_pad)
        "wh_t": w_hh_p.T.astype(jnp.bfloat16),        # (H_pad, 4H_pad)
        "b": b_p[None, :].astype(jnp.float32),        # (1, 4H_pad)
        "wf_t": w_fc_p.T.astype(jnp.bfloat16),        # (H_pad, A_pad)
        "bf": b_fc_p[None, :].astype(jnp.float32),    # (1, A_pad)
        "hidden_pad": H_pad,
        "num_actions": A,
        "num_actions_pad": A_pad,
    }


def imitation_lstm_forward(x, kparams, *, t_chunk=32):
    """x: (B, T, D) float32 -> logits: (B, T, A) float32."""
    B, T, D = x.shape
    H_pad = kparams["hidden_pad"]
    A = kparams["num_actions"]
    A_pad = kparams["num_actions_pad"]
    wi_t, wh_t, b = kparams["wi_t"], kparams["wh_t"], kparams["b"]
    wf_t, bf = kparams["wf_t"], kparams["bf"]

    # Pad batch to >= 8 sublanes and T to a multiple of the chunk size.
    B_pad = _round_up(max(B, 8), 8)
    t_chunk = min(t_chunk, T)
    T_pad = _round_up(T, t_chunk)
    num_chunks = T_pad // t_chunk

    if (B_pad, T_pad) != (B, T):
        x = jnp.pad(x, ((0, B_pad - B), (0, T_pad - T), (0, 0)))

    # Time-major flatten: row t*B_pad + b is (timestep t, batch b).
    # TODO(synk): keep activations time-major (and bf16) upstream to drop this
    # extra HBM pass once T*B is large.
    x_flat = (jnp.transpose(x, (1, 0, 2))
              .reshape(T_pad * B_pad, D)
              .astype(jnp.bfloat16))

    rows = t_chunk * B_pad
    kernel = functools.partial(_imitation_lstm_kernel,
                               t_chunk=t_chunk, batch=B_pad, hidden=H_pad)

    # VMEM budget: double-buffered ins/outs + persistent scratch, 2x headroom.
    bytes_needed = (
        2 * rows * D * 2                                  # x blocks (bf16)
        + 2 * rows * A_pad * 4                            # out blocks (f32)
        + 2 * (wi_t.size + wh_t.size + wf_t.size) * 2     # weights (bf16)
        + 2 * (b.size + bf.size) * 4                      # biases (f32)
        + rows * 4 * H_pad * 4                            # gates_x scratch
        + 2 * B_pad * H_pad * 4)                          # h, c carries
    vmem_limit = int(min(100 << 20, max(16 << 20, 2 * bytes_needed)))

    out_flat = pl.pallas_call(
        kernel,
        grid=(num_chunks,),
        out_shape=jax.ShapeDtypeStruct((T_pad * B_pad, A_pad), jnp.float32),
        in_specs=[
            pl.BlockSpec((rows, D), lambda t: (t, 0)),           # x chunk
            pl.BlockSpec((D, 4 * H_pad), lambda t: (0, 0)),      # W_ih^T
            pl.BlockSpec((H_pad, 4 * H_pad), lambda t: (0, 0)),  # W_hh^T
            pl.BlockSpec((1, 4 * H_pad), lambda t: (0, 0)),      # fused bias
            pl.BlockSpec((H_pad, A_pad), lambda t: (0, 0)),      # W_fc^T
            pl.BlockSpec((1, A_pad), lambda t: (0, 0)),          # b_fc
        ],
        out_specs=pl.BlockSpec((rows, A_pad), lambda t: (t, 0)),
        scratch_shapes=[
            pltpu.VMEM((rows, 4 * H_pad), jnp.float32),  # gates_x / h storage
            pltpu.VMEM((B_pad, H_pad), jnp.float32),     # h carry
            pltpu.VMEM((B_pad, H_pad), jnp.float32),     # c carry
        ],
        compiler_params=pltpu.CompilerParams(
            dimension_semantics=("arbitrary",),
            vmem_limit_bytes=vmem_limit),
    )(x_flat, wi_t, wh_t, b, wf_t, bf)

    out = out_flat.reshape(T_pad, B_pad, A_pad).transpose(1, 0, 2)
    return out[:B, :T, :A]


def init_params(key, input_dim, hidden_dim, num_actions):
    """Deterministic torch-layout init mimicking nn.LSTM / nn.Linear."""
    k = jax.random.split(key, 6)
    s = 1.0 / jnp.sqrt(hidden_dim)
    return {
        "w_ih": jax.random.uniform(k[0], (4 * hidden_dim, input_dim),
                                   minval=-s, maxval=s, dtype=jnp.float32),
        "w_hh": jax.random.uniform(k[1], (4 * hidden_dim, hidden_dim),
                                   minval=-s, maxval=s, dtype=jnp.float32),
        "b_ih": jax.random.uniform(k[2], (4 * hidden_dim,),
                                   minval=-s, maxval=s, dtype=jnp.float32),
        "b_hh": jax.random.uniform(k[3], (4 * hidden_dim,),
                                   minval=-s, maxval=s, dtype=jnp.float32),
        "w_fc": jax.random.uniform(k[4], (num_actions, hidden_dim),
                                   minval=-s, maxval=s, dtype=jnp.float32),
        "b_fc": jax.random.uniform(k[5], (num_actions,),
                                   minval=-s, maxval=s, dtype=jnp.float32),
    }


def reference_forward(x, torch_params):
    """Pure-JAX f32 reference with torch gate order [i, f, g, o]."""
    w_ih, w_hh = torch_params["w_ih"], torch_params["w_hh"]
    b = torch_params["b_ih"] + torch_params["b_hh"]
    w_fc, b_fc = torch_params["w_fc"], torch_params["b_fc"]
    H = w_hh.shape[1]

    def step(carry, x_t):
        h, c = carry
        gates = x_t @ w_ih.T + h @ w_hh.T + b
        i = jax.nn.sigmoid(gates[:, 0 * H:1 * H])
        f = jax.nn.sigmoid(gates[:, 1 * H:2 * H])
        g = jnp.tanh(gates[:, 2 * H:3 * H])
        o = jax.nn.sigmoid(gates[:, 3 * H:4 * H])
        c = f * c + i * g
        h = o * jnp.tanh(c)
        return (h, c), h @ w_fc.T + b_fc

    B = x.shape[0]
    h0 = jnp.zeros((B, H), jnp.float32)
    c0 = jnp.zeros((B, H), jnp.float32)
    _, out = jax.lax.scan(step, (h0, c0), jnp.transpose(x, (1, 0, 2)))
    return jnp.transpose(out, (1, 0, 2))


if __name__ == "__main__":
    # Small shapes consistent with the module's forward:
    # x: (batch, seq_len, input_dim), hidden_dim=32, num_actions=8.
    B, T, D, H, A = 2, 8, 9, 32, 8

    key = jax.random.PRNGKey(0)
    kx, kp = jax.random.split(key)
    x = jax.random.normal(kx, (B, T, D), dtype=jnp.float32)

    torch_params = init_params(kp, D, H, A)
    kparams = prepare_params(torch_params, H)

    logits = jax.block_until_ready(imitation_lstm_forward(x, kparams))
    ref = jax.block_until_ready(reference_forward(x, torch_params))

    assert logits.shape == (B, T, A)
    # bf16 MXU operands drift slightly from the f32 reference over the
    # recurrence -> loosened tolerance (per perf-review guidance).
    max_err = float(jnp.max(jnp.abs(logits - ref)))
    assert jnp.allclose(logits, ref, atol=5e-2, rtol=5e-2), max_err

    print("KERNEL_OK")
</pallas_src>

<mosaic_0001>
module attributes {stable_mosaic.version = 11 : i64} {
  func.func @_imitation_lstm_kernel(%arg0: i32, %arg1: memref<64x9xbf16, #tpu.memory_space<vmem>>, %arg2: memref<9x512xbf16, #tpu.memory_space<vmem>>, %arg3: memref<128x512xbf16, #tpu.memory_space<vmem>>, %arg4: memref<1x512xf32, #tpu.memory_space<vmem>>, %arg5: memref<128x128xbf16, #tpu.memory_space<vmem>>, %arg6: memref<1x128xf32, #tpu.memory_space<vmem>>, %arg7: memref<64x128xf32, #tpu.memory_space<vmem>>, %arg8: memref<64x512xf32, #tpu.memory_space<vmem>>, %arg9: memref<8x128xf32, #tpu.memory_space<vmem>>, %arg10: memref<8x128xf32, #tpu.memory_space<vmem>>) attributes {dimension_semantics = [#tpu.dimension_semantics<arbitrary>], iteration_bounds = array<i64: 1>, scalar_prefetch = 0 : i64, scratch_operands = 3 : i64, tpu.core_type = #tpu.core_type<tc>, window_params = [{transform_indices = @transform_0, window_bounds = array<i64: 64, 9>}, {pipeline_mode = #tpu.pipeline_mode<synchronous>, transform_indices = @transform_1, window_bounds = array<i64: 9, 512>}, {pipeline_mode = #tpu.pipeline_mode<synchronous>, transform_indices = @transform_2, window_bounds = array<i64: 128, 512>}, {pipeline_mode = #tpu.pipeline_mode<synchronous>, transform_indices = @transform_3, window_bounds = array<i64: 1, 512>}, {pipeline_mode = #tpu.pipeline_mode<synchronous>, transform_indices = @transform_4, window_bounds = array<i64: 128, 128>}, {pipeline_mode = #tpu.pipeline_mode<synchronous>, transform_indices = @transform_5, window_bounds = array<i64: 1, 128>}, {transform_indices = @transform_6, window_bounds = array<i64: 64, 128>}]} {
    %c0_i32 = arith.constant 0 : i32
    %0 = arith.cmpi eq, %arg0, %c0_i32 : i32
    %1 = arith.extui %0 : i1 to i32
    %c0_i32_0 = arith.constant 0 : i32
    %2 = arith.cmpi ne, %1, %c0_i32_0 : i32
    scf.if %2 {
      %cst_138 = arith.constant 0.000000e+00 : f32
      %258 = vector.broadcast %cst_138 : f32 to vector<8x128xf32>
      %c0_139 = arith.constant 0 : index
      %c0_140 = arith.constant 0 : index
      %259 = vector.load %arg9[%c0_139, %c0_140] : memref<8x128xf32, #tpu.memory_space<vmem>>, vector<8x128xf32>
      tpu.vector_store %arg9[%c0_139, %c0_140], %258 {strides = array<i32>} : memref<8x128xf32, #tpu.memory_space<vmem>>, vector<8x128xf32>,
      %cst_141 = arith.constant 0.000000e+00 : f32
      %260 = vector.broadcast %cst_141 : f32 to vector<8x128xf32>
      %c0_142 = arith.constant 0 : index
      %c0_143 = arith.constant 0 : index
      %261 = vector.load %arg10[%c0_142, %c0_143] : memref<8x128xf32, #tpu.memory_space<vmem>>, vector<8x128xf32>
      tpu.vector_store %arg10[%c0_142, %c0_143], %260 {strides = array<i32>} : memref<8x128xf32, #tpu.memory_space<vmem>>, vector<8x128xf32>,
    } else {
    }
    %c0 = arith.constant 0 : index
    %c0_1 = arith.constant 0 : index
    %3 = vector.load %arg1[%c0, %c0_1] : memref<64x9xbf16, #tpu.memory_space<vmem>>, vector<64x9xbf16>
    %c0_2 = arith.constant 0 : index
    %c0_3 = arith.constant 0 : index
    %4 = vector.load %arg2[%c0_2, %c0_3] : memref<9x512xbf16, #tpu.memory_space<vmem>>, vector<9x512xbf16>
    %cst = arith.constant dense<0.000000e+00> : vector<64x512xf32>
    %5 = tpu.matmul %3, %4, %cst {dimension_numbers = #tpu.dot_dimension_numbers<[1], [0], [0], [1], [0, 0, 1, 1], [], []>} : vector<64x9xbf16>, vector<9x512xbf16>, vector<64x512xf32> -> vector<64x512xf32>
    %c0_4 = arith.constant 0 : index
    %c0_5 = arith.constant 0 : index
    %6 = vector.load %arg4[%c0_4, %c0_5] : memref<1x512xf32, #tpu.memory_space<vmem>>, vector<1x512xf32>
    %7 = vector.broadcast %6 : vector<1x512xf32> to vector<64x512xf32>
    %8 = arith.addf %5, %7 : vector<64x512xf32>
    %c0_6 = arith.constant 0 : index
    %c0_7 = arith.constant 0 : index
    %9 = vector.load %arg8[%c0_6, %c0_7] : memref<64x512xf32, #tpu.memory_space<vmem>>, vector<64x512xf32>
    tpu.vector_store %arg8[%c0_6, %c0_7], %8 {strides = array<i32>} : memref<64x512xf32, #tpu.memory_space<vmem>>, vector<64x512xf32>,
    %c0_i32_8 = arith.constant 0 : i32
    %c8_i32 = arith.constant 8 : i32
    %10 = arith.muli %c0_i32_8, %c8_i32 : i32
    %11 = tpu.assume_multiple %10, 8 : i32
    %12 = arith.index_cast %11 : i32 to index
    %c0_9 = arith.constant 0 : index
    %13 = vector.load %arg8[%12, %c0_9] : memref<64x512xf32, #tpu.memory_space<vmem>>, vector<8x512xf32>
    %c0_10 = arith.constant 0 : index
    %c0_11 = arith.constant 0 : index
    %14 = vector.load %arg9[%c0_10, %c0_11] : memref<8x128xf32, #tpu.memory_space<vmem>>, vector<8x128xf32>
    %15 = arith.truncf %14 : vector<8x128xf32> to vector<8x128xbf16>
    %c0_12 = arith.constant 0 : index
    %c0_13 = arith.constant 0 : index
    %16 = vector.load %arg3[%c0_12, %c0_13] : memref<128x512xbf16, #tpu.memory_space<vmem>>, vector<128x512xbf16>
    %cst_14 = arith.constant dense<0.000000e+00> : vector<8x512xf32>
    %17 = tpu.matmul %15, %16, %cst_14 {dimension_numbers = #tpu.dot_dimension_numbers<[1], [0], [0], [1], [0, 0, 1, 1], [], []>} : vector<8x128xbf16>, vector<128x512xbf16>, vector<8x512xf32> -> vector<8x512xf32>
    %18 = arith.addf %13, %17 : vector<8x512xf32>
    %19 = vector.extract_strided_slice %18 {offsets = [0, 0], sizes = [8, 384], strides = [1, 1]} : vector<8x512xf32> to vector<8x384xf32>
    %20 = arith.negf %19 : vector<8x384xf32>
    %21 = math.exp %20 : vector<8x384xf32>
    %cst_15 = arith.constant 1.000000e+00 : f32
    %22 = vector.broadcast %cst_15 : f32 to vector<8x384xf32>
    %23 = arith.addf %22, %21 : vector<8x384xf32>
    %24 = arith.divf %22, %23 : vector<8x384xf32>
    %25 = vector.extract_strided_slice %18 {offsets = [0, 384], sizes = [8, 128], strides = [1, 1]} : vector<8x512xf32> to vector<8x128xf32>
    %26 = math.tanh %25 : vector<8x128xf32>
    %27 = vector.extract_strided_slice %24 {offsets = [0, 0], sizes = [8, 128], strides = [1, 1]} : vector<8x384xf32> to vector<8x128xf32>
    %28 = vector.extract_strided_slice %24 {offsets = [0, 128], sizes = [8, 128], strides = [1, 1]} : vector<8x384xf32> to vector<8x128xf32>
    %29 = vector.extract_strided_slice %24 {offsets = [0, 256], sizes = [8, 128], strides = [1, 1]} : vector<8x384xf32> to vector<8x128xf32>
    %c0_16 = arith.constant 0 : index
    %c0_17 = arith.constant 0 : index
    %30 = vector.load %arg10[%c0_16, %c0_17] : memref<8x128xf32, #tpu.memory_space<vmem>>, vector<8x128xf32>
    %31 = arith.mulf %28, %30 : vector<8x128xf32>
    %32 = arith.mulf %27, %26 : vector<8x128xf32>
    %33 = arith.addf %31, %32 : vector<8x128xf32>
    %34 = math.tanh %33 : vector<8x128xf32>
    %35 = arith.mulf %29, %34 : vector<8x128xf32>
    %c0_18 = arith.constant 0 : index
    %c0_19 = arith.constant 0 : index
    %36 = vector.load %arg10[%c0_18, %c0_19] : memref<8x128xf32, #tpu.memory_space<vmem>>, vector<8x128xf32>
    tpu.vector_store %arg10[%c0_18, %c0_19], %33 {strides = array<i32>} : memref<8x128xf32, #tpu.memory_space<vmem>>, vector<8x128xf32>,
    %c0_20 = arith.constant 0 : index
    %c0_21 = arith.constant 0 : index
    %37 = vector.load %arg9[%c0_20, %c0_21] : memref<8x128xf32, #tpu.memory_space<vmem>>, vector<8x128xf32>
    tpu.vector_store %arg9[%c0_20, %c0_21], %35 {strides = array<i32>} : memref<8x128xf32, #tpu.memory_space<vmem>>, vector<8x128xf32>,
    %38 = arith.index_cast %11 : i32 to index
    %c0_22 = arith.constant 0 : index
    %39 = vector.load %arg8[%38, %c0_22] : memref<64x512xf32, #tpu.memory_space<vmem>>, vector<8x128xf32>
    tpu.vector_store %arg8[%38, %c0_22], %35 {strides = array<i32>} : memref<64x512xf32, #tpu.memory_space<vmem>>, vector<8x128xf32>,
    %c1_i32 = arith.constant 1 : i32
    %c8_i32_23 = arith.constant 8 : i32
    %40 = arith.muli %c1_i32, %c8_i32_23 : i32
    %41 = tpu.assume_multiple %40, 8 : i32
    %42 = arith.index_cast %41 : i32 to index
    %c0_24 = arith.constant 0 : index
    %43 = vector.load %arg8[%42, %c0_24] : memref<64x512xf32, #tpu.memory_space<vmem>>, vector<8x512xf32>
    %c0_25 = arith.constant 0 : index
    %c0_26 = arith.constant 0 : index
    %44 = vector.load %arg9[%c0_25, %c0_26] : memref<8x128xf32, #tpu.memory_space<vmem>>, vector<8x128xf32>
    %45 = arith.truncf %44 : vector<8x128xf32> to vector<8x128xbf16>
    %c0_27 = arith.constant 0 : index
    %c0_28 = arith.constant 0 : index
    %46 = vector.load %arg3[%c0_27, %c0_28] : memref<128x512xbf16, #tpu.memory_space<vmem>>, vector<128x512xbf16>
    %cst_29 = arith.constant dense<0.000000e+00> : vector<8x512xf32>
    %47 = tpu.matmul %45, %46, %cst_29 {dimension_numbers = #tpu.dot_dimension_numbers<[1], [0], [0], [1], [0, 0, 1, 1], [], []>} : vector<8x128xbf16>, vector<128x512xbf16>, vector<8x512xf32> -> vector<8x512xf32>
    %48 = arith.addf %43, %47 : vector<8x512xf32>
    %49 = vector.extract_strided_slice %48 {offsets = [0, 0], sizes = [8, 384], strides = [1, 1]} : vector<8x512xf32> to vector<8x384xf32>
    %50 = arith.negf %49 : vector<8x384xf32>
    %51 = math.exp %50 : vector<8x384xf32>
    %cst_30 = arith.constant 1.000000e+00 : f32
    %52 = vector.broadcast %cst_30 : f32 to vector<8x384xf32>
    %53 = arith.addf %52, %51 : vector<8x384xf32>
    %54 = arith.divf %52, %53 : vector<8x384xf32>
    %55 = vector.extract_strided_slice %48 {offsets = [0, 384], sizes = [8, 128], strides = [1, 1]} : vector<8x512xf32> to vector<8x128xf32>
    %56 = math.tanh %55 : vector<8x128xf32>
    %57 = vector.extract_strided_slice %54 {offsets = [0, 0], sizes = [8, 128], strides = [1, 1]} : vector<8x384xf32> to vector<8x128xf32>
    %58 = vector.extract_strided_slice %54 {offsets = [0, 128], sizes = [8, 128], strides = [1, 1]} : vector<8x384xf32> to vector<8x128xf32>
    %59 = vector.extract_strided_slice %54 {offsets = [0, 256], sizes = [8, 128], strides = [1, 1]} : vector<8x384xf32> to vector<8x128xf32>
    %c0_31 = arith.constant 0 : index
    %c0_32 = arith.constant 0 : index
    %60 = vector.load %arg10[%c0_31, %c0_32] : memref<8x128xf32, #tpu.memory_space<vmem>>, vector<8x128xf32>
    %61 = arith.mulf %58, %60 : vector<8x128xf32>
    %62 = arith.mulf %57, %56 : vector<8x128xf32>
    %63 = arith.addf %61, %62 : vector<8x128xf32>
    %64 = math.tanh %63 : vector<8x128xf32>
    %65 = arith.mulf %59, %64 : vector<8x128xf32>
    %c0_33 = arith.constant 0 : index
    %c0_34 = arith.constant 0 : index
    %66 = vector.load %arg10[%c0_33, %c0_34] : memref<8x128xf32, #tpu.memory_space<vmem>>, vector<8x128xf32>
    tpu.vector_store %arg10[%c0_33, %c0_34], %63 {strides = array<i32>} : memref<8x128xf32, #tpu.memory_space<vmem>>, vector<8x128xf32>,
    %c0_35 = arith.constant 0 : index
    %c0_36 = arith.constant 0 : index
    %67 = vector.load %arg9[%c0_35, %c0_36] : memref<8x128xf32, #tpu.memory_space<vmem>>, vector<8x128xf32>
    tpu.vector_store %arg9[%c0_35, %c0_36], %65 {strides = array<i32>} : memref<8x128xf32, #tpu.memory_space<vmem>>, vector<8x128xf32>,
    %68 = arith.index_cast %41 : i32 to index
    %c0_37 = arith.constant 0 : index
    %69 = vector.load %arg8[%68, %c0_37] : memref<64x512xf32, #tpu.memory_space<vmem>>, vector<8x128xf32>
    tpu.vector_store %arg8[%68, %c0_37], %65 {strides = array<i32>} : memref<64x512xf32, #tpu.memory_space<vmem>>, vector<8x128xf32>,
    %c2_i32 = arith.constant 2 : i32
    %c8_i32_38 = arith.constant 8 : i32
    %70 = arith.muli %c2_i32, %c8_i32_38 : i32
    %71 = tpu.assume_multiple %70, 8 : i32
    %72 = arith.index_cast %71 : i32 to index
    %c0_39 = arith.constant 0 : index
    %73 = vector.load %arg8[%72, %c0_39] : memref<64x512xf32, #tpu.memory_space<vmem>>, vector<8x512xf32>
    %c0_40 = arith.constant 0 : index
    %c0_41 = arith.constant 0 : index
    %74 = vector.load %arg9[%c0_40, %c0_41] : memref<8x128xf32, #tpu.memory_space<vmem>>, vector<8x128xf32>
    %75 = arith.truncf %74 : vector<8x128xf32> to vector<8x128xbf16>
    %c0_42 = arith.constant 0 : index
    %c0_43 = arith.constant 0 : index
    %76 = vector.load %arg3[%c0_42, %c0_43] : memref<128x512xbf16, #tpu.memory_space<vmem>>, vector<128x512xbf16>
    %cst_44 = arith.constant dense<0.000000e+00> : vector<8x512xf32>
    %77 = tpu.matmul %75, %76, %cst_44 {dimension_numbers = #tpu.dot_dimension_numbers<[1], [0], [0], [1], [0, 0, 1, 1], [], []>} : vector<8x128xbf16>, vector<128x512xbf16>, vector<8x512xf32> -> vector<8x512xf32>
    %78 = arith.addf %73, %77 : vector<8x512xf32>
    %79 = vector.extract_strided_slice %78 {offsets = [0, 0], sizes = [8, 384], strides = [1, 1]} : vector<8x512xf32> to vector<8x384xf32>
    %80 = arith.negf %79 : vector<8x384xf32>
    %81 = math.exp %80 : vector<8x384xf32>
    %cst_45 = arith.constant 1.000000e+00 : f32
    %82 = vector.broadcast %cst_45 : f32 to vector<8x384xf32>
    %83 = arith.addf %82, %81 : vector<8x384xf32>
    %84 = arith.divf %82, %83 : vector<8x384xf32>
    %85 = vector.extract_strided_slice %78 {offsets = [0, 384], sizes = [8, 128], strides = [1, 1]} : vector<8x512xf32> to vector<8x128xf32>
    %86 = math.tanh %85 : vector<8x128xf32>
    %87 = vector.extract_strided_slice %84 {offsets = [0, 0], sizes = [8, 128], strides = [1, 1]} : vector<8x384xf32> to vector<8x128xf32>
    %88 = vector.extract_strided_slice %84 {offsets = [0, 128], sizes = [8, 128], strides = [1, 1]} : vector<8x384xf32> to vector<8x128xf32>
    %89 = vector.extract_strided_slice %84 {offsets = [0, 256], sizes = [8, 128], strides = [1, 1]} : vector<8x384xf32> to vector<8x128xf32>
    %c0_46 = arith.constant 0 : index
    %c0_47 = arith.constant 0 : index
    %90 = vector.load %arg10[%c0_46, %c0_47] : memref<8x128xf32, #tpu.memory_space<vmem>>, vector<8x128xf32>
    %91 = arith.mulf %88, %90 : vector<8x128xf32>
    %92 = arith.mulf %87, %86 : vector<8x128xf32>
    %93 = arith.addf %91, %92 : vector<8x128xf32>
    %94 = math.tanh %93 : vector<8x128xf32>
    %95 = arith.mulf %89, %94 : vector<8x128xf32>
    %c0_48 = arith.constant 0 : index
    %c0_49 = arith.constant 0 : index
    %96 = vector.load %arg10[%c0_48, %c0_49] : memref<8x128xf32, #tpu.memory_space<vmem>>, vector<8x128xf32>
    tpu.vector_store %arg10[%c0_48, %c0_49], %93 {strides = array<i32>} : memref<8x128xf32, #tpu.memory_space<vmem>>, vector<8x128xf32>,
    %c0_50 = arith.constant 0 : index
    %c0_51 = arith.constant 0 : index
    %97 = vector.load %arg9[%c0_50, %c0_51] : memref<8x128xf32, #tpu.memory_space<vmem>>, vector<8x128xf32>
    tpu.vector_store %arg9[%c0_50, %c0_51], %95 {strides = array<i32>} : memref<8x128xf32, #tpu.memory_space<vmem>>, vector<8x128xf32>,
    %98 = arith.index_cast %71 : i32 to index
    %c0_52 = arith.constant 0 : index
    %99 = vector.load %arg8[%98, %c0_52] : memref<64x512xf32, #tpu.memory_space<vmem>>, vector<8x128xf32>
    tpu.vector_store %arg8[%98, %c0_52], %95 {strides = array<i32>} : memref<64x512xf32, #tpu.memory_space<vmem>>, vector<8x128xf32>,
    %c3_i32 = arith.constant 3 : i32
    %c8_i32_53 = arith.constant 8 : i32
    %100 = arith.muli %c3_i32, %c8_i32_53 : i32
    %101 = tpu.assume_multiple %100, 8 : i32
    %102 = arith.index_cast %101 : i32 to index
    %c0_54 = arith.constant 0 : index
    %103 = vector.load %arg8[%102, %c0_54] : memref<64x512xf32, #tpu.memory_space<vmem>>, vector<8x512xf32>
    %c0_55 = arith.constant 0 : index
    %c0_56 = arith.constant 0 : index
    %104 = vector.load %arg9[%c0_55, %c0_56] : memref<8x128xf32, #tpu.memory_space<vmem>>, vector<8x128xf32>
    %105 = arith.truncf %104 : vector<8x128xf32> to vector<8x128xbf16>
    %c0_57 = arith.constant 0 : index
    %c0_58 = arith.constant 0 : index
    %106 = vector.load %arg3[%c0_57, %c0_58] : memref<128x512xbf16, #tpu.memory_space<vmem>>, vector<128x512xbf16>
    %cst_59 = arith.constant dense<0.000000e+00> : vector<8x512xf32>
    %107 = tpu.matmul %105, %106, %cst_59 {dimension_numbers = #tpu.dot_dimension_numbers<[1], [0], [0], [1], [0, 0, 1, 1], [], []>} : vector<8x128xbf16>, vector<128x512xbf16>, vector<8x512xf32> -> vector<8x512xf32>
    %108 = arith.addf %103, %107 : vector<8x512xf32>
    %109 = vector.extract_strided_slice %108 {offsets = [0, 0], sizes = [8, 384], strides = [1, 1]} : vector<8x512xf32> to vector<8x384xf32>
    %110 = arith.negf %109 : vector<8x384xf32>
    %111 = math.exp %110 : vector<8x384xf32>
    %cst_60 = arith.constant 1.000000e+00 : f32
    %112 = vector.broadcast %cst_60 : f32 to vector<8x384xf32>
    %113 = arith.addf %112, %111 : vector<8x384xf32>
    %114 = arith.divf %112, %113 : vector<8x384xf32>
    %115 = vector.extract_strided_slice %108 {offsets = [0, 384], sizes = [8, 128], strides = [1, 1]} : vector<8x512xf32> to vector<8x128xf32>
    %116 = math.tanh %115 : vector<8x128xf32>
    %117 = vector.extract_strided_slice %114 {offsets = [0, 0], sizes = [8, 128], strides = [1, 1]} : vector<8x384xf32> to vector<8x128xf32>
    %118 = vector.extract_strided_slice %114 {offsets = [0, 128], sizes = [8, 128], strides = [1, 1]} : vector<8x384xf32> to vector<8x128xf32>
    %119 = vector.extract_strided_slice %114 {offsets = [0, 256], sizes = [8, 128], strides = [1, 1]} : vector<8x384xf32> to vector<8x128xf32>
    %c0_61 = arith.constant 0 : index
    %c0_62 = arith.constant 0 : index
    %120 = vector.load %arg10[%c0_61, %c0_62] : memref<8x128xf32, #tpu.memory_space<vmem>>, vector<8x128xf32>
    %121 = arith.mulf %118, %120 : vector<8x128xf32>
    %122 = arith.mulf %117, %116 : vector<8x128xf32>
    %123 = arith.addf %121, %122 : vector<8x128xf32>
    %124 = math.tanh %123 : vector<8x128xf32>
    %125 = arith.mulf %119, %124 : vector<8x128xf32>
    %c0_63 = arith.constant 0 : index
    %c0_64 = arith.constant 0 : index
    %126 = vector.load %arg10[%c0_63, %c0_64] : memref<8x128xf32, #tpu.memory_space<vmem>>, vector<8x128xf32>
    tpu.vector_store %arg10[%c0_63, %c0_64], %123 {strides = array<i32>} : memref<8x128xf32, #tpu.memory_space<vmem>>, vector<8x128xf32>,
    %c0_65 = arith.constant 0 : index
    %c0_66 = arith.constant 0 : index
    %127 = vector.load %arg9[%c0_65, %c0_66] : memref<8x128xf32, #tpu.memory_space<vmem>>, vector<8x128xf32>
    tpu.vector_store %arg9[%c0_65, %c0_66], %125 {strides = array<i32>} : memref<8x128xf32, #tpu.memory_space<vmem>>, vector<8x128xf32>,
    %128 = arith.index_cast %101 : i32 to index
    %c0_67 = arith.constant 0 : index
    %129 = vector.load %arg8[%128, %c0_67] : memref<64x512xf32, #tpu.memory_space<vmem>>, vector<8x128xf32>
    tpu.vector_store %arg8[%128, %c0_67], %125 {strides = array<i32>} : memref<64x512xf32, #tpu.memory_space<vmem>>, vector<8x128xf32>,
    %c4_i32 = arith.constant 4 : i32
    %c8_i32_68 = arith.constant 8 : i32
    %130 = arith.muli %c4_i32, %c8_i32_68 : i32
    %131 = tpu.assume_multiple %130, 8 : i32
    %132 = arith.index_cast %131 : i32 to index
    %c0_69 = arith.constant 0 : index
    %133 = vector.load %arg8[%132, %c0_69] : memref<64x512xf32, #tpu.memory_space<vmem>>, vector<8x512xf32>
    %c0_70 = arith.constant 0 : index
    %c0_71 = arith.constant 0 : index
    %134 = vector.load %arg9[%c0_70, %c0_71] : memref<8x128xf32, #tpu.memory_space<vmem>>, vector<8x128xf32>
    %135 = arith.truncf %134 : vector<8x128xf32> to vector<8x128xbf16>
    %c0_72 = arith.constant 0 : index
    %c0_73 = arith.constant 0 : index
    %136 = vector.load %arg3[%c0_72, %c0_73] : memref<128x512xbf16, #tpu.memory_space<vmem>>, vector<128x512xbf16>
    %cst_74 = arith.constant dense<0.000000e+00> : vector<8x512xf32>
    %137 = tpu.matmul %135, %136, %cst_74 {dimension_numbers = #tpu.dot_dimension_numbers<[1], [0], [0], [1], [0, 0, 1, 1], [], []>} : vector<8x128xbf16>, vector<128x512xbf16>, vector<8x512xf32> -> vector<8x512xf32>
    %138 = arith.addf %133, %137 : vector<8x512xf32>
    %139 = vector.extract_strided_slice %138 {offsets = [0, 0], sizes = [8, 384], strides = [1, 1]} : vector<8x512xf32> to vector<8x384xf32>
    %140 = arith.negf %139 : vector<8x384xf32>
    %141 = math.exp %140 : vector<8x384xf32>
    %cst_75 = arith.constant 1.000000e+00 : f32
    %142 = vector.broadcast %cst_75 : f32 to vector<8x384xf32>
    %143 = arith.addf %142, %141 : vector<8x384xf32>
    %144 = arith.divf %142, %143 : vector<8x384xf32>
    %145 = vector.extract_strided_slice %138 {offsets = [0, 384], sizes = [8, 128], strides = [1, 1]} : vector<8x512xf32> to vector<8x128xf32>
    %146 = math.tanh %145 : vector<8x128xf32>
    %147 = vector.extract_strided_slice %144 {offsets = [0, 0], sizes = [8, 128], strides = [1, 1]} : vector<8x384xf32> to vector<8x128xf32>
    %148 = vector.extract_strided_slice %144 {offsets = [0, 128], sizes = [8, 128], strides = [1, 1]} : vector<8x384xf32> to vector<8x128xf32>
    %149 = vector.extract_strided_slice %144 {offsets = [0, 256], sizes = [8, 128], strides = [1, 1]} : vector<8x384xf32> to vector<8x128xf32>
    %c0_76 = arith.constant 0 : index
    %c0_77 = arith.constant 0 : index
    %150 = vector.load %arg10[%c0_76, %c0_77] : memref<8x128xf32, #tpu.memory_space<vmem>>, vector<8x128xf32>
    %151 = arith.mulf %148, %150 : vector<8x128xf32>
    %152 = arith.mulf %147, %146 : vector<8x128xf32>
    %153 = arith.addf %151, %152 : vector<8x128xf32>
    %154 = math.tanh %153 : vector<8x128xf32>
    %155 = arith.mulf %149, %154 : vector<8x128xf32>
    %c0_78 = arith.constant 0 : index
    %c0_79 = arith.constant 0 : index
    %156 = vector.load %arg10[%c0_78, %c0_79] : memref<8x128xf32, #tpu.memory_space<vmem>>, vector<8x128xf32>
    tpu.vector_store %arg10[%c0_78, %c0_79], %153 {strides = array<i32>} : memref<8x128xf32, #tpu.memory_space<vmem>>, vector<8x128xf32>,
    %c0_80 = arith.constant 0 : index
    %c0_81 = arith.constant 0 : index
    %157 = vector.load %arg9[%c0_80, %c0_81] : memref<8x128xf32, #tpu.memory_space<vmem>>, vector<8x128xf32>
    tpu.vector_store %arg9[%c0_80, %c0_81], %155 {strides = array<i32>} : memref<8x128xf32, #tpu.memory_space<vmem>>, vector<8x128xf32>,
    %158 = arith.index_cast %131 : i32 to index
    %c0_82 = arith.constant 0 : index
    %159 = vector.load %arg8[%158, %c0_82] : memref<64x512xf32, #tpu.memory_space<vmem>>, vector<8x128xf32>
    tpu.vector_store %arg8[%158, %c0_82], %155 {strides = array<i32>} : memref<64x512xf32, #tpu.memory_space<vmem>>, vector<8x128xf32>,
    %c5_i32 = arith.constant 5 : i32
    %c8_i32_83 = arith.constant 8 : i32
    %160 = arith.muli %c5_i32, %c8_i32_83 : i32
    %161 = tpu.assume_multiple %160, 8 : i32
    %162 = arith.index_cast %161 : i32 to index
    %c0_84 = arith.constant 0 : index
    %163 = vector.load %arg8[%162, %c0_84] : memref<64x512xf32, #tpu.memory_space<vmem>>, vector<8x512xf32>
    %c0_85 = arith.constant 0 : index
    %c0_86 = arith.constant 0 : index
    %164 = vector.load %arg9[%c0_85, %c0_86] : memref<8x128xf32, #tpu.memory_space<vmem>>, vector<8x128xf32>
    %165 = arith.truncf %164 : vector<8x128xf32> to vector<8x128xbf16>
    %c0_87 = arith.constant 0 : index
    %c0_88 = arith.constant 0 : index
    %166 = vector.load %arg3[%c0_87, %c0_88] : memref<128x512xbf16, #tpu.memory_space<vmem>>, vector<128x512xbf16>
    %cst_89 = arith.constant dense<0.000000e+00> : vector<8x512xf32>
    %167 = tpu.matmul %165, %166, %cst_89 {dimension_numbers = #tpu.dot_dimension_numbers<[1], [0], [0], [1], [0, 0, 1, 1], [], []>} : vector<8x128xbf16>, vector<128x512xbf16>, vector<8x512xf32> -> vector<8x512xf32>
    %168 = arith.addf %163, %167 : vector<8x512xf32>
    %169 = vector.extract_strided_slice %168 {offsets = [0, 0], sizes = [8, 384], strides = [1, 1]} : vector<8x512xf32> to vector<8x384xf32>
    %170 = arith.negf %169 : vector<8x384xf32>
    %171 = math.exp %170 : vector<8x384xf32>
    %cst_90 = arith.constant 1.000000e+00 : f32
    %172 = vector.broadcast %cst_90 : f32 to vector<8x384xf32>
    %173 = arith.addf %172, %171 : vector<8x384xf32>
    %174 = arith.divf %172, %173 : vector<8x384xf32>
    %175 = vector.extract_strided_slice %168 {offsets = [0, 384], sizes = [8, 128], strides = [1, 1]} : vector<8x512xf32> to vector<8x128xf32>
    %176 = math.tanh %175 : vector<8x128xf32>
    %177 = vector.extract_strided_slice %174 {offsets = [0, 0], sizes = [8, 128], strides = [1, 1]} : vector<8x384xf32> to vector<8x128xf32>
    %178 = vector.extract_strided_slice %174 {offsets = [0, 128], sizes = [8, 128], strides = [1, 1]} : vector<8x384xf32> to vector<8x128xf32>
    %179 = vector.extract_strided_slice %174 {offsets = [0, 256], sizes = [8, 128], strides = [1, 1]} : vector<8x384xf32> to vector<8x128xf32>
    %c0_91 = arith.constant 0 : index
    %c0_92 = arith.constant 0 : index
    %180 = vector.load %arg10[%c0_91, %c0_92] : memref<8x128xf32, #tpu.memory_space<vmem>>, vector<8x128xf32>
    %181 = arith.mulf %178, %180 : vector<8x128xf32>
    %182 = arith.mulf %177, %176 : vector<8x128xf32>
    %183 = arith.addf %181, %182 : vector<8x128xf32>
    %184 = math.tanh %183 : vector<8x128xf32>
    %185 = arith.mulf %179, %184 : vector<8x128xf32>
    %c0_93 = arith.constant 0 : index
    %c0_94 = arith.constant 0 : index
    %186 = vector.load %arg10[%c0_93, %c0_94] : memref<8x128xf32, #tpu.memory_space<vmem>>, vector<8x128xf32>
    tpu.vector_store %arg10[%c0_93, %c0_94], %183 {strides = array<i32>} : memref<8x128xf32, #tpu.memory_space<vmem>>, vector<8x128xf32>,
    %c0_95 = arith.constant 0 : index
    %c0_96 = arith.constant 0 : index
    %187 = vector.load %arg9[%c0_95, %c0_96] : memref<8x128xf32, #tpu.memory_space<vmem>>, vector<8x128xf32>
    tpu.vector_store %arg9[%c0_95, %c0_96], %185 {strides = array<i32>} : memref<8x128xf32, #tpu.memory_space<vmem>>, vector<8x128xf32>,
    %188 = arith.index_cast %161 : i32 to index
    %c0_97 = arith.constant 0 : index
    %189 = vector.load %arg8[%188, %c0_97] : memref<64x512xf32, #tpu.memory_space<vmem>>, vector<8x128xf32>
    tpu.vector_store %arg8[%188, %c0_97], %185 {strides = array<i32>} : memref<64x512xf32, #tpu.memory_space<vmem>>, vector<8x128xf32>,
    %c6_i32 = arith.constant 6 : i32
    %c8_i32_98 = arith.constant 8 : i32
    %190 = arith.muli %c6_i32, %c8_i32_98 : i32
    %191 = tpu.assume_multiple %190, 8 : i32
    %192 = arith.index_cast %191 : i32 to index
    %c0_99 = arith.constant 0 : index
    %193 = vector.load %arg8[%192, %c0_99] : memref<64x512xf32, #tpu.memory_space<vmem>>, vector<8x512xf32>
    %c0_100 = arith.constant 0 : index
    %c0_101 = arith.constant 0 : index
    %194 = vector.load %arg9[%c0_100, %c0_101] : memref<8x128xf32, #tpu.memory_space<vmem>>, vector<8x128xf32>
    %195 = arith.truncf %194 : vector<8x128xf32> to vector<8x128xbf16>
    %c0_102 = arith.constant 0 : index
    %c0_103 = arith.constant 0 : index
    %196 = vector.load %arg3[%c0_102, %c0_103] : memref<128x512xbf16, #tpu.memory_space<vmem>>, vector<128x512xbf16>
    %cst_104 = arith.constant dense<0.000000e+00> : vector<8x512xf32>
    %197 = tpu.matmul %195, %196, %cst_104 {dimension_numbers = #tpu.dot_dimension_numbers<[1], [0], [0], [1], [0, 0, 1, 1], [], []>} : vector<8x128xbf16>, vector<128x512xbf16>, vector<8x512xf32> -> vector<8x512xf32>
    %198 = arith.addf %193, %197 : vector<8x512xf32>
    %199 = vector.extract_strided_slice %198 {offsets = [0, 0], sizes = [8, 384], strides = [1, 1]} : vector<8x512xf32> to vector<8x384xf32>
    %200 = arith.negf %199 : vector<8x384xf32>
    %201 = math.exp %200 : vector<8x384xf32>
    %cst_105 = arith.constant 1.000000e+00 : f32
    %202 = vector.broadcast %cst_105 : f32 to vector<8x384xf32>
    %203 = arith.addf %202, %201 : vector<8x384xf32>
    %204 = arith.divf %202, %203 : vector<8x384xf32>
    %205 = vector.extract_strided_slice %198 {offsets = [0, 384], sizes = [8, 128], strides = [1, 1]} : vector<8x512xf32> to vector<8x128xf32>
    %206 = math.tanh %205 : vector<8x128xf32>
    %207 = vector.extract_strided_slice %204 {offsets = [0, 0], sizes = [8, 128], strides = [1, 1]} : vector<8x384xf32> to vector<8x128xf32>
    %208 = vector.extract_strided_slice %204 {offsets = [0, 128], sizes = [8, 128], strides = [1, 1]} : vector<8x384xf32> to vector<8x128xf32>
    %209 = vector.extract_strided_slice %204 {offsets = [0, 256], sizes = [8, 128], strides = [1, 1]} : vector<8x384xf32> to vector<8x128xf32>
    %c0_106 = arith.constant 0 : index
    %c0_107 = arith.constant 0 : index
    %210 = vector.load %arg10[%c0_106, %c0_107] : memref<8x128xf32, #tpu.memory_space<vmem>>, vector<8x128xf32>
    %211 = arith.mulf %208, %210 : vector<8x128xf32>
    %212 = arith.mulf %207, %206 : vector<8x128xf32>
    %213 = arith.addf %211, %212 : vector<8x128xf32>
    %214 = math.tanh %213 : vector<8x128xf32>
    %215 = arith.mulf %209, %214 : vector<8x128xf32>
    %c0_108 = arith.constant 0 : index
    %c0_109 = arith.constant 0 : index
    %216 = vector.load %arg10[%c0_108, %c0_109] : memref<8x128xf32, #tpu.memory_space<vmem>>, vector<8x128xf32>
    tpu.vector_store %arg10[%c0_108, %c0_109], %213 {strides = array<i32>} : memref<8x128xf32, #tpu.memory_space<vmem>>, vector<8x128xf32>,
    %c0_110 = arith.constant 0 : index
    %c0_111 = arith.constant 0 : index
    %217 = vector.load %arg9[%c0_110, %c0_111] : memref<8x128xf32, #tpu.memory_space<vmem>>, vector<8x128xf32>
    tpu.vector_store %arg9[%c0_110, %c0_111], %215 {strides = array<i32>} : memref<8x128xf32, #tpu.memory_space<vmem>>, vector<8x128xf32>,
    %218 = arith.index_cast %191 : i32 to index
    %c0_112 = arith.constant 0 : index
    %219 = vector.load %arg8[%218, %c0_112] : memref<64x512xf32, #tpu.memory_space<vmem>>, vector<8x128xf32>
    tpu.vector_store %arg8[%218, %c0_112], %215 {strides = array<i32>} : memref<64x512xf32, #tpu.memory_space<vmem>>, vector<8x128xf32>,
    %c7_i32 = arith.constant 7 : i32
    %c8_i32_113 = arith.constant 8 : i32
    %220 = arith.muli %c7_i32, %c8_i32_113 : i32
    %221 = tpu.assume_multiple %220, 8 : i32
    %222 = arith.index_cast %221 : i32 to index
    %c0_114 = arith.constant 0 : index
    %223 = vector.load %arg8[%222, %c0_114] : memref<64x512xf32, #tpu.memory_space<vmem>>, vector<8x512xf32>
    %c0_115 = arith.constant 0 : index
    %c0_116 = arith.constant 0 : index
    %224 = vector.load %arg9[%c0_115, %c0_116] : memref<8x128xf32, #tpu.memory_space<vmem>>, vector<8x128xf32>
    %225 = arith.truncf %224 : vector<8x128xf32> to vector<8x128xbf16>
    %c0_117 = arith.constant 0 : index
    %c0_118 = arith.constant 0 : index
    %226 = vector.load %arg3[%c0_117, %c0_118] : memref<128x512xbf16, #tpu.memory_space<vmem>>, vector<128x512xbf16>
    %cst_119 = arith.constant dense<0.000000e+00> : vector<8x512xf32>
    %227 = tpu.matmul %225, %226, %cst_119 {dimension_numbers = #tpu.dot_dimension_numbers<[1], [0], [0], [1], [0, 0, 1, 1], [], []>} : vector<8x128xbf16>, vector<128x512xbf16>, vector<8x512xf32> -> vector<8x512xf32>
    %228 = arith.addf %223, %227 : vector<8x512xf32>
    %229 = vector.extract_strided_slice %228 {offsets = [0, 0], sizes = [8, 384], strides = [1, 1]} : vector<8x512xf32> to vector<8x384xf32>
    %230 = arith.negf %229 : vector<8x384xf32>
    %231 = math.exp %230 : vector<8x384xf32>
    %cst_120 = arith.constant 1.000000e+00 : f32
    %232 = vector.broadcast %cst_120 : f32 to vector<8x384xf32>
    %233 = arith.addf %232, %231 : vector<8x384xf32>
    %234 = arith.divf %232, %233 : vector<8x384xf32>
    %235 = vector.extract_strided_slice %228 {offsets = [0, 384], sizes = [8, 128], strides = [1, 1]} : vector<8x512xf32> to vector<8x128xf32>
    %236 = math.tanh %235 : vector<8x128xf32>
    %237 = vector.extract_strided_slice %234 {offsets = [0, 0], sizes = [8, 128], strides = [1, 1]} : vector<8x384xf32> to vector<8x128xf32>
    %238 = vector.extract_strided_slice %234 {offsets = [0, 128], sizes = [8, 128], strides = [1, 1]} : vector<8x384xf32> to vector<8x128xf32>
    %239 = vector.extract_strided_slice %234 {offsets = [0, 256], sizes = [8, 128], strides = [1, 1]} : vector<8x384xf32> to vector<8x128xf32>
    %c0_121 = arith.constant 0 : index
    %c0_122 = arith.constant 0 : index
    %240 = vector.load %arg10[%c0_121, %c0_122] : memref<8x128xf32, #tpu.memory_space<vmem>>, vector<8x128xf32>
    %241 = arith.mulf %238, %240 : vector<8x128xf32>
    %242 = arith.mulf %237, %236 : vector<8x128xf32>
    %243 = arith.addf %241, %242 : vector<8x128xf32>
    %244 = math.tanh %243 : vector<8x128xf32>
    %245 = arith.mulf %239, %244 : vector<8x128xf32>
    %c0_123 = arith.constant 0 : index
    %c0_124 = arith.constant 0 : index
    %246 = vector.load %arg10[%c0_123, %c0_124] : memref<8x128xf32, #tpu.memory_space<vmem>>, vector<8x128xf32>
    tpu.vector_store %arg10[%c0_123, %c0_124], %243 {strides = array<i32>} : memref<8x128xf32, #tpu.memory_space<vmem>>, vector<8x128xf32>,
    %c0_125 = arith.constant 0 : index
    %c0_126 = arith.constant 0 : index
    %247 = vector.load %arg9[%c0_125, %c0_126] : memref<8x128xf32, #tpu.memory_space<vmem>>, vector<8x128xf32>
    tpu.vector_store %arg9[%c0_125, %c0_126], %245 {strides = array<i32>} : memref<8x128xf32, #tpu.memory_space<vmem>>, vector<8x128xf32>,
    %248 = arith.index_cast %221 : i32 to index
    %c0_127 = arith.constant 0 : index
    %249 = vector.load %arg8[%248, %c0_127] : memref<64x512xf32, #tpu.memory_space<vmem>>, vector<8x128xf32>
    tpu.vector_store %arg8[%248, %c0_127], %245 {strides = array<i32>} : memref<64x512xf32, #tpu.memory_space<vmem>>, vector<8x128xf32>,
    %c8_i32_128 = arith.constant 8 : i32
    %c0_129 = arith.constant 0 : index
    %c0_130 = arith.constant 0 : index
    %250 = vector.load %arg8[%c0_129, %c0_130] : memref<64x512xf32, #tpu.memory_space<vmem>>, vector<64x128xf32>
    %251 = arith.truncf %250 : vector<64x128xf32> to vector<64x128xbf16>
    %c0_131 = arith.constant 0 : index
    %c0_132 = arith.constant 0 : index
    %252 = vector.load %arg5[%c0_131, %c0_132] : memref<128x128xbf16, #tpu.memory_space<vmem>>, vector<128x128xbf16>
    %cst_133 = arith.constant dense<0.000000e+00> : vector<64x128xf32>
    %253 = tpu.matmul %251, %252, %cst_133 {dimension_numbers = #tpu.dot_dimension_numbers<[1], [0], [0], [1], [0, 0, 1, 1], [], []>} : vector<64x128xbf16>, vector<128x128xbf16>, vector<64x128xf32> -> vector<64x128xf32>
    %c0_134 = arith.constant 0 : index
    %c0_135 = arith.constant 0 : index
    %254 = vector.load %arg6[%c0_134, %c0_135] : memref<1x128xf32, #tpu.memory_space<vmem>>, vector<1x128xf32>
    %255 = vector.broadcast %254 : vector<1x128xf32> to vector<64x128xf32>
    %256 = arith.addf %253, %255 : vector<64x128xf32>
    %c0_136 = arith.constant 0 : index
    %c0_137 = arith.constant 0 : index
    %257 = vector.load %arg7[%c0_136, %c0_137] : memref<64x128xf32, #tpu.memory_space<vmem>>, vector<64x128xf32>
    tpu.vector_store %arg7[%c0_136, %c0_137], %256 {strides = array<i32>} : memref<64x128xf32, #tpu.memory_space<vmem>>, vector<64x128xf32>,
    return
  }
  func.func @transform_0(%arg0: i32) -> (i32, i32) {
    %c0_i32 = arith.constant 0 : i32
    %c0_i32_0 = arith.constant 0 : i32
    return %arg0, %c0_i32 : i32, i32
  }
  func.func @transform_1(%arg0: i32) -> (i32, i32) {
    %c0_i32 = arith.constant 0 : i32
    %c0_i32_0 = arith.constant 0 : i32
    %c0_i32_1 = arith.constant 0 : i32
    return %c0_i32, %c0_i32_0 : i32, i32
  }
  func.func @transform_2(%arg0: i32) -> (i32, i32) {
    %c0_i32 = arith.constant 0 : i32
    %c0_i32_0 = arith.constant 0 : i32
    %c0_i32_1 = arith.constant 0 : i32
    return %c0_i32, %c0_i32_0 : i32, i32
  }
  func.func @transform_3(%arg0: i32) -> (i32, i32) {
    %c0_i32 = arith.constant 0 : i32
    %c0_i32_0 = arith.constant 0 : i32
    %c0_i32_1 = arith.constant 0 : i32
    return %c0_i32, %c0_i32_0 : i32, i32
  }
  func.func @transform_4(%arg0: i32) -> (i32, i32) {
    %c0_i32 = arith.constant 0 : i32
    %c0_i32_0 = arith.constant 0 : i32
    %c0_i32_1 = arith.constant 0 : i32
    return %c0_i32, %c0_i32_0 : i32, i32
  }
  func.func @transform_5(%arg0: i32) -> (i32, i32) {
    %c0_i32 = arith.constant 0 : i32
    %c0_i32_0 = arith.constant 0 : i32
    %c0_i32_1 = arith.constant 0 : i32
    return %c0_i32, %c0_i32_0 : i32, i32
  }
  func.func @transform_6(%arg0: i32) -> (i32, i32) {
    %c0_i32 = arith.constant 0 : i32
    %c0_i32_0 = arith.constant 0 : i32
    return %arg0, %c0_i32 : i32, i32
  }
}

</mosaic_0001>

<llo_original>
// kernel: tpu_custom_call.1
$region0: #{tpu_custom_call.1}
  #allocation0 [shape = 'u32[]', space=smem, size = 0x4, offset = 0x4, fixed_abs, tag = 'smem constant byte address 0x4 - core index']
  #allocation1 [shape = 'u32[144,128]{1,0:T(1,128)}', space=vmem, size = 0x12000, scoped, tag = 'internal scratch']
  #allocation2 [shape = 'f32[64,512]{1,0:T(8,128)}', space=vmem, size = 0x20000, scoped, tag = 'scratch operand']
  #allocation3 [shape = 'f32[8,128]{1,0:T(8,128)}', space=vmem, size = 0x1000, scoped, tag = 'scratch operand']
  #allocation4 [shape = 'f32[8,128]{1,0:T(8,128)}', space=vmem, size = 0x1000, scoped, tag = 'scratch operand']
  %s0 = inlined_call_operand.vmem [shape: bf16[64,9], index: 0, kind: input, shape index: {}]
  %s1 = inlined_call_operand.vmem [shape: bf16[9,512], index: 1, kind: input, shape index: {}]
  %s2 = inlined_call_operand.hbm [shape: bf16[128,512], index: 2, kind: input, shape index: {}]
  %s3 = inlined_call_operand.vmem [shape: f32[1,512], index: 3, kind: input, shape index: {}]
  %s4 = inlined_call_operand.hbm [shape: bf16[128,128], index: 4, kind: input, shape index: {}]
  %s5 = inlined_call_operand.vmem [shape: f32[1,128], index: 5, kind: input, shape index: {}]
  %s6 = inlined_call_operand.hbm [shape: f32[64,128], index: 6, kind: output, shape index: {}]
  %s7 = sld [smem:[#allocation0]]
  $region46: #{tpu_custom_call.1} parent=0
    _
  %s9 = ssub.s32 1, %s7
  %s10 = scalar_select 0, %s9, %s7
  $region1: #{tpu_custom_call.1} parent=0
    #allocation5 [shape = 'u8[131072]{0}', space=vmem, size = 0x20000, scoped, tag = 'input window, operand 2, single buffered']
    #allocation6 [shape = 's32[1]{0}', space=sflag, size = 0x4, scoped, tag = 'scoped memory for tpu_custom_call.1']
    #allocation7 [shape = 's32[1]{0}', space=sflag, size = 0x4, scoped, tag = 'scoped memory for tpu_custom_call.1']
    #allocation8 [shape = 'u8[32768]{0}', space=vmem, size = 0x8000, scoped, tag = 'input window, operand 4, single buffered']
    #allocation9 [shape = 's32[1]{0}', space=sflag, size = 0x4, scoped, tag = 'scoped memory for tpu_custom_call.1']
    #allocation10 [shape = 'u8[32768]{0}', space=vmem, size = 0x8000, scoped, tag = 'output window, operand 0, single buffered']
    %11 = vsyncpa [#allocation6], 0
    %12 = vsyncpa [#allocation9], 0
    %13 = vsyncpa [#allocation7], 0
    // Predicated region
    $region2: #{tpu_custom_call.1} parent=1 // pred_check
      _
    $region3: #{tpu_custom_call.1} parent=1 // pred_check_branch
      %15 = sbr.rel (0) target = $region5
    $region4: #{tpu_custom_call.1} parent=1 // pred_region
      _
    $region5: #{tpu_custom_call.1} parent=1 // pred_fallthru
      _
    // Predicated region
    $region6: #{tpu_custom_call.1} parent=1 // pred_check
      _
    $region7: #{tpu_custom_call.1} parent=1 // pred_check_branch
      %17 = sbr.rel (0) target = $region9
    $region8: #{tpu_custom_call.1} parent=1 // pred_region
      _
    $region9: #{tpu_custom_call.1} parent=1 // pred_fallthru
      _
    // Predicated region
    $region10: #{tpu_custom_call.1} parent=1 // pred_check
      _
    $region11: #{tpu_custom_call.1} parent=1 // pred_check_branch
      %19 = sbr.rel (0) target = $region13
    $region12: #{tpu_custom_call.1} parent=1 // pred_region
      %s21 = ssub.s32 4096, 4096
      %22 = vsyncadd [#allocation6], %s21
      %s23 = sshll.u32 [#allocation5], 4
      %s24 = int_to_ptr.vmem [resolvable:$true] %s23
      %29 = dma.hbm_to_vmem [thread:$0]  %s2, 4096, %s24, [#allocation6], 256, 256, 16
    $region13: #{tpu_custom_call.1} parent=1 // pred_fallthru
      _
    // Predicated region
    $region14: #{tpu_custom_call.1} parent=1 // pred_check
      _
    $region15: #{tpu_custom_call.1} parent=1 // pred_check_branch
      %31 = sbr.rel (0) target = $region17
    $region16: #{tpu_custom_call.1} parent=1 // pred_region
      _
    $region17: #{tpu_custom_call.1} parent=1 // pred_fallthru
      _
    // Predicated region
    $region18: #{tpu_custom_call.1} parent=1 // pred_check
      _
    $region19: #{tpu_custom_call.1} parent=1 // pred_check_branch
      %33 = sbr.rel (0) target = $region21
    $region20: #{tpu_custom_call.1} parent=1 // pred_region
      %s35 = ssub.s32 1024, 1024
      %36 = vsyncadd [#allocation9], %s35
      %s37 = sshll.u32 [#allocation8], 4
      %s38 = int_to_ptr.vmem [resolvable:$true] %s37
      %43 = dma.hbm_to_vmem [thread:$0]  %s4, 1024, %s38, [#allocation9], 64, 64, 4
    $region21: #{tpu_custom_call.1} parent=1 // pred_fallthru
      _
    // Predicated region
    $region22: #{tpu_custom_call.1} parent=1 // pred_check
      _
    $region23: #{tpu_custom_call.1} parent=1 // pred_check_branch
      %45 = sbr.rel (0) target = $region25
    $region24: #{tpu_custom_call.1} parent=1 // pred_region
      _
    $region25: #{tpu_custom_call.1} parent=1 // pred_fallthru
      _
    // Predicated region
    $region26: #{tpu_custom_call.1} parent=1 // pred_check
      _
    $region27: #{tpu_custom_call.1} parent=1 // pred_check_branch
      %47 = sbr.rel (0) target = $region29
    $region28: #{tpu_custom_call.1} parent=1 // pred_region
      %48 = dma.done [#allocation6], 4096
    $region29: #{tpu_custom_call.1} parent=1 // pred_fallthru
      _
    // Predicated region
    $region30: #{tpu_custom_call.1} parent=1 // pred_check
      _
    $region31: #{tpu_custom_call.1} parent=1 // pred_check_branch
      %50 = sbr.rel (0) target = $region33
    $region32: #{tpu_custom_call.1} parent=1 // pred_region
      %51 = dma.done [#allocation9], 1024
    $region33: #{tpu_custom_call.1} parent=1 // pred_fallthru
      _
    %p53 = scmp.eq.s32.totalorder 0, 0
    // Predicated region
    $region34: #{tpu_custom_call.1} parent=1 // pred_check
      %p54 = pneg %p53
    $region35: #{tpu_custom_call.1} parent=1 // pred_check_branch
      %56 = sbr.rel (%p54) target = $region37
    $region36: #{tpu_custom_call.1} parent=1 // pred_region
      %57 = vst [vmem:[#allocation3] sm:$0xff] 0.0
      %58 = vst [vmem:[#allocation4] sm:$0xff] 0.0
    $region37: #{tpu_custom_call.1} parent=1 // pred_fallthru
      _
    %v59 = vld [vmem:[%s0] sm:$0xf]
    %v60 = vld [vmem:[%s0 + $0x4] sm:$0xf]
    %v61 = vld [vmem:[%s0 + $0x8] sm:$0xf]
    %v62 = vld [vmem:[%s0 + $0xc] sm:$0xf]
    %v63 = vld [vmem:[%s0 + $0x10] sm:$0xf]
    %v64 = vld [vmem:[%s0 + $0x14] sm:$0xf]
    %v65 = vld [vmem:[%s0 + $0x18] sm:$0xf]
    %v66 = vld [vmem:[%s0 + $0x1c] sm:$0xf]
    %v67 = vld [vmem:[%s1] sm:$0xff]
    %v68 = vld [vmem:[%s1 + $0x8] sm:$0xff]
    %v69 = vld [vmem:[%s1 + $0x10] sm:$0x11]
    %v70 = vld [vmem:[%s1 + $0x18] sm:$0x11]
    %v71 = vld [vmem:[%s3] sm:$0xf]
    %v73 = vlaneseq
    %v74 = vshrl.u32 %v73, 7
    %v75 = vsub.s32 0, %v74
    %v76 = vrot.slane %v71, %v75
    %v77 = vlaneseq
    %v78 = vshrl.u32 %v77, 7
    %v79 = vsub.s32 1, %v78
    %v80 = vrot.slane %v71, %v79
    %v81 = vlaneseq
    %v82 = vshrl.u32 %v81, 7
    %v83 = vsub.s32 2, %v82
    %v84 = vrot.slane %v71, %v83
    %v85 = vlaneseq
    %v86 = vshrl.u32 %v85, 7
    %v87 = vsub.s32 3, %v86
    %v88 = vrot.slane %v71, %v87
    %v101 = vunpack.c.l.b16 %v59
    %v102 = vunpack.c.l.b16 %v60
    %v103 = vunpack.c.l.b16 %v61
    %v104 = vunpack.c.l.b16 %v62
    %v105 = vunpack.c.l.b16 %v63
    %v106 = vunpack.c.l.b16 %v64
    %v107 = vunpack.c.l.b16 %v65
    %v108 = vunpack.c.l.b16 %v66
    %v109 = vpack.c.b16 %v102, %v101
    %v110 = vpack.c.b16 %v104, %v103
    %v111 = vpack.c.b16 %v106, %v105
    %v112 = vpack.c.b16 %v108, %v107
    %v117 = vunpack.c.l.b16 %v67
    %v118 = vunpack.c.h.b16 %v67
    %v119 = vunpack.c.l.b16 %v68
    %v120 = vunpack.c.h.b16 %v68
    %v121 = vunpack.c.l.b16 %v69
    %v122 = vunpack.c.h.b16 %v69
    %v123 = vunpack.c.l.b16 %v70
    %v124 = vunpack.c.h.b16 %v70
    %v125 = vpack.c.b16 %v121, %v117
    %v126 = vpack.c.b16 %v122, %v118
    %v127 = vpack.c.b16 %v123, %v119
    %v128 = vpack.c.b16 %v124, %v120
    %vm129 = vcmask 72704
    %v131 = vsel %vm129, %v109, 0
    %v134 = vsel %vm129, %v110, 0
    %v137 = vsel %vm129, %v111, 0
    %v140 = vsel %vm129, %v112, 0
    %vm142 = vcmask 1043456
    %vm143 = vcmask 1044480
    %v144 = vsel %vm142, 4294967295, 65535
    %v145 = vsel %vm143, %v144, 0
    %v147 = vand.u32 %v125, %v145
    %v150 = vand.u32 %v126, %v145
    %v153 = vand.u32 %v127, %v145
    %v156 = vand.u32 %v128, %v145
    %158 = vmatprep.subr.bf16.mxu0 %v150
    %159 = vmatpush1.bf16.msra.mxu0 %v147
    %160 = vmatprep.subr.bf16.mxu0 0
    %161 = vmatpush1.bf16.msra.mxu0 0
    %162 = vmatprep.subr.bf16.mxu0 0
    %163 = vmatpush1.bf16.msra.mxu0 0
    %164 = vmatprep.subr.bf16.mxu0 0
    %165 = vmatpush1.bf16.msra.mxu0 0
    %166 = vmatprep.subr.bf16.mxu0 0
    %167 = vmatpush1.bf16.msra.mxu0 0
    %168 = vmatprep.subr.bf16.mxu0 0
    %169 = vmatpush1.bf16.msra.mxu0 0
    %170 = vmatprep.subr.bf16.mxu0 0
    %171 = vmatpush1.bf16.msra.mxu0 0
    %172 = vmatprep.subr.bf16.mxu0 0
    %173 = vmatpush1.bf16.msra.mxu0 0
    %174 = vmatprep.subr.bf16.mxu0 0
    %175 = vmatpush1.bf16.msra.mxu0 0
    %176 = vmatprep.subr.bf16.mxu0 0
    %177 = vmatpush1.bf16.msra.mxu0 0
    %178 = vmatprep.subr.bf16.mxu0 0
    %179 = vmatpush1.bf16.msra.mxu0 0
    %180 = vmatprep.subr.bf16.mxu0 0
    %181 = vmatpush1.bf16.msra.mxu0 0
    %182 = vmatprep.subr.bf16.mxu0 0
    %183 = vmatpush1.bf16.msra.mxu0 0
    %184 = vmatprep.subr.bf16.mxu0 0
    %185 = vmatpush1.bf16.msra.mxu0 0
    %186 = vmatprep.subr.bf16.mxu0 0
    %187 = vmatpush1.bf16.msra.mxu0 0
    %188 = vmatprep.subr.bf16.mxu0 0
    %189 = vmatpush1.bf16.msra.mxu0 0
    %190 = vmatprep.mubr.bf16.mxu0 0
    %191 = vmatmul.mubr.bf16.gmra.mrb[0].mxu0 %v131
    %v192 = vpop.f32.mrb[0].mxu0
    %v193 = vadd.f32 %v76, %v192
    %v194 = vpop.f32.mrb[0].mxu0
    %v195 = vadd.f32 %v80, %v194
    %v196 = vpop.f32.mrb[0].mxu0
    %v197 = vadd.f32 %v76, %v196
    %v198 = vpop.f32.mrb[0].mxu0
    %v199 = vadd.f32 %v80, %v198
    %200 = vmatprep.mubr.bf16.mxu0 0
    %201 = vmatmul.mubr.bf16.gmra.mrb[0].mxu0 %v134
    %v202 = vpop.f32.mrb[0].mxu0
    %v203 = vadd.f32 %v76, %v202
    %v204 = vpop.f32.mrb[0].mxu0
    %v205 = vadd.f32 %v80, %v204
    %v206 = vpop.f32.mrb[0].mxu0
    %v207 = vadd.f32 %v76, %v206
    %v208 = vpop.f32.mrb[0].mxu0
    %v209 = vadd.f32 %v80, %v208
    %210 = vmatprep.mubr.bf16.mxu0 0
    %211 = vmatmul.mubr.bf16.gmra.mrb[0].mxu0 %v137
    %v212 = vpop.f32.mrb[0].mxu0
    %v213 = vadd.f32 %v76, %v212
    %v214 = vpop.f32.mrb[0].mxu0
    %v215 = vadd.f32 %v80, %v214
    %v216 = vpop.f32.mrb[0].mxu0
    %v217 = vadd.f32 %v76, %v216
    %v218 = vpop.f32.mrb[0].mxu0
    %v219 = vadd.f32 %v80, %v218
    %220 = vmatprep.mubr.bf16.mxu0 0
    %221 = vmatmul.mubr.bf16.gmra.mrb[0].mxu0 %v140
    %v222 = vpop.f32.mrb[0].mxu0
    %v223 = vadd.f32 %v76, %v222
    %v224 = vpop.f32.mrb[0].mxu0
    %v225 = vadd.f32 %v80, %v224
    %v226 = vpop.f32.mrb[0].mxu0
    %v227 = vadd.f32 %v76, %v226
    %v228 = vpop.f32.mrb[0].mxu0
    %v229 = vadd.f32 %v80, %v228
    %230 = vdwg.mxu0
    %231 = vmatprep.subr.bf16.mxu0 %v156
    %232 = vmatpush1.bf16.msra.mxu0 %v153
    %233 = vmatprep.subr.bf16.mxu0 0
    %234 = vmatpush1.bf16.msra.mxu0 0
    %235 = vmatprep.subr.bf16.mxu0 0
    %236 = vmatpush1.bf16.msra.mxu0 0
    %237 = vmatprep.subr.bf16.mxu0 0
    %238 = vmatpush1.bf16.msra.mxu0 0
    %239 = vmatprep.subr.bf16.mxu0 0
    %240 = vmatpush1.bf16.msra.mxu0 0
    %241 = vmatprep.subr.bf16.mxu0 0
    %242 = vmatpush1.bf16.msra.mxu0 0
    %243 = vmatprep.subr.bf16.mxu0 0
    %244 = vmatpush1.bf16.msra.mxu0 0
    %245 = vmatprep.subr.bf16.mxu0 0
    %246 = vmatpush1.bf16.msra.mxu0 0
    %247 = vmatprep.subr.bf16.mxu0 0
    %248 = vmatpush1.bf16.msra.mxu0 0
    %249 = vmatprep.subr.bf16.mxu0 0
    %250 = vmatpush1.bf16.msra.mxu0 0
    %251 = vmatprep.subr.bf16.mxu0 0
    %252 = vmatpush1.bf16.msra.mxu0 0
    %253 = vmatprep.subr.bf16.mxu0 0
    %254 = vmatpush1.bf16.msra.mxu0 0
    %255 = vmatprep.subr.bf16.mxu0 0
    %256 = vmatpush1.bf16.msra.mxu0 0
    %257 = vmatprep.subr.bf16.mxu0 0
    %258 = vmatpush1.bf16.msra.mxu0 0
    %259 = vmatprep.subr.bf16.mxu0 0
    %260 = vmatpush1.bf16.msra.mxu0 0
    %261 = vmatprep.subr.bf16.mxu0 0
    %262 = vmatpush1.bf16.msra.mxu0 0
    %263 = vmatprep.mubr.bf16.mxu0 0
    %264 = vmatmul.mubr.bf16.gmra.mrb[0].mxu0 %v131
    %v265 = vpop.f32.mrb[0].mxu0
    %v266 = vadd.f32 %v84, %v265
    %v267 = vpop.f32.mrb[0].mxu0
    %v268 = vadd.f32 %v88, %v267
    %v269 = vpop.f32.mrb[0].mxu0
    %v270 = vadd.f32 %v84, %v269
    %v271 = vpop.f32.mrb[0].mxu0
    %v272 = vadd.f32 %v88, %v271
    %273 = vmatprep.mubr.bf16.mxu0 0
    %274 = vmatmul.mubr.bf16.gmra.mrb[0].mxu0 %v134
    %v275 = vpop.f32.mrb[0].mxu0
    %v276 = vadd.f32 %v84, %v275
    %v277 = vpop.f32.mrb[0].mxu0
    %v278 = vadd.f32 %v88, %v277
    %v279 = vpop.f32.mrb[0].mxu0
    %v280 = vadd.f32 %v84, %v279
    %v281 = vpop.f32.mrb[0].mxu0
    %v282 = vadd.f32 %v88, %v281
    %283 = vmatprep.mubr.bf16.mxu0 0
    %284 = vmatmul.mubr.bf16.gmra.mrb[0].mxu0 %v137
    %v285 = vpop.f32.mrb[0].mxu0
    %v286 = vadd.f32 %v84, %v285
    %v287 = vpop.f32.mrb[0].mxu0
    %v288 = vadd.f32 %v88, %v287
    %v289 = vpop.f32.mrb[0].mxu0
    %v290 = vadd.f32 %v84, %v289
    %v291 = vpop.f32.mrb[0].mxu0
    %v292 = vadd.f32 %v88, %v291
    %293 = vmatprep.mubr.bf16.mxu0 0
    %294 = vmatmul.mubr.bf16.gmra.mrb[0].mxu0 %v140
    %v295 = vpop.f32.mrb[0].mxu0
    %v296 = vadd.f32 %v84, %v295
    %v297 = vpop.f32.mrb[0].mxu0
    %v298 = vadd.f32 %v88, %v297
    %v299 = vpop.f32.mrb[0].mxu0
    %v300 = vadd.f32 %v84, %v299
    %v301 = vpop.f32.mrb[0].mxu0
    %v302 = vadd.f32 %v88, %v301
    %303 = vdwg.mxu0
    %304 = vst [vmem:[#allocation2] sm:$0xff] %v193
    %305 = vst [vmem:[#allocation2 + $0x8] sm:$0xff] %v195
    %306 = vst [vmem:[#allocation2 + $0x10] sm:$0xff] %v266
    %307 = vst [vmem:[#allocation2 + $0x18] sm:$0xff] %v268
    %308 = vst [vmem:[#allocation2 + $0x20] sm:$0xff] %v197
    %309 = vst [vmem:[#allocation2 + $0x28] sm:$0xff] %v199
    %310 = vst [vmem:[#allocation2 + $0x30] sm:$0xff] %v270
    %311 = vst [vmem:[#allocation2 + $0x38] sm:$0xff] %v272
    %312 = vst [vmem:[#allocation2 + $0x40] sm:$0xff] %v203
    %313 = vst [vmem:[#allocation2 + $0x48] sm:$0xff] %v205
    %314 = vst [vmem:[#allocation2 + $0x50] sm:$0xff] %v276
    %315 = vst [vmem:[#allocation2 + $0x58] sm:$0xff] %v278
    %316 = vst [vmem:[#allocation2 + $0x60] sm:$0xff] %v207
    %317 = vst [vmem:[#allocation2 + $0x68] sm:$0xff] %v209
    %318 = vst [vmem:[#allocation2 + $0x70] sm:$0xff] %v280
    %319 = vst [vmem:[#allocation2 + $0x78] sm:$0xff] %v282
    %320 = vst [vmem:[#allocation2 + $0x80] sm:$0xff] %v213
    %321 = vst [vmem:[#allocation2 + $0x88] sm:$0xff] %v215
    %322 = vst [vmem:[#allocation2 + $0x90] sm:$0xff] %v286
    %323 = vst [vmem:[#allocation2 + $0x98] sm:$0xff] %v288
    %324 = vst [vmem:[#allocation2 + $0xa0] sm:$0xff] %v217
    %325 = vst [vmem:[#allocation2 + $0xa8] sm:$0xff] %v219
    %326 = vst [vmem:[#allocation2 + $0xb0] sm:$0xff] %v290
    %327 = vst [vmem:[#allocation2 + $0xb8] sm:$0xff] %v292
    %328 = vst [vmem:[#allocation2 + $0xc0] sm:$0xff] %v223
    %329 = vst [vmem:[#allocation2 + $0xc8] sm:$0xff] %v225
    %330 = vst [vmem:[#allocation2 + $0xd0] sm:$0xff] %v296
    %331 = vst [vmem:[#allocation2 + $0xd8] sm:$0xff] %v298
    %332 = vst [vmem:[#allocation2 + $0xe0] sm:$0xff] %v227
    %333 = vst [vmem:[#allocation2 + $0xe8] sm:$0xff] %v229
    %334 = vst [vmem:[#allocation2 + $0xf0] sm:$0xff] %v300
    %335 = vst [vmem:[#allocation2 + $0xf8] sm:$0xff] %v302
    %s336 = smul.u32 0, 4
    %s337 = smul.addr %s336, 8
    %s338 = scalar_lea.vmem [#allocation2], %s337
    %v339 = vld [vmem:[%s338] sm:$0xff]
    %v340 = vld [vmem:[%s338 + $0x8] sm:$0xff]
    %v341 = vld [vmem:[%s338 + $0x10] sm:$0xff]
    %v342 = vld [vmem:[%s338 + $0x18] sm:$0xff]
    %v343 = vld [vmem:[#allocation3] sm:$0xff]
    %v344 = vpack.c.bf16 %v343, %v343
    %v345 = vld [vmem:[#allocation5] sm:$0xff]
    %v346 = vld [vmem:[#allocation5 + $0x8] sm:$0xff]
    %v347 = vld [vmem:[#allocation5 + $0x10] sm:$0xff]
    %v348 = vld [vmem:[#allocation5 + $0x18] sm:$0xff]
    %v349 = vld [vmem:[#allocation5 + $0x20] sm:$0xff]
    %v350 = vld [vmem:[#allocation5 + $0x28] sm:$0xff]
    %v351 = vld [vmem:[#allocation5 + $0x30] sm:$0xff]
    %v352 = vld [vmem:[#allocation5 + $0x38] sm:$0xff]
    %v353 = vld [vmem:[#allocation5 + $0x40] sm:$0xff]
    %v354 = vld [vmem:[#allocation5 + $0x48] sm:$0xff]
    %v355 = vld [vmem:[#allocation5 + $0x50] sm:$0xff]
    %v356 = vld [vmem:[#allocation5 + $0x58] sm:$0xff]
    %v357 = vld [vmem:[#allocation5 + $0x60] sm:$0xff]
    %v358 = vld [vmem:[#allocation5 + $0x68] sm:$0xff]
    %v359 = vld [vmem:[#allocation5 + $0x70] sm:$0xff]
    %v360 = vld [vmem:[#allocation5 + $0x78] sm:$0xff]
    %v361 = vld [vmem:[#allocation5 + $0x80] sm:$0xff]
    %v362 = vld [vmem:[#allocation5 + $0x88] sm:$0xff]
    %v363 = vld [vmem:[#allocation5 + $0x90] sm:$0xff]
    %v364 = vld [vmem:[#allocation5 + $0x98] sm:$0xff]
    %v365 = vld [vmem:[#allocation5 + $0xa0] sm:$0xff]
    %v366 = vld [vmem:[#allocation5 + $0xa8] sm:$0xff]
    %v367 = vld [vmem:[#allocation5 + $0xb0] sm:$0xff]
    %v368 = vld [vmem:[#allocation5 + $0xb8] sm:$0xff]
    %v369 = vld [vmem:[#allocation5 + $0xc0] sm:$0xff]
    %v370 = vld [vmem:[#allocation5 + $0xc8] sm:$0xff]
    %v371 = vld [vmem:[#allocation5 + $0xd0] sm:$0xff]
    %v372 = vld [vmem:[#allocation5 + $0xd8] sm:$0xff]
    %v373 = vld [vmem:[#allocation5 + $0xe0] sm:$0xff]
    %v374 = vld [vmem:[#allocation5 + $0xe8] sm:$0xff]
    %v375 = vld [vmem:[#allocation5 + $0xf0] sm:$0xff]
    %v376 = vld [vmem:[#allocation5 + $0xf8] sm:$0xff]
    %v409 = vunpack.c.l.b16 %v345
    %v410 = vunpack.c.h.b16 %v345
    %v411 = vunpack.c.l.b16 %v346
    %v412 = vunpack.c.h.b16 %v346
    %v413 = vunpack.c.l.b16 %v347
    %v414 = vunpack.c.h.b16 %v347
    %v415 = vunpack.c.l.b16 %v348
    %v416 = vunpack.c.h.b16 %v348
    %v417 = vunpack.c.l.b16 %v349
    %v418 = vunpack.c.h.b16 %v349
    %v419 = vunpack.c.l.b16 %v350
    %v420 = vunpack.c.h.b16 %v350
    %v421 = vunpack.c.l.b16 %v351
    %v422 = vunpack.c.h.b16 %v351
    %v423 = vunpack.c.l.b16 %v352
    %v424 = vunpack.c.h.b16 %v352
    %v425 = vunpack.c.l.b16 %v353
    %v426 = vunpack.c.h.b16 %v353
    %v427 = vunpack.c.l.b16 %v354
    %v428 = vunpack.c.h.b16 %v354
    %v429 = vunpack.c.l.b16 %v355
    %v430 = vunpack.c.h.b16 %v355
    %v431 = vunpack.c.l.b16 %v356
    %v432 = vunpack.c.h.b16 %v356
    %v433 = vunpack.c.l.b16 %v357
    %v434 = vunpack.c.h.b16 %v357
    %v435 = vunpack.c.l.b16 %v358
    %v436 = vunpack.c.h.b16 %v358
    %v437 = vunpack.c.l.b16 %v359
    %v438 = vunpack.c.h.b16 %v359
    %v439 = vunpack.c.l.b16 %v360
    %v440 = vunpack.c.h.b16 %v360
    %v441 = vunpack.c.l.b16 %v361
    %v442 = vunpack.c.h.b16 %v361
    %v443 = vunpack.c.l.b16 %v362
    %v444 = vunpack.c.h.b16 %v362
    %v445 = vunpack.c.l.b16 %v363
    %v446 = vunpack.c.h.b16 %v363
    %v447 = vunpack.c.l.b16 %v364
    %v448 = vunpack.c.h.b16 %v364
    %v449 = vunpack.c.l.b16 %v365
    %v450 = vunpack.c.h.b16 %v365
    %v451 = vunpack.c.l.b16 %v366
    %v452 = vunpack.c.h.b16 %v366
    %v453 = vunpack.c.l.b16 %v367
    %v454 = vunpack.c.h.b16 %v367
    %v455 = vunpack.c.l.b16 %v368
    %v456 = vunpack.c.h.b16 %v368
    %v457 = vunpack.c.l.b16 %v369
    %v458 = vunpack.c.h.b16 %v369
    %v459 = vunpack.c.l.b16 %v370
    %v460 = vunpack.c.h.b16 %v370
    %v461 = vunpack.c.l.b16 %v371
    %v462 = vunpack.c.h.b16 %v371
    %v463 = vunpack.c.l.b16 %v372
    %v464 = vunpack.c.h.b16 %v372
    %v465 = vunpack.c.l.b16 %v373
    %v466 = vunpack.c.h.b16 %v373
    %v467 = vunpack.c.l.b16 %v374
    %v468 = vunpack.c.h.b16 %v374
    %v469 = vunpack.c.l.b16 %v375
    %v470 = vunpack.c.h.b16 %v375
    %v471 = vunpack.c.l.b16 %v376
    %v472 = vunpack.c.h.b16 %v376
    %v473 = vpack.c.b16 %v413, %v409
    %v474 = vpack.c.b16 %v414, %v410
    %v475 = vpack.c.b16 %v415, %v411
    %v476 = vpack.c.b16 %v416, %v412
    %v477 = vpack.c.b16 %v421, %v417
    %v478 = vpack.c.b16 %v422, %v418
    %v479 = vpack.c.b16 %v423, %v419
    %v480 = vpack.c.b16 %v424, %v420
    %v481 = vpack.c.b16 %v429, %v425
    %v482 = vpack.c.b16 %v430, %v426
    %v483 = vpack.c.b16 %v431, %v427
    %v484 = vpack.c.b16 %v432, %v428
    %v485 = vpack.c.b16 %v437, %v433
    %v486 = vpack.c.b16 %v438, %v434
    %v487 = vpack.c.b16 %v439, %v435
    %v488 = vpack.c.b16 %v440, %v436
    %v489 = vpack.c.b16 %v445, %v441
    %v490 = vpack.c.b16 %v446, %v442
    %v491 = vpack.c.b16 %v447, %v443
    %v492 = vpack.c.b16 %v448, %v444
    %v493 = vpack.c.b16 %v453, %v449
    %v494 = vpack.c.b16 %v454, %v450
    %v495 = vpack.c.b16 %v455, %v451
    %v496 = vpack.c.b16 %v456, %v452
    %v497 = vpack.c.b16 %v461, %v457
    %v498 = vpack.c.b16 %v462, %v458
    %v499 = vpack.c.b16 %v463, %v459
    %v500 = vpack.c.b16 %v464, %v460
    %v501 = vpack.c.b16 %v469, %v465
    %v502 = vpack.c.b16 %v470, %v466
    %v503 = vpack.c.b16 %v471, %v467
    %v504 = vpack.c.b16 %v472, %v468
    %537 = vmatprep.subr.bf16.mxu0 %v474
    %538 = vmatpush1.bf16.msra.mxu0 %v473
    %539 = vmatprep.subr.bf16.mxu0 %v478
    %540 = vmatpush1.bf16.msra.mxu0 %v477
    %541 = vmatprep.subr.bf16.mxu0 %v482
    %542 = vmatpush1.bf16.msra.mxu0 %v481
    %543 = vmatprep.subr.bf16.mxu0 %v486
    %544 = vmatpush1.bf16.msra.mxu0 %v485
    %545 = vmatprep.subr.bf16.mxu0 %v490
    %546 = vmatpush1.bf16.msra.mxu0 %v489
    %547 = vmatprep.subr.bf16.mxu0 %v494
    %548 = vmatpush1.bf16.msra.mxu0 %v493
    %549 = vmatprep.subr.bf16.mxu0 %v498
    %550 = vmatpush1.bf16.msra.mxu0 %v497
    %551 = vmatprep.subr.bf16.mxu0 %v502
    %552 = vmatpush1.bf16.msra.mxu0 %v501
    %553 = vmatprep.subr.bf16.mxu0 0
    %554 = vmatpush1.bf16.msra.mxu0 0
    %555 = vmatprep.subr.bf16.mxu0 0
    %556 = vmatpush1.bf16.msra.mxu0 0
    %557 = vmatprep.subr.bf16.mxu0 0
    %558 = vmatpush1.bf16.msra.mxu0 0
    %559 = vmatprep.subr.bf16.mxu0 0
    %560 = vmatpush1.bf16.msra.mxu0 0
    %561 = vmatprep.subr.bf16.mxu0 0
    %562 = vmatpush1.bf16.msra.mxu0 0
    %563 = vmatprep.subr.bf16.mxu0 0
    %564 = vmatpush1.bf16.msra.mxu0 0
    %565 = vmatprep.subr.bf16.mxu0 0
    %566 = vmatpush1.bf16.msra.mxu0 0
    %567 = vmatprep.subr.bf16.mxu0 0
    %568 = vmatpush1.bf16.msra.mxu0 0
    %569 = vmatprep.mubr.bf16.mxu0 0
    %570 = vmatmul.mubr.bf16.gmra.mrb[0].mxu0 %v344
    %v571 = vpop.f32.mrb[0].mxu0
    %v572 = vadd.f32 0.0, %v571
    %v573 = vpop.f32.mrb[0].mxu0
    %v574 = vadd.f32 0.0, %v573
    %v575 = vpop.f32.mrb[0].mxu0
    %v576 = vpop.f32.mrb[0].mxu0
    %577 = vdwg.mxu0
    %578 = vmatprep.subr.bf16.mxu0 %v476
    %579 = vmatpush1.bf16.msra.mxu0 %v475
    %580 = vmatprep.subr.bf16.mxu0 %v480
    %581 = vmatpush1.bf16.msra.mxu0 %v479
    %582 = vmatprep.subr.bf16.mxu0 %v484
    %583 = vmatpush1.bf16.msra.mxu0 %v483
    %584 = vmatprep.subr.bf16.mxu0 %v488
    %585 = vmatpush1.bf16.msra.mxu0 %v487
    %586 = vmatprep.subr.bf16.mxu0 %v492
    %587 = vmatpush1.bf16.msra.mxu0 %v491
    %588 = vmatprep.subr.bf16.mxu0 %v496
    %589 = vmatpush1.bf16.msra.mxu0 %v495
    %590 = vmatprep.subr.bf16.mxu0 %v500
    %591 = vmatpush1.bf16.msra.mxu0 %v499
    %592 = vmatprep.subr.bf16.mxu0 %v504
    %593 = vmatpush1.bf16.msra.mxu0 %v503
    %594 = vmatprep.subr.bf16.mxu0 0
    %595 = vmatpush1.bf16.msra.mxu0 0
    %596 = vmatprep.subr.bf16.mxu0 0
    %597 = vmatpush1.bf16.msra.mxu0 0
    %598 = vmatprep.subr.bf16.mxu0 0
    %599 = vmatpush1.bf16.msra.mxu0 0
    %600 = vmatprep.subr.bf16.mxu0 0
    %601 = vmatpush1.bf16.msra.mxu0 0
    %602 = vmatprep.subr.bf16.mxu0 0
    %603 = vmatpush1.bf16.msra.mxu0 0
    %604 = vmatprep.subr.bf16.mxu0 0
    %605 = vmatpush1.bf16.msra.mxu0 0
    %606 = vmatprep.subr.bf16.mxu0 0
    %607 = vmatpush1.bf16.msra.mxu0 0
    %608 = vmatprep.subr.bf16.mxu0 0
    %609 = vmatpush1.bf16.msra.mxu0 0
    %610 = vmatprep.mubr.bf16.mxu0 0
    %611 = vmatmul.mubr.bf16.gmra.mrb[0].mxu0 %v344
    %v612 = vpop.f32.mrb[0].mxu0
    %v613 = vadd.f32 0.0, %v612
    %v614 = vpop.f32.mrb[0].mxu0
    %v615 = vadd.f32 0.0, %v614
    %v616 = vpop.f32.mrb[0].mxu0
    %v617 = vpop.f32.mrb[0].mxu0
    %618 = vdwg.mxu0
    %v619 = vadd.f32 %v339, %v572
    %v620 = vadd.f32 %v340, %v574
    %v621 = vadd.f32 %v341, %v613
    %v622 = vadd.f32 %v342, %v615
    %v623 = vxor.u32 %v619, 2147483648
    %v624 = vxor.u32 %v620, 2147483648
    %v625 = vxor.u32 %v621, 2147483648
    %v626 = vmul.f32 %v623, 1.442695
    %v627 = vpow.pop %v626
    %v628 = vmul.f32 %v624, 1.442695
    %v629 = vpow.pop %v628
    %v630 = vmul.f32 %v625, 1.442695
    %v631 = vpow.pop %v630
    %v632 = vadd.f32 %v627, 1.0
    %v633 = vadd.f32 %v629, 1.0
    %v634 = vadd.f32 %v631, 1.0
    %v635 = vrcp.pop %v632
    %v636 = vmul.f32 1.0, %v635
    %v637 = vrcp.pop %v633
    %v638 = vmul.f32 1.0, %v637
    %v639 = vrcp.pop %v634
    %v640 = vmul.f32 1.0, %v639
    %v641 = vtanh.pop %v622
    %v642 = vld [vmem:[#allocation4] sm:$0xff]
    %v643 = vmul.f32 %v638, %v642
    %v644 = vmul.f32 %v636, %v641
    %v645 = vadd.f32 %v643, %v644
    %v646 = vtanh.pop %v645
    %v647 = vmul.f32 %v640, %v646
    %648 = vst [vmem:[#allocation4] sm:$0xff] %v645
    %649 = vst [vmem:[#allocation3] sm:$0xff] %v647
    %650 = vst [vmem:[%s338] sm:$0xff] %v647
    %s651 = smul.u32 1, 4
    %s652 = smul.addr %s651, 8
    %s653 = scalar_lea.vmem [#allocation2], %s652
    %v654 = vld [vmem:[%s653] sm:$0xff]
    %v655 = vld [vmem:[%s653 + $0x8] sm:$0xff]
    %v656 = vld [vmem:[%s653 + $0x10] sm:$0xff]
    %v657 = vld [vmem:[%s653 + $0x18] sm:$0xff]
    %v658 = vld [vmem:[#allocation3] sm:$0xff]
    %v659 = vpack.c.bf16 %v658, %v658
    %v660 = vld [vmem:[#allocation5] sm:$0xff]
    %v661 = vld [vmem:[#allocation5 + $0x8] sm:$0xff]
    %v662 = vld [vmem:[#allocation5 + $0x10] sm:$0xff]
    %v663 = vld [vmem:[#allocation5 + $0x18] sm:$0xff]
    %v664 = vld [vmem:[#allocation5 + $0x20] sm:$0xff]
    %v665 = vld [vmem:[#allocation5 + $0x28] sm:$0xff]
    %v666 = vld [vmem:[#allocation5 + $0x30] sm:$0xff]
    %v667 = vld [vmem:[#allocation5 + $0x38] sm:$0xff]
    %v668 = vld [vmem:[#allocation5 + $0x40] sm:$0xff]
    %v669 = vld [vmem:[#allocation5 + $0x48] sm:$0xff]
    %v670 = vld [vmem:[#allocation5 + $0x50] sm:$0xff]
    %v671 = vld [vmem:[#allocation5 + $0x58] sm:$0xff]
    %v672 = vld [vmem:[#allocation5 + $0x60] sm:$0xff]
    %v673 = vld [vmem:[#allocation5 + $0x68] sm:$0xff]
    %v674 = vld [vmem:[#allocation5 + $0x70] sm:$0xff]
    %v675 = vld [vmem:[#allocation5 + $0x78] sm:$0xff]
    %v676 = vld [vmem:[#allocation5 + $0x80] sm:$0xff]
    %v677 = vld [vmem:[#allocation5 + $0x88] sm:$0xff]
    %v678 = vld [vmem:[#allocation5 + $0x90] sm:$0xff]
    %v679 = vld [vmem:[#allocation5 + $0x98] sm:$0xff]
    %v680 = vld [vmem:[#allocation5 + $0xa0] sm:$0xff]
    %v681 = vld [vmem:[#allocation5 + $0xa8] sm:$0xff]
    %v682 = vld [vmem:[#allocation5 + $0xb0] sm:$0xff]
    %v683 = vld [vmem:[#allocation5 + $0xb8] sm:$0xff]
    %v684 = vld [vmem:[#allocation5 + $0xc0] sm:$0xff]
    %v685 = vld [vmem:[#allocation5 + $0xc8] sm:$0xff]
    %v686 = vld [vmem:[#allocation5 + $0xd0] sm:$0xff]
    %v687 = vld [vmem:[#allocation5 + $0xd8] sm:$0xff]
    %v688 = vld [vmem:[#allocation5 + $0xe0] sm:$0xff]
    %v689 = vld [vmem:[#allocation5 + $0xe8] sm:$0xff]
    %v690 = vld [vmem:[#allocation5 + $0xf0] sm:$0xff]
    %v691 = vld [vmem:[#allocation5 + $0xf8] sm:$0xff]
    %v724 = vunpack.c.l.b16 %v660
    %v725 = vunpack.c.h.b16 %v660
    %v726 = vunpack.c.l.b16 %v661
    %v727 = vunpack.c.h.b16 %v661
    %v728 = vunpack.c.l.b16 %v662
    %v729 = vunpack.c.h.b16 %v662
    %v730 = vunpack.c.l.b16 %v663
    %v731 = vunpack.c.h.b16 %v663
    %v732 = vunpack.c.l.b16 %v664
    %v733 = vunpack.c.h.b16 %v664
    %v734 = vunpack.c.l.b16 %v665
    %v735 = vunpack.c.h.b16 %v665
    %v736 = vunpack.c.l.b16 %v666
    %v737 = vunpack.c.h.b16 %v666
    %v738 = vunpack.c.l.b16 %v667
    %v739 = vunpack.c.h.b16 %v667
    %v740 = vunpack.c.l.b16 %v668
    %v741 = vunpack.c.h.b16 %v668
    %v742 = vunpack.c.l.b16 %v669
    %v743 = vunpack.c.h.b16 %v669
    %v744 = vunpack.c.l.b16 %v670
    %v745 = vunpack.c.h.b16 %v670
    %v746 = vunpack.c.l.b16 %v671
    %v747 = vunpack.c.h.b16 %v671
    %v748 = vunpack.c.l.b16 %v672
    %v749 = vunpack.c.h.b16 %v672
    %v750 = vunpack.c.l.b16 %v673
    %v751 = vunpack.c.h.b16 %v673
    %v752 = vunpack.c.l.b16 %v674
    %v753 = vunpack.c.h.b16 %v674
    %v754 = vunpack.c.l.b16 %v675
    %v755 = vunpack.c.h.b16 %v675
    %v756 = vunpack.c.l.b16 %v676
    %v757 = vunpack.c.h.b16 %v676
    %v758 = vunpack.c.l.b16 %v677
    %v759 = vunpack.c.h.b16 %v677
    %v760 = vunpack.c.l.b16 %v678
    %v761 = vunpack.c.h.b16 %v678
    %v762 = vunpack.c.l.b16 %v679
    %v763 = vunpack.c.h.b16 %v679
    %v764 = vunpack.c.l.b16 %v680
    %v765 = vunpack.c.h.b16 %v680
    %v766 = vunpack.c.l.b16 %v681
    %v767 = vunpack.c.h.b16 %v681
    %v768 = vunpack.c.l.b16 %v682
    %v769 = vunpack.c.h.b16 %v682
    %v770 = vunpack.c.l.b16 %v683
    %v771 = vunpack.c.h.b16 %v683
    %v772 = vunpack.c.l.b16 %v684
    %v773 = vunpack.c.h.b16 %v684
    %v774 = vunpack.c.l.b16 %v685
    %v775 = vunpack.c.h.b16 %v685
    %v776 = vunpack.c.l.b16 %v686
    %v777 = vunpack.c.h.b16 %v686
    %v778 = vunpack.c.l.b16 %v687
    %v779 = vunpack.c.h.b16 %v687
    %v780 = vunpack.c.l.b16 %v688
    %v781 = vunpack.c.h.b16 %v688
    %v782 = vunpack.c.l.b16 %v689
    %v783 = vunpack.c.h.b16 %v689
    %v784 = vunpack.c.l.b16 %v690
    %v785 = vunpack.c.h.b16 %v690
    %v786 = vunpack.c.l.b16 %v691
    %v787 = vunpack.c.h.b16 %v691
    %v788 = vpack.c.b16 %v728, %v724
    %v789 = vpack.c.b16 %v729, %v725
    %v790 = vpack.c.b16 %v730, %v726
    %v791 = vpack.c.b16 %v731, %v727
    %v792 = vpack.c.b16 %v736, %v732
    %v793 = vpack.c.b16 %v737, %v733
    %v794 = vpack.c.b16 %v738, %v734
    %v795 = vpack.c.b16 %v739, %v735
    %v796 = vpack.c.b16 %v744, %v740
    %v797 = vpack.c.b16 %v745, %v741
    %v798 = vpack.c.b16 %v746, %v742
    %v799 = vpack.c.b16 %v747, %v743
    %v800 = vpack.c.b16 %v752, %v748
    %v801 = vpack.c.b16 %v753, %v749
    %v802 = vpack.c.b16 %v754, %v750
    %v803 = vpack.c.b16 %v755, %v751
    %v804 = vpack.c.b16 %v760, %v756
    %v805 = vpack.c.b16 %v761, %v757
    %v806 = vpack.c.b16 %v762, %v758
    %v807 = vpack.c.b16 %v763, %v759
    %v808 = vpack.c.b16 %v768, %v764
    %v809 = vpack.c.b16 %v769, %v765
    %v810 = vpack.c.b16 %v770, %v766
    %v811 = vpack.c.b16 %v771, %v767
    %v812 = vpack.c.b16 %v776, %v772
    %v813 = vpack.c.b16 %v777, %v773
    %v814 = vpack.c.b16 %v778, %v774
    %v815 = vpack.c.b16 %v779, %v775
    %v816 = vpack.c.b16 %v784, %v780
    %v817 = vpack.c.b16 %v785, %v781
    %v818 = vpack.c.b16 %v786, %v782
    %v819 = vpack.c.b16 %v787, %v783
    %852 = vmatprep.subr.bf16.mxu0 %v789
    %853 = vmatpush1.bf16.msra.mxu0 %v788
    %854 = vmatprep.subr.bf16.mxu0 %v793
    %855 = vmatpush1.bf16.msra.mxu0 %v792
    %856 = vmatprep.subr.bf16.mxu0 %v797
    %857 = vmatpush1.bf16.msra.mxu0 %v796
    %858 = vmatprep.subr.bf16.mxu0 %v801
    %859 = vmatpush1.bf16.msra.mxu0 %v800
    %860 = vmatprep.subr.bf16.mxu0 %v805
    %861 = vmatpush1.bf16.msra.mxu0 %v804
    %862 = vmatprep.subr.bf16.mxu0 %v809
    %863 = vmatpush1.bf16.msra.mxu0 %v808
    %864 = vmatprep.subr.bf16.mxu0 %v813
    %865 = vmatpush1.bf16.msra.mxu0 %v812
    %866 = vmatprep.subr.bf16.mxu0 %v817
    %867 = vmatpush1.bf16.msra.mxu0 %v816
    %868 = vmatprep.subr.bf16.mxu0 0
    %869 = vmatpush1.bf16.msra.mxu0 0
    %870 = vmatprep.subr.bf16.mxu0 0
    %871 = vmatpush1.bf16.msra.mxu0 0
    %872 = vmatprep.subr.bf16.mxu0 0
    %873 = vmatpush1.bf16.msra.mxu0 0
    %874 = vmatprep.subr.bf16.mxu0 0
    %875 = vmatpush1.bf16.msra.mxu0 0
    %876 = vmatprep.subr.bf16.mxu0 0
    %877 = vmatpush1.bf16.msra.mxu0 0
    %878 = vmatprep.subr.bf16.mxu0 0
    %879 = vmatpush1.bf16.msra.mxu0 0
    %880 = vmatprep.subr.bf16.mxu0 0
    %881 = vmatpush1.bf16.msra.mxu0 0
    %882 = vmatprep.subr.bf16.mxu0 0
    %883 = vmatpush1.bf16.msra.mxu0 0
    %884 = vmatprep.mubr.bf16.mxu0 0
    %885 = vmatmul.mubr.bf16.gmra.mrb[0].mxu0 %v659
    %v886 = vpop.f32.mrb[0].mxu0
    %v887 = vadd.f32 0.0, %v886
    %v888 = vpop.f32.mrb[0].mxu0
    %v889 = vadd.f32 0.0, %v888
    %v890 = vpop.f32.mrb[0].mxu0
    %v891 = vpop.f32.mrb[0].mxu0
    %892 = vdwg.mxu0
    %893 = vmatprep.subr.bf16.mxu0 %v791
    %894 = vmatpush1.bf16.msra.mxu0 %v790
    %895 = vmatprep.subr.bf16.mxu0 %v795
    %896 = vmatpush1.bf16.msra.mxu0 %v794
    %897 = vmatprep.subr.bf16.mxu0 %v799
    %898 = vmatpush1.bf16.msra.mxu0 %v798
    %899 = vmatprep.subr.bf16.mxu0 %v803
    %900 = vmatpush1.bf16.msra.mxu0 %v802
    %901 = vmatprep.subr.bf16.mxu0 %v807
    %902 = vmatpush1.bf16.msra.mxu0 %v806
    %903 = vmatprep.subr.bf16.mxu0 %v811
    %904 = vmatpush1.bf16.msra.mxu0 %v810
    %905 = vmatprep.subr.bf16.mxu0 %v815
    %906 = vmatpush1.bf16.msra.mxu0 %v814
    %907 = vmatprep.subr.bf16.mxu0 %v819
    %908 = vmatpush1.bf16.msra.mxu0 %v818
    %909 = vmatprep.subr.bf16.mxu0 0
    %910 = vmatpush1.bf16.msra.mxu0 0
    %911 = vmatprep.subr.bf16.mxu0 0
    %912 = vmatpush1.bf16.msra.mxu0 0
    %913 = vmatprep.subr.bf16.mxu0 0
    %914 = vmatpush1.bf16.msra.mxu0 0
    %915 = vmatprep.subr.bf16.mxu0 0
    %916 = vmatpush1.bf16.msra.mxu0 0
    %917 = vmatprep.subr.bf16.mxu0 0
    %918 = vmatpush1.bf16.msra.mxu0 0
    %919 = vmatprep.subr.bf16.mxu0 0
    %920 = vmatpush1.bf16.msra.mxu0 0
    %921 = vmatprep.subr.bf16.mxu0 0
    %922 = vmatpush1.bf16.msra.mxu0 0
    %923 = vmatprep.subr.bf16.mxu0 0
    %924 = vmatpush1.bf16.msra.mxu0 0
    %925 = vmatprep.mubr.bf16.mxu0 0
    %926 = vmatmul.mubr.bf16.gmra.mrb[0].mxu0 %v659
    %v927 = vpop.f32.mrb[0].mxu0
    %v928 = vadd.f32 0.0, %v927
    %v929 = vpop.f32.mrb[0].mxu0
    %v930 = vadd.f32 0.0, %v929
    %v931 = vpop.f32.mrb[0].mxu0
    %v932 = vpop.f32.mrb[0].mxu0
    %933 = vdwg.mxu0
    %v934 = vadd.f32 %v654, %v887
    %v935 = vadd.f32 %v655, %v889
    %v936 = vadd.f32 %v656, %v928
    %v937 = vadd.f32 %v657, %v930
    %v938 = vxor.u32 %v934, 2147483648
    %v939 = vxor.u32 %v935, 2147483648
    %v940 = vxor.u32 %v936, 2147483648
    %v941 = vmul.f32 %v938, 1.442695
    %v942 = vpow.pop %v941
    %v943 = vmul.f32 %v939, 1.442695
    %v944 = vpow.pop %v943
    %v945 = vmul.f32 %v940, 1.442695
    %v946 = vpow.pop %v945
    %v947 = vadd.f32 %v942, 1.0
    %v948 = vadd.f32 %v944, 1.0
    %v949 = vadd.f32 %v946, 1.0
    %v950 = vrcp.pop %v947
    %v951 = vmul.f32 1.0, %v950
    %v952 = vrcp.pop %v948
    %v953 = vmul.f32 1.0, %v952
    %v954 = vrcp.pop %v949
    %v955 = vmul.f32 1.0, %v954
    %v956 = vtanh.pop %v937
    %v957 = vld [vmem:[#allocation4] sm:$0xff]
    %v958 = vmul.f32 %v953, %v957
    %v959 = vmul.f32 %v951, %v956
    %v960 = vadd.f32 %v958, %v959
    %v961 = vtanh.pop %v960
    %v962 = vmul.f32 %v955, %v961
    %963 = vst [vmem:[#allocation4] sm:$0xff] %v960
    %964 = vst [vmem:[#allocation3] sm:$0xff] %v962
    %965 = vst [vmem:[%s653] sm:$0xff] %v962
    %s966 = smul.u32 2, 4
    %s967 = smul.addr %s966, 8
    %s968 = scalar_lea.vmem [#allocation2], %s967
    %v969 = vld [vmem:[%s968] sm:$0xff]
    %v970 = vld [vmem:[%s968 + $0x8] sm:$0xff]
    %v971 = vld [vmem:[%s968 + $0x10] sm:$0xff]
    %v972 = vld [vmem:[%s968 + $0x18] sm:$0xff]
    %v973 = vld [vmem:[#allocation3] sm:$0xff]
    %v974 = vpack.c.bf16 %v973, %v973
    %v975 = vld [vmem:[#allocation5] sm:$0xff]
    %v976 = vld [vmem:[#allocation5 + $0x8] sm:$0xff]
    %v977 = vld [vmem:[#allocation5 + $0x10] sm:$0xff]
    %v978 = vld [vmem:[#allocation5 + $0x18] sm:$0xff]
    %v979 = vld [vmem:[#allocation5 + $0x20] sm:$0xff]
    %v980 = vld [vmem:[#allocation5 + $0x28] sm:$0xff]
    %v981 = vld [vmem:[#allocation5 + $0x30] sm:$0xff]
    %v982 = vld [vmem:[#allocation5 + $0x38] sm:$0xff]
    %v983 = vld [vmem:[#allocation5 + $0x40] sm:$0xff]
    %v984 = vld [vmem:[#allocation5 + $0x48] sm:$0xff]
    %v985 = vld [vmem:[#allocation5 + $0x50] sm:$0xff]
    %v986 = vld [vmem:[#allocation5 + $0x58] sm:$0xff]
    %v987 = vld [vmem:[#allocation5 + $0x60] sm:$0xff]
    %v988 = vld [vmem:[#allocation5 + $0x68] sm:$0xff]
    %v989 = vld [vmem:[#allocation5 + $0x70] sm:$0xff]
    %v990 = vld [vmem:[#allocation5 + $0x78] sm:$0xff]
    %v991 = vld [vmem:[#allocation5 + $0x80] sm:$0xff]
    %v992 = vld [vmem:[#allocation5 + $0x88] sm:$0xff]
    %v993 = vld [vmem:[#allocation5 + $0x90] sm:$0xff]
    %v994 = vld [vmem:[#allocation5 + $0x98] sm:$0xff]
    %v995 = vld [vmem:[#allocation5 + $0xa0] sm:$0xff]
    %v996 = vld [vmem:[#allocation5 + $0xa8] sm:$0xff]
    %v997 = vld [vmem:[#allocation5 + $0xb0] sm:$0xff]
    %v998 = vld [vmem:[#allocation5 + $0xb8] sm:$0xff]
    %v999 = vld [vmem:[#allocation5 + $0xc0] sm:$0xff]
    %v1000 = vld [vmem:[#allocation5 + $0xc8] sm:$0xff]
    %v1001 = vld [vmem:[#allocation5 + $0xd0] sm:$0xff]
    %v1002 = vld [vmem:[#allocation5 + $0xd8] sm:$0xff]
    %v1003 = vld [vmem:[#allocation5 + $0xe0] sm:$0xff]
    %v1004 = vld [vmem:[#allocation5 + $0xe8] sm:$0xff]
    %v1005 = vld [vmem:[#allocation5 + $0xf0] sm:$0xff]
    %v1006 = vld [vmem:[#allocation5 + $0xf8] sm:$0xff]
    %v1039 = vunpack.c.l.b16 %v975
    %v1040 = vunpack.c.h.b16 %v975
    %v1041 = vunpack.c.l.b16 %v976
    %v1042 = vunpack.c.h.b16 %v976
    %v1043 = vunpack.c.l.b16 %v977
    %v1044 = vunpack.c.h.b16 %v977
    %v1045 = vunpack.c.l.b16 %v978
    %v1046 = vunpack.c.h.b16 %v978
    %v1047 = vunpack.c.l.b16 %v979
    %v1048 = vunpack.c.h.b16 %v979
    %v1049 = vunpack.c.l.b16 %v980
    %v1050 = vunpack.c.h.b16 %v980
    %v1051 = vunpack.c.l.b16 %v981
    %v1052 = vunpack.c.h.b16 %v981
    %v1053 = vunpack.c.l.b16 %v982
    %v1054 = vunpack.c.h.b16 %v982
    %v1055 = vunpack.c.l.b16 %v983
    %v1056 = vunpack.c.h.b16 %v983
    %v1057 = vunpack.c.l.b16 %v984
    %v1058 = vunpack.c.h.b16 %v984
    %v1059 = vunpack.c.l.b16 %v985
    %v1060 = vunpack.c.h.b16 %v985
    %v1061 = vunpack.c.l.b16 %v986
    %v1062 = vunpack.c.h.b16 %v986
    %v1063 = vunpack.c.l.b16 %v987
    %v1064 = vunpack.c.h.b16 %v987
    %v1065 = vunpack.c.l.b16 %v988
    %v1066 = vunpack.c.h.b16 %v988
    %v1067 = vunpack.c.l.b16 %v989
    %v1068 = vunpack.c.h.b16 %v989
    %v1069 = vunpack.c.l.b16 %v990
    %v1070 = vunpack.c.h.b16 %v990
    %v1071 = vunpack.c.l.b16 %v991
    %v1072 = vunpack.c.h.b16 %v991
    %v1073 = vunpack.c.l.b16 %v992
    %v1074 = vunpack.c.h.b16 %v992
    %v1075 = vunpack.c.l.b16 %v993
    %v1076 = vunpack.c.h.b16 %v993
    %v1077 = vunpack.c.l.b16 %v994
    %v1078 = vunpack.c.h.b16 %v994
    %v1079 = vunpack.c.l.b16 %v995
    %v1080 = vunpack.c.h.b16 %v995
    %v1081 = vunpack.c.l.b16 %v996
    %v1082 = vunpack.c.h.b16 %v996
    %v1083 = vunpack.c.l.b16 %v997
    %v1084 = vunpack.c.h.b16 %v997
    %v1085 = vunpack.c.l.b16 %v998
    %v1086 = vunpack.c.h.b16 %v998
    %v1087 = vunpack.c.l.b16 %v999
    %v1088 = vunpack.c.h.b16 %v999
    %v1089 = vunpack.c.l.b16 %v1000
    %v1090 = vunpack.c.h.b16 %v1000
    %v1091 = vunpack.c.l.b16 %v1001
    %v1092 = vunpack.c.h.b16 %v1001
    %v1093 = vunpack.c.l.b16 %v1002
    %v1094 = vunpack.c.h.b16 %v1002
    %v1095 = vunpack.c.l.b16 %v1003
    %v1096 = vunpack.c.h.b16 %v1003
    %v1097 = vunpack.c.l.b16 %v1004
    %v1098 = vunpack.c.h.b16 %v1004
    %v1099 = vunpack.c.l.b16 %v1005
    %v1100 = vunpack.c.h.b16 %v1005
    %v1101 = vunpack.c.l.b16 %v1006
    %v1102 = vunpack.c.h.b16 %v1006
    %v1103 = vpack.c.b16 %v1043, %v1039
    %v1104 = vpack.c.b16 %v1044, %v1040
    %v1105 = vpack.c.b16 %v1045, %v1041
    %v1106 = vpack.c.b16 %v1046, %v1042
    %v1107 = vpack.c.b16 %v1051, %v1047
    %v1108 = vpack.c.b16 %v1052, %v1048
    %v1109 = vpack.c.b16 %v1053, %v1049
    %v1110 = vpack.c.b16 %v1054, %v1050
    %v1111 = vpack.c.b16 %v1059, %v1055
    %v1112 = vpack.c.b16 %v1060, %v1056
    %v1113 = vpack.c.b16 %v1061, %v1057
    %v1114 = vpack.c.b16 %v1062, %v1058
    %v1115 = vpack.c.b16 %v1067, %v1063
    %v1116 = vpack.c.b16 %v1068, %v1064
    %v1117 = vpack.c.b16 %v1069, %v1065
    %v1118 = vpack.c.b16 %v1070, %v1066
    %v1119 = vpack.c.b16 %v1075, %v1071
    %v1120 = vpack.c.b16 %v1076, %v1072
    %v1121 = vpack.c.b16 %v1077, %v1073
    %v1122 = vpack.c.b16 %v1078, %v1074
    %v1123 = vpack.c.b16 %v1083, %v1079
    %v1124 = vpack.c.b16 %v1084, %v1080
    %v1125 = vpack.c.b16 %v1085, %v1081
    %v1126 = vpack.c.b16 %v1086, %v1082
    %v1127 = vpack.c.b16 %v1091, %v1087
    %v1128 = vpack.c.b16 %v1092, %v1088
    %v1129 = vpack.c.b16 %v1093, %v1089
    %v1130 = vpack.c.b16 %v1094, %v1090
    %v1131 = vpack.c.b16 %v1099, %v1095
    %v1132 = vpack.c.b16 %v1100, %v1096
    %v1133 = vpack.c.b16 %v1101, %v1097
    %v1134 = vpack.c.b16 %v1102, %v1098
    %1167 = vmatprep.subr.bf16.mxu0 %v1104
    %1168 = vmatpush1.bf16.msra.mxu0 %v1103
    %1169 = vmatprep.subr.bf16.mxu0 %v1108
    %1170 = vmatpush1.bf16.msra.mxu0 %v1107
    %1171 = vmatprep.subr.bf16.mxu0 %v1112
    %1172 = vmatpush1.bf16.msra.mxu0 %v1111
    %1173 = vmatprep.subr.bf16.mxu0 %v1116
    %1174 = vmatpush1.bf16.msra.mxu0 %v1115
    %1175 = vmatprep.subr.bf16.mxu0 %v1120
    %1176 = vmatpush1.bf16.msra.mxu0 %v1119
    %1177 = vmatprep.subr.bf16.mxu0 %v1124
    %1178 = vmatpush1.bf16.msra.mxu0 %v1123
    %1179 = vmatprep.subr.bf16.mxu0 %v1128
    %1180 = vmatpush1.bf16.msra.mxu0 %v1127
    %1181 = vmatprep.subr.bf16.mxu0 %v1132
    %1182 = vmatpush1.bf16.msra.mxu0 %v1131
    %1183 = vmatprep.subr.bf16.mxu0 0
    %1184 = vmatpush1.bf16.msra.mxu0 0
    %1185 = vmatprep.subr.bf16.mxu0 0
    %1186 = vmatpush1.bf16.msra.mxu0 0
    %1187 = vmatprep.subr.bf16.mxu0 0
    %1188 = vmatpush1.bf16.msra.mxu0 0
    %1189 = vmatprep.subr.bf16.mxu0 0
    %1190 = vmatpush1.bf16.msra.mxu0 0
    %1191 = vmatprep.subr.bf16.mxu0 0
    %1192 = vmatpush1.bf16.msra.mxu0 0
    %1193 = vmatprep.subr.bf16.mxu0 0
    %1194 = vmatpush1.bf16.msra.mxu0 0
    %1195 = vmatprep.subr.bf16.mxu0 0
    %1196 = vmatpush1.bf16.msra.mxu0 0
    %1197 = vmatprep.subr.bf16.mxu0 0
    %1198 = vmatpush1.bf16.msra.mxu0 0
    %1199 = vmatprep.mubr.bf16.mxu0 0
    %1200 = vmatmul.mubr.bf16.gmra.mrb[0].mxu0 %v974
    %v1201 = vpop.f32.mrb[0].mxu0
    %v1202 = vadd.f32 0.0, %v1201
    %v1203 = vpop.f32.mrb[0].mxu0
    %v1204 = vadd.f32 0.0, %v1203
    %v1205 = vpop.f32.mrb[0].mxu0
    %v1206 = vpop.f32.mrb[0].mxu0
    %1207 = vdwg.mxu0
    %1208 = vmatprep.subr.bf16.mxu0 %v1106
    %1209 = vmatpush1.bf16.msra.mxu0 %v1105
    %1210 = vmatprep.subr.bf16.mxu0 %v1110
    %1211 = vmatpush1.bf16.msra.mxu0 %v1109
    %1212 = vmatprep.subr.bf16.mxu0 %v1114
    %1213 = vmatpush1.bf16.msra.mxu0 %v1113
    %1214 = vmatprep.subr.bf16.mxu0 %v1118
    %1215 = vmatpush1.bf16.msra.mxu0 %v1117
    %1216 = vmatprep.subr.bf16.mxu0 %v1122
    %1217 = vmatpush1.bf16.msra.mxu0 %v1121
    %1218 = vmatprep.subr.bf16.mxu0 %v1126
    %1219 = vmatpush1.bf16.msra.mxu0 %v1125
    %1220 = vmatprep.subr.bf16.mxu0 %v1130
    %1221 = vmatpush1.bf16.msra.mxu0 %v1129
    %1222 = vmatprep.subr.bf16.mxu0 %v1134
    %1223 = vmatpush1.bf16.msra.mxu0 %v1133
    %1224 = vmatprep.subr.bf16.mxu0 0
    %1225 = vmatpush1.bf16.msra.mxu0 0
    %1226 = vmatprep.subr.bf16.mxu0 0
    %1227 = vmatpush1.bf16.msra.mxu0 0
    %1228 = vmatprep.subr.bf16.mxu0 0
    %1229 = vmatpush1.bf16.msra.mxu0 0
    %1230 = vmatprep.subr.bf16.mxu0 0
    %1231 = vmatpush1.bf16.msra.mxu0 0
    %1232 = vmatprep.subr.bf16.mxu0 0
    %1233 = vmatpush1.bf16.msra.mxu0 0
    %1234 = vmatprep.subr.bf16.mxu0 0
    %1235 = vmatpush1.bf16.msra.mxu0 0
    %1236 = vmatprep.subr.bf16.mxu0 0
    %1237 = vmatpush1.bf16.msra.mxu0 0
    %1238 = vmatprep.subr.bf16.mxu0 0
    %1239 = vmatpush1.bf16.msra.mxu0 0
    %1240 = vmatprep.mubr.bf16.mxu0 0
    %1241 = vmatmul.mubr.bf16.gmra.mrb[0].mxu0 %v974
    %v1242 = vpop.f32.mrb[0].mxu0
    %v1243 = vadd.f32 0.0, %v1242
    %v1244 = vpop.f32.mrb[0].mxu0
    %v1245 = vadd.f32 0.0, %v1244
    %v1246 = vpop.f32.mrb[0].mxu0
    %v1247 = vpop.f32.mrb[0].mxu0
    %1248 = vdwg.mxu0
    %v1249 = vadd.f32 %v969, %v1202
    %v1250 = vadd.f32 %v970, %v1204
    %v1251 = vadd.f32 %v971, %v1243
    %v1252 = vadd.f32 %v972, %v1245
    %v1253 = vxor.u32 %v1249, 2147483648
    %v1254 = vxor.u32 %v1250, 2147483648
    %v1255 = vxor.u32 %v1251, 2147483648
    %v1256 = vmul.f32 %v1253, 1.442695
    %v1257 = vpow.pop %v1256
    %v1258 = vmul.f32 %v1254, 1.442695
    %v1259 = vpow.pop %v1258
    %v1260 = vmul.f32 %v1255, 1.442695
    %v1261 = vpow.pop %v1260
    %v1262 = vadd.f32 %v1257, 1.0
    %v1263 = vadd.f32 %v1259, 1.0
    %v1264 = vadd.f32 %v1261, 1.0
    %v1265 = vrcp.pop %v1262
    %v1266 = vmul.f32 1.0, %v1265
    %v1267 = vrcp.pop %v1263
    %v1268 = vmul.f32 1.0, %v1267
    %v1269 = vrcp.pop %v1264
    %v1270 = vmul.f32 1.0, %v1269
    %v1271 = vtanh.pop %v1252
    %v1272 = vld [vmem:[#allocation4] sm:$0xff]
    %v1273 = vmul.f32 %v1268, %v1272
    %v1274 = vmul.f32 %v1266, %v1271
    %v1275 = vadd.f32 %v1273, %v1274
    %v1276 = vtanh.pop %v1275
    %v1277 = vmul.f32 %v1270, %v1276
    %1278 = vst [vmem:[#allocation4] sm:$0xff] %v1275
    %1279 = vst [vmem:[#allocation3] sm:$0xff] %v1277
    %1280 = vst [vmem:[%s968] sm:$0xff] %v1277
    %s1281 = smul.u32 3, 4
    %s1282 = smul.addr %s1281, 8
    %s1283 = scalar_lea.vmem [#allocation2], %s1282
    %v1284 = vld [vmem:[%s1283] sm:$0xff]
    %v1285 = vld [vmem:[%s1283 + $0x8] sm:$0xff]
    %v1286 = vld [vmem:[%s1283 + $0x10] sm:$0xff]
    %v1287 = vld [vmem:[%s1283 + $0x18] sm:$0xff]
    %v1288 = vld [vmem:[#allocation3] sm:$0xff]
    %v1289 = vpack.c.bf16 %v1288, %v1288
    %v1290 = vld [vmem:[#allocation5] sm:$0xff]
    %v1291 = vld [vmem:[#allocation5 + $0x8] sm:$0xff]
    %v1292 = vld [vmem:[#allocation5 + $0x10] sm:$0xff]
    %v1293 = vld [vmem:[#allocation5 + $0x18] sm:$0xff]
    %v1294 = vld [vmem:[#allocation5 + $0x20] sm:$0xff]
    %v1295 = vld [vmem:[#allocation5 + $0x28] sm:$0xff]
    %v1296 = vld [vmem:[#allocation5 + $0x30] sm:$0xff]
    %v1297 = vld [vmem:[#allocation5 + $0x38] sm:$0xff]
    %v1298 = vld [vmem:[#allocation5 + $0x40] sm:$0xff]
    %v1299 = vld [vmem:[#allocation5 + $0x48] sm:$0xff]
    %v1300 = vld [vmem:[#allocation5 + $0x50] sm:$0xff]
    %v1301 = vld [vmem:[#allocation5 + $0x58] sm:$0xff]
    %v1302 = vld [vmem:[#allocation5 + $0x60] sm:$0xff]
    %v1303 = vld [vmem:[#allocation5 + $0x68] sm:$0xff]
    %v1304 = vld [vmem:[#allocation5 + $0x70] sm:$0xff]
    %v1305 = vld [vmem:[#allocation5 + $0x78] sm:$0xff]
    %v1306 = vld [vmem:[#allocation5 + $0x80] sm:$0xff]
    %v1307 = vld [vmem:[#allocation5 + $0x88] sm:$0xff]
    %v1308 = vld [vmem:[#allocation5 + $0x90] sm:$0xff]
    %v1309 = vld [vmem:[#allocation5 + $0x98] sm:$0xff]
    %v1310 = vld [vmem:[#allocation5 + $0xa0] sm:$0xff]
    %v1311 = vld [vmem:[#allocation5 + $0xa8] sm:$0xff]
    %v1312 = vld [vmem:[#allocation5 + $0xb0] sm:$0xff]
    %v1313 = vld [vmem:[#allocation5 + $0xb8] sm:$0xff]
    %v1314 = vld [vmem:[#allocation5 + $0xc0] sm:$0xff]
    %v1315 = vld [vmem:[#allocation5 + $0xc8] sm:$0xff]
    %v1316 = vld [vmem:[#allocation5 + $0xd0] sm:$0xff]
    %v1317 = vld [vmem:[#allocation5 + $0xd8] sm:$0xff]
    %v1318 = vld [vmem:[#allocation5 + $0xe0] sm:$0xff]
    %v1319 = vld [vmem:[#allocation5 + $0xe8] sm:$0xff]
    %v1320 = vld [vmem:[#allocation5 + $0xf0] sm:$0xff]
    %v1321 = vld [vmem:[#allocation5 + $0xf8] sm:$0xff]
    %v1354 = vunpack.c.l.b16 %v1290
    %v1355 = vunpack.c.h.b16 %v1290
    %v1356 = vunpack.c.l.b16 %v1291
    %v1357 = vunpack.c.h.b16 %v1291
    %v1358 = vunpack.c.l.b16 %v1292
    %v1359 = vunpack.c.h.b16 %v1292
    %v1360 = vunpack.c.l.b16 %v1293
    %v1361 = vunpack.c.h.b16 %v1293
    %v1362 = vunpack.c.l.b16 %v1294
    %v1363 = vunpack.c.h.b16 %v1294
    %v1364 = vunpack.c.l.b16 %v1295
    %v1365 = vunpack.c.h.b16 %v1295
    %v1366 = vunpack.c.l.b16 %v1296
    %v1367 = vunpack.c.h.b16 %v1296
    %v1368 = vunpack.c.l.b16 %v1297
    %v1369 = vunpack.c.h.b16 %v1297
    %v1370 = vunpack.c.l.b16 %v1298
    %v1371 = vunpack.c.h.b16 %v1298
    %v1372 = vunpack.c.l.b16 %v1299
    %v1373 = vunpack.c.h.b16 %v1299
    %v1374 = vunpack.c.l.b16 %v1300
    %v1375 = vunpack.c.h.b16 %v1300
    %v1376 = vunpack.c.l.b16 %v1301
    %v1377 = vunpack.c.h.b16 %v1301
    %v1378 = vunpack.c.l.b16 %v1302
    %v1379 = vunpack.c.h.b16 %v1302
    %v1380 = vunpack.c.l.b16 %v1303
    %v1381 = vunpack.c.h.b16 %v1303
    %v1382 = vunpack.c.l.b16 %v1304
    %v1383 = vunpack.c.h.b16 %v1304
    %v1384 = vunpack.c.l.b16 %v1305
    %v1385 = vunpack.c.h.b16 %v1305
    %v1386 = vunpack.c.l.b16 %v1306
    %v1387 = vunpack.c.h.b16 %v1306
    %v1388 = vunpack.c.l.b16 %v1307
    %v1389 = vunpack.c.h.b16 %v1307
    %v1390 = vunpack.c.l.b16 %v1308
    %v1391 = vunpack.c.h.b16 %v1308
    %v1392 = vunpack.c.l.b16 %v1309
    %v1393 = vunpack.c.h.b16 %v1309
    %v1394 = vunpack.c.l.b16 %v1310
    %v1395 = vunpack.c.h.b16 %v1310
    %v1396 = vunpack.c.l.b16 %v1311
    %v1397 = vunpack.c.h.b16 %v1311
    %v1398 = vunpack.c.l.b16 %v1312
    %v1399 = vunpack.c.h.b16 %v1312
    %v1400 = vunpack.c.l.b16 %v1313
    %v1401 = vunpack.c.h.b16 %v1313
    %v1402 = vunpack.c.l.b16 %v1314
    %v1403 = vunpack.c.h.b16 %v1314
    %v1404 = vunpack.c.l.b16 %v1315
    %v1405 = vunpack.c.h.b16 %v1315
    %v1406 = vunpack.c.l.b16 %v1316
    %v1407 = vunpack.c.h.b16 %v1316
    %v1408 = vunpack.c.l.b16 %v1317
    %v1409 = vunpack.c.h.b16 %v1317
    %v1410 = vunpack.c.l.b16 %v1318
    %v1411 = vunpack.c.h.b16 %v1318
    %v1412 = vunpack.c.l.b16 %v1319
    %v1413 = vunpack.c.h.b16 %v1319
    %v1414 = vunpack.c.l.b16 %v1320
    %v1415 = vunpack.c.h.b16 %v1320
    %v1416 = vunpack.c.l.b16 %v1321
    %v1417 = vunpack.c.h.b16 %v1321
    %v1418 = vpack.c.b16 %v1358, %v1354
    %v1419 = vpack.c.b16 %v1359, %v1355
    %v1420 = vpack.c.b16 %v1360, %v1356
    %v1421 = vpack.c.b16 %v1361, %v1357
    %v1422 = vpack.c.b16 %v1366, %v1362
    %v1423 = vpack.c.b16 %v1367, %v1363
    %v1424 = vpack.c.b16 %v1368, %v1364
    %v1425 = vpack.c.b16 %v1369, %v1365
    %v1426 = vpack.c.b16 %v1374, %v1370
    %v1427 = vpack.c.b16 %v1375, %v1371
    %v1428 = vpack.c.b16 %v1376, %v1372
    %v1429 = vpack.c.b16 %v1377, %v1373
    %v1430 = vpack.c.b16 %v1382, %v1378
    %v1431 = vpack.c.b16 %v1383, %v1379
    %v1432 = vpack.c.b16 %v1384, %v1380
    %v1433 = vpack.c.b16 %v1385, %v1381
    %v1434 = vpack.c.b16 %v1390, %v1386
    %v1435 = vpack.c.b16 %v1391, %v1387
    %v1436 = vpack.c.b16 %v1392, %v1388
    %v1437 = vpack.c.b16 %v1393, %v1389
    %v1438 = vpack.c.b16 %v1398, %v1394
    %v1439 = vpack.c.b16 %v1399, %v1395
    %v1440 = vpack.c.b16 %v1400, %v1396
    %v1441 = vpack.c.b16 %v1401, %v1397
    %v1442 = vpack.c.b16 %v1406, %v1402
    %v1443 = vpack.c.b16 %v1407, %v1403
    %v1444 = vpack.c.b16 %v1408, %v1404
    %v1445 = vpack.c.b16 %v1409, %v1405
    %v1446 = vpack.c.b16 %v1414, %v1410
    %v1447 = vpack.c.b16 %v1415, %v1411
    %v1448 = vpack.c.b16 %v1416, %v1412
    %v1449 = vpack.c.b16 %v1417, %v1413
    %1482 = vmatprep.subr.bf16.mxu0 %v1419
    %1483 = vmatpush1.bf16.msra.mxu0 %v1418
    %1484 = vmatprep.subr.bf16.mxu0 %v1423
    %1485 = vmatpush1.bf16.msra.mxu0 %v1422
    %1486 = vmatprep.subr.bf16.mxu0 %v1427
    %1487 = vmatpush1.bf16.msra.mxu0 %v1426
    %1488 = vmatprep.subr.bf16.mxu0 %v1431
    %1489 = vmatpush1.bf16.msra.mxu0 %v1430
    %1490 = vmatprep.subr.bf16.mxu0 %v1435
    %1491 = vmatpush1.bf16.msra.mxu0 %v1434
    %1492 = vmatprep.subr.bf16.mxu0 %v1439
    %1493 = vmatpush1.bf16.msra.mxu0 %v1438
    %1494 = vmatprep.subr.bf16.mxu0 %v1443
    %1495 = vmatpush1.bf16.msra.mxu0 %v1442
    %1496 = vmatprep.subr.bf16.mxu0 %v1447
    %1497 = vmatpush1.bf16.msra.mxu0 %v1446
    %1498 = vmatprep.subr.bf16.mxu0 0
    %1499 = vmatpush1.bf16.msra.mxu0 0
    %1500 = vmatprep.subr.bf16.mxu0 0
    %1501 = vmatpush1.bf16.msra.mxu0 0
    %1502 = vmatprep.subr.bf16.mxu0 0
    %1503 = vmatpush1.bf16.msra.mxu0 0
    %1504 = vmatprep.subr.bf16.mxu0 0
    %1505 = vmatpush1.bf16.msra.mxu0 0
    %1506 = vmatprep.subr.bf16.mxu0 0
    %1507 = vmatpush1.bf16.msra.mxu0 0
    %1508 = vmatprep.subr.bf16.mxu0 0
    %1509 = vmatpush1.bf16.msra.mxu0 0
    %1510 = vmatprep.subr.bf16.mxu0 0
    %1511 = vmatpush1.bf16.msra.mxu0 0
    %1512 = vmatprep.subr.bf16.mxu0 0
    %1513 = vmatpush1.bf16.msra.mxu0 0
    %1514 = vmatprep.mubr.bf16.mxu0 0
    %1515 = vmatmul.mubr.bf16.gmra.mrb[0].mxu0 %v1289
    %v1516 = vpop.f32.mrb[0].mxu0
    %v1517 = vadd.f32 0.0, %v1516
    %v1518 = vpop.f32.mrb[0].mxu0
    %v1519 = vadd.f32 0.0, %v1518
    %v1520 = vpop.f32.mrb[0].mxu0
    %v1521 = vpop.f32.mrb[0].mxu0
    %1522 = vdwg.mxu0
    %1523 = vmatprep.subr.bf16.mxu0 %v1421
    %1524 = vmatpush1.bf16.msra.mxu0 %v1420
    %1525 = vmatprep.subr.bf16.mxu0 %v1425
    %1526 = vmatpush1.bf16.msra.mxu0 %v1424
    %1527 = vmatprep.subr.bf16.mxu0 %v1429
    %1528 = vmatpush1.bf16.msra.mxu0 %v1428
    %1529 = vmatprep.subr.bf16.mxu0 %v1433
    %1530 = vmatpush1.bf16.msra.mxu0 %v1432
    %1531 = vmatprep.subr.bf16.mxu0 %v1437
    %1532 = vmatpush1.bf16.msra.mxu0 %v1436
    %1533 = vmatprep.subr.bf16.mxu0 %v1441
    %1534 = vmatpush1.bf16.msra.mxu0 %v1440
    %1535 = vmatprep.subr.bf16.mxu0 %v1445
    %1536 = vmatpush1.bf16.msra.mxu0 %v1444
    %1537 = vmatprep.subr.bf16.mxu0 %v1449
    %1538 = vmatpush1.bf16.msra.mxu0 %v1448
    %1539 = vmatprep.subr.bf16.mxu0 0
    %1540 = vmatpush1.bf16.msra.mxu0 0
    %1541 = vmatprep.subr.bf16.mxu0 0
    %1542 = vmatpush1.bf16.msra.mxu0 0
    %1543 = vmatprep.subr.bf16.mxu0 0
    %1544 = vmatpush1.bf16.msra.mxu0 0
    %1545 = vmatprep.subr.bf16.mxu0 0
    %1546 = vmatpush1.bf16.msra.mxu0 0
    %1547 = vmatprep.subr.bf16.mxu0 0
    %1548 = vmatpush1.bf16.msra.mxu0 0
    %1549 = vmatprep.subr.bf16.mxu0 0
    %1550 = vmatpush1.bf16.msra.mxu0 0
    %1551 = vmatprep.subr.bf16.mxu0 0
    %1552 = vmatpush1.bf16.msra.mxu0 0
    %1553 = vmatprep.subr.bf16.mxu0 0
    %1554 = vmatpush1.bf16.msra.mxu0 0
    %1555 = vmatprep.mubr.bf16.mxu0 0
    %1556 = vmatmul.mubr.bf16.gmra.mrb[0].mxu0 %v1289
    %v1557 = vpop.f32.mrb[0].mxu0
    %v1558 = vadd.f32 0.0, %v1557
    %v1559 = vpop.f32.mrb[0].mxu0
    %v1560 = vadd.f32 0.0, %v1559
    %v1561 = vpop.f32.mrb[0].mxu0
    %v1562 = vpop.f32.mrb[0].mxu0
    %1563 = vdwg.mxu0
    %v1564 = vadd.f32 %v1284, %v1517
    %v1565 = vadd.f32 %v1285, %v1519
    %v1566 = vadd.f32 %v1286, %v1558
    %v1567 = vadd.f32 %v1287, %v1560
    %v1568 = vxor.u32 %v1564, 2147483648
    %v1569 = vxor.u32 %v1565, 2147483648
    %v1570 = vxor.u32 %v1566, 2147483648
    %v1571 = vmul.f32 %v1568, 1.442695
    %v1572 = vpow.pop %v1571
    %v1573 = vmul.f32 %v1569, 1.442695
    %v1574 = vpow.pop %v1573
    %v1575 = vmul.f32 %v1570, 1.442695
    %v1576 = vpow.pop %v1575
    %v1577 = vadd.f32 %v1572, 1.0
    %v1578 = vadd.f32 %v1574, 1.0
    %v1579 = vadd.f32 %v1576, 1.0
    %v1580 = vrcp.pop %v1577
    %v1581 = vmul.f32 1.0, %v1580
    %v1582 = vrcp.pop %v1578
    %v1583 = vmul.f32 1.0, %v1582
    %v1584 = vrcp.pop %v1579
    %v1585 = vmul.f32 1.0, %v1584
    %v1586 = vtanh.pop %v1567
    %v1587 = vld [vmem:[#allocation4] sm:$0xff]
    %v1588 = vmul.f32 %v1583, %v1587
    %v1589 = vmul.f32 %v1581, %v1586
    %v1590 = vadd.f32 %v1588, %v1589
    %v1591 = vtanh.pop %v1590
    %v1592 = vmul.f32 %v1585, %v1591
    %1593 = vst [vmem:[#allocation4] sm:$0xff] %v1590
    %1594 = vst [vmem:[#allocation3] sm:$0xff] %v1592
    %1595 = vst [vmem:[%s1283] sm:$0xff] %v1592
    %s1596 = smul.u32 4, 4
    %s1597 = smul.addr %s1596, 8
    %s1598 = scalar_lea.vmem [#allocation2], %s1597
    %v1599 = vld [vmem:[%s1598] sm:$0xff]
    %v1600 = vld [vmem:[%s1598 + $0x8] sm:$0xff]
    %v1601 = vld [vmem:[%s1598 + $0x10] sm:$0xff]
    %v1602 = vld [vmem:[%s1598 + $0x18] sm:$0xff]
    %v1603 = vld [vmem:[#allocation3] sm:$0xff]
    %v1604 = vpack.c.bf16 %v1603, %v1603
    %v1605 = vld [vmem:[#allocation5] sm:$0xff]
    %v1606 = vld [vmem:[#allocation5 + $0x8] sm:$0xff]
    %v1607 = vld [vmem:[#allocation5 + $0x10] sm:$0xff]
    %v1608 = vld [vmem:[#allocation5 + $0x18] sm:$0xff]
    %v1609 = vld [vmem:[#allocation5 + $0x20] sm:$0xff]
    %v1610 = vld [vmem:[#allocation5 + $0x28] sm:$0xff]
    %v1611 = vld [vmem:[#allocation5 + $0x30] sm:$0xff]
    %v1612 = vld [vmem:[#allocation5 + $0x38] sm:$0xff]
    %v1613 = vld [vmem:[#allocation5 + $0x40] sm:$0xff]
    %v1614 = vld [vmem:[#allocation5 + $0x48] sm:$0xff]
    %v1615 = vld [vmem:[#allocation5 + $0x50] sm:$0xff]
    %v1616 = vld [vmem:[#allocation5 + $0x58] sm:$0xff]
    %v1617 = vld [vmem:[#allocation5 + $0x60] sm:$0xff]
    %v1618 = vld [vmem:[#allocation5 + $0x68] sm:$0xff]
    %v1619 = vld [vmem:[#allocation5 + $0x70] sm:$0xff]
    %v1620 = vld [vmem:[#allocation5 + $0x78] sm:$0xff]
    %v1621 = vld [vmem:[#allocation5 + $0x80] sm:$0xff]
    %v1622 = vld [vmem:[#allocation5 + $0x88] sm:$0xff]
    %v1623 = vld [vmem:[#allocation5 + $0x90] sm:$0xff]
    %v1624 = vld [vmem:[#allocation5 + $0x98] sm:$0xff]
    %v1625 = vld [vmem:[#allocation5 + $0xa0] sm:$0xff]
    %v1626 = vld [vmem:[#allocation5 + $0xa8] sm:$0xff]
    %v1627 = vld [vmem:[#allocation5 + $0xb0] sm:$0xff]
    %v1628 = vld [vmem:[#allocation5 + $0xb8] sm:$0xff]
    %v1629 = vld [vmem:[#allocation5 + $0xc0] sm:$0xff]
    %v1630 = vld [vmem:[#allocation5 + $0xc8] sm:$0xff]
    %v1631 = vld [vmem:[#allocation5 + $0xd0] sm:$0xff]
    %v1632 = vld [vmem:[#allocation5 + $0xd8] sm:$0xff]
    %v1633 = vld [vmem:[#allocation5 + $0xe0] sm:$0xff]
    %v1634 = vld [vmem:[#allocation5 + $0xe8] sm:$0xff]
    %v1635 = vld [vmem:[#allocation5 + $0xf0] sm:$0xff]
    %v1636 = vld [vmem:[#allocation5 + $0xf8] sm:$0xff]
    %v1669 = vunpack.c.l.b16 %v1605
    %v1670 = vunpack.c.h.b16 %v1605
    %v1671 = vunpack.c.l.b16 %v1606
    %v1672 = vunpack.c.h.b16 %v1606
    %v1673 = vunpack.c.l.b16 %v1607
    %v1674 = vunpack.c.h.b16 %v1607
    %v1675 = vunpack.c.l.b16 %v1608
    %v1676 = vunpack.c.h.b16 %v1608
    %v1677 = vunpack.c.l.b16 %v1609
    %v1678 = vunpack.c.h.b16 %v1609
    %v1679 = vunpack.c.l.b16 %v1610
    %v1680 = vunpack.c.h.b16 %v1610
    %v1681 = vunpack.c.l.b16 %v1611
    %v1682 = vunpack.c.h.b16 %v1611
    %v1683 = vunpack.c.l.b16 %v1612
    %v1684 = vunpack.c.h.b16 %v1612
    %v1685 = vunpack.c.l.b16 %v1613
    %v1686 = vunpack.c.h.b16 %v1613
    %v1687 = vunpack.c.l.b16 %v1614
    %v1688 = vunpack.c.h.b16 %v1614
    %v1689 = vunpack.c.l.b16 %v1615
    %v1690 = vunpack.c.h.b16 %v1615
    %v1691 = vunpack.c.l.b16 %v1616
    %v1692 = vunpack.c.h.b16 %v1616
    %v1693 = vunpack.c.l.b16 %v1617
    %v1694 = vunpack.c.h.b16 %v1617
    %v1695 = vunpack.c.l.b16 %v1618
    %v1696 = vunpack.c.h.b16 %v1618
    %v1697 = vunpack.c.l.b16 %v1619
    %v1698 = vunpack.c.h.b16 %v1619
    %v1699 = vunpack.c.l.b16 %v1620
    %v1700 = vunpack.c.h.b16 %v1620
    %v1701 = vunpack.c.l.b16 %v1621
    %v1702 = vunpack.c.h.b16 %v1621
    %v1703 = vunpack.c.l.b16 %v1622
    %v1704 = vunpack.c.h.b16 %v1622
    %v1705 = vunpack.c.l.b16 %v1623
    %v1706 = vunpack.c.h.b16 %v1623
    %v1707 = vunpack.c.l.b16 %v1624
    %v1708 = vunpack.c.h.b16 %v1624
    %v1709 = vunpack.c.l.b16 %v1625
    %v1710 = vunpack.c.h.b16 %v1625
    %v1711 = vunpack.c.l.b16 %v1626
    %v1712 = vunpack.c.h.b16 %v1626
    %v1713 = vunpack.c.l.b16 %v1627
    %v1714 = vunpack.c.h.b16 %v1627
    %v1715 = vunpack.c.l.b16 %v1628
    %v1716 = vunpack.c.h.b16 %v1628
    %v1717 = vunpack.c.l.b16 %v1629
    %v1718 = vunpack.c.h.b16 %v1629
    %v1719 = vunpack.c.l.b16 %v1630
    %v1720 = vunpack.c.h.b16 %v1630
    %v1721 = vunpack.c.l.b16 %v1631
    %v1722 = vunpack.c.h.b16 %v1631
    %v1723 = vunpack.c.l.b16 %v1632
    %v1724 = vunpack.c.h.b16 %v1632
    %v1725 = vunpack.c.l.b16 %v1633
    %v1726 = vunpack.c.h.b16 %v1633
    %v1727 = vunpack.c.l.b16 %v1634
    %v1728 = vunpack.c.h.b16 %v1634
    %v1729 = vunpack.c.l.b16 %v1635
    %v1730 = vunpack.c.h.b16 %v1635
    %v1731 = vunpack.c.l.b16 %v1636
    %v1732 = vunpack.c.h.b16 %v1636
    %v1733 = vpack.c.b16 %v1673, %v1669
    %v1734 = vpack.c.b16 %v1674, %v1670
    %v1735 = vpack.c.b16 %v1675, %v1671
    %v1736 = vpack.c.b16 %v1676, %v1672
    %v1737 = vpack.c.b16 %v1681, %v1677
    %v1738 = vpack.c.b16 %v1682, %v1678
    %v1739 = vpack.c.b16 %v1683, %v1679
    %v1740 = vpack.c.b16 %v1684, %v1680
    %v1741 = vpack.c.b16 %v1689, %v1685
    %v1742 = vpack.c.b16 %v1690, %v1686
    %v1743 = vpack.c.b16 %v1691, %v1687
    %v1744 = vpack.c.b16 %v1692, %v1688
    %v1745 = vpack.c.b16 %v1697, %v1693
    %v1746 = vpack.c.b16 %v1698, %v1694
    %v1747 = vpack.c.b16 %v1699, %v1695
    %v1748 = vpack.c.b16 %v1700, %v1696
    %v1749 = vpack.c.b16 %v1705, %v1701
    %v1750 = vpack.c.b16 %v1706, %v1702
    %v1751 = vpack.c.b16 %v1707, %v1703
    %v1752 = vpack.c.b16 %v1708, %v1704
    %v1753 = vpack.c.b16 %v1713, %v1709
    %v1754 = vpack.c.b16 %v1714, %v1710
    %v1755 = vpack.c.b16 %v1715, %v1711
    %v1756 = vpack.c.b16 %v1716, %v1712
    %v1757 = vpack.c.b16 %v1721, %v1717
    %v1758 = vpack.c.b16 %v1722, %v1718
    %v1759 = vpack.c.b16 %v1723, %v1719
    %v1760 = vpack.c.b16 %v1724, %v1720
    %v1761 = vpack.c.b16 %v1729, %v1725
    %v1762 = vpack.c.b16 %v1730, %v1726
    %v1763 = vpack.c.b16 %v1731, %v1727
    %v1764 = vpack.c.b16 %v1732, %v1728
    %1797 = vmatprep.subr.bf16.mxu0 %v1734
    %1798 = vmatpush1.bf16.msra.mxu0 %v1733
    %1799 = vmatprep.subr.bf16.mxu0 %v1738
    %1800 = vmatpush1.bf16.msra.mxu0 %v1737
    %1801 = vmatprep.subr.bf16.mxu0 %v1742
    %1802 = vmatpush1.bf16.msra.mxu0 %v1741
    %1803 = vmatprep.subr.bf16.mxu0 %v1746
    %1804 = vmatpush1.bf16.msra.mxu0 %v1745
    %1805 = vmatprep.subr.bf16.mxu0 %v1750
    %1806 = vmatpush1.bf16.msra.mxu0 %v1749
    %1807 = vmatprep.subr.bf16.mxu0 %v1754
    %1808 = vmatpush1.bf16.msra.mxu0 %v1753
    %1809 = vmatprep.subr.bf16.mxu0 %v1758
    %1810 = vmatpush1.bf16.msra.mxu0 %v1757
    %1811 = vmatprep.subr.bf16.mxu0 %v1762
    %1812 = vmatpush1.bf16.msra.mxu0 %v1761
    %1813 = vmatprep.subr.bf16.mxu0 0
    %1814 = vmatpush1.bf16.msra.mxu0 0
    %1815 = vmatprep.subr.bf16.mxu0 0
    %1816 = vmatpush1.bf16.msra.mxu0 0
    %1817 = vmatprep.subr.bf16.mxu0 0
    %1818 = vmatpush1.bf16.msra.mxu0 0
    %1819 = vmatprep.subr.bf16.mxu0 0
    %1820 = vmatpush1.bf16.msra.mxu0 0
    %1821 = vmatprep.subr.bf16.mxu0 0
    %1822 = vmatpush1.bf16.msra.mxu0 0
    %1823 = vmatprep.subr.bf16.mxu0 0
    %1824 = vmatpush1.bf16.msra.mxu0 0
    %1825 = vmatprep.subr.bf16.mxu0 0
    %1826 = vmatpush1.bf16.msra.mxu0 0
    %1827 = vmatprep.subr.bf16.mxu0 0
    %1828 = vmatpush1.bf16.msra.mxu0 0
    %1829 = vmatprep.mubr.bf16.mxu0 0
    %1830 = vmatmul.mubr.bf16.gmra.mrb[0].mxu0 %v1604
    %v1831 = vpop.f32.mrb[0].mxu0
    %v1832 = vadd.f32 0.0, %v1831
    %v1833 = vpop.f32.mrb[0].mxu0
    %v1834 = vadd.f32 0.0, %v1833
    %v1835 = vpop.f32.mrb[0].mxu0
    %v1836 = vpop.f32.mrb[0].mxu0
    %1837 = vdwg.mxu0
    %1838 = vmatprep.subr.bf16.mxu0 %v1736
    %1839 = vmatpush1.bf16.msra.mxu0 %v1735
    %1840 = vmatprep.subr.bf16.mxu0 %v1740
    %1841 = vmatpush1.bf16.msra.mxu0 %v1739
    %1842 = vmatprep.subr.bf16.mxu0 %v1744
    %1843 = vmatpush1.bf16.msra.mxu0 %v1743
    %1844 = vmatprep.subr.bf16.mxu0 %v1748
    %1845 = vmatpush1.bf16.msra.mxu0 %v1747
    %1846 = vmatprep.subr.bf16.mxu0 %v1752
    %1847 = vmatpush1.bf16.msra.mxu0 %v1751
    %1848 = vmatprep.subr.bf16.mxu0 %v1756
    %1849 = vmatpush1.bf16.msra.mxu0 %v1755
    %1850 = vmatprep.subr.bf16.mxu0 %v1760
    %1851 = vmatpush1.bf16.msra.mxu0 %v1759
    %1852 = vmatprep.subr.bf16.mxu0 %v1764
    %1853 = vmatpush1.bf16.msra.mxu0 %v1763
    %1854 = vmatprep.subr.bf16.mxu0 0
    %1855 = vmatpush1.bf16.msra.mxu0 0
    %1856 = vmatprep.subr.bf16.mxu0 0
    %1857 = vmatpush1.bf16.msra.mxu0 0
    %1858 = vmatprep.subr.bf16.mxu0 0
    %1859 = vmatpush1.bf16.msra.mxu0 0
    %1860 = vmatprep.subr.bf16.mxu0 0
    %1861 = vmatpush1.bf16.msra.mxu0 0
    %1862 = vmatprep.subr.bf16.mxu0 0
    %1863 = vmatpush1.bf16.msra.mxu0 0
    %1864 = vmatprep.subr.bf16.mxu0 0
    %1865 = vmatpush1.bf16.msra.mxu0 0
    %1866 = vmatprep.subr.bf16.mxu0 0
    %1867 = vmatpush1.bf16.msra.mxu0 0
    %1868 = vmatprep.subr.bf16.mxu0 0
    %1869 = vmatpush1.bf16.msra.mxu0 0
    %1870 = vmatprep.mubr.bf16.mxu0 0
    %1871 = vmatmul.mubr.bf16.gmra.mrb[0].mxu0 %v1604
    %v1872 = vpop.f32.mrb[0].mxu0
    %v1873 = vadd.f32 0.0, %v1872
    %v1874 = vpop.f32.mrb[0].mxu0
    %v1875 = vadd.f32 0.0, %v1874
    %v1876 = vpop.f32.mrb[0].mxu0
    %v1877 = vpop.f32.mrb[0].mxu0
    %1878 = vdwg.mxu0
    %v1879 = vadd.f32 %v1599, %v1832
    %v1880 = vadd.f32 %v1600, %v1834
    %v1881 = vadd.f32 %v1601, %v1873
    %v1882 = vadd.f32 %v1602, %v1875
    %v1883 = vxor.u32 %v1879, 2147483648
    %v1884 = vxor.u32 %v1880, 2147483648
    %v1885 = vxor.u32 %v1881, 2147483648
    %v1886 = vmul.f32 %v1883, 1.442695
    %v1887 = vpow.pop %v1886
    %v1888 = vmul.f32 %v1884, 1.442695
    %v1889 = vpow.pop %v1888
    %v1890 = vmul.f32 %v1885, 1.442695
    %v1891 = vpow.pop %v1890
    %v1892 = vadd.f32 %v1887, 1.0
    %v1893 = vadd.f32 %v1889, 1.0
    %v1894 = vadd.f32 %v1891, 1.0
    %v1895 = vrcp.pop %v1892
    %v1896 = vmul.f32 1.0, %v1895
    %v1897 = vrcp.pop %v1893
    %v1898 = vmul.f32 1.0, %v1897
    %v1899 = vrcp.pop %v1894
    %v1900 = vmul.f32 1.0, %v1899
    %v1901 = vtanh.pop %v1882
    %v1902 = vld [vmem:[#allocation4] sm:$0xff]
    %v1903 = vmul.f32 %v1898, %v1902
    %v1904 = vmul.f32 %v1896, %v1901
    %v1905 = vadd.f32 %v1903, %v1904
    %v1906 = vtanh.pop %v1905
    %v1907 = vmul.f32 %v1900, %v1906
    %1908 = vst [vmem:[#allocation4] sm:$0xff] %v1905
    %1909 = vst [vmem:[#allocation3] sm:$0xff] %v1907
    %1910 = vst [vmem:[%s1598] sm:$0xff] %v1907
    %s1911 = smul.u32 5, 4
    %s1912 = smul.addr %s1911, 8
    %s1913 = scalar_lea.vmem [#allocation2], %s1912
    %v1914 = vld [vmem:[%s1913] sm:$0xff]
    %v1915 = vld [vmem:[%s1913 + $0x8] sm:$0xff]
    %v1916 = vld [vmem:[%s1913 + $0x10] sm:$0xff]
    %v1917 = vld [vmem:[%s1913 + $0x18] sm:$0xff]
    %v1918 = vld [vmem:[#allocation3] sm:$0xff]
    %v1919 = vpack.c.bf16 %v1918, %v1918
    %v1920 = vld [vmem:[#allocation5] sm:$0xff]
    %v1921 = vld [vmem:[#allocation5 + $0x8] sm:$0xff]
    %v1922 = vld [vmem:[#allocation5 + $0x10] sm:$0xff]
    %v1923 = vld [vmem:[#allocation5 + $0x18] sm:$0xff]
    %v1924 = vld [vmem:[#allocation5 + $0x20] sm:$0xff]
    %v1925 = vld [vmem:[#allocation5 + $0x28] sm:$0xff]
    %v1926 = vld [vmem:[#allocation5 + $0x30] sm:$0xff]
    %v1927 = vld [vmem:[#allocation5 + $0x38] sm:$0xff]
    %v1928 = vld [vmem:[#allocation5 + $0x40] sm:$0xff]
    %v1929 = vld [vmem:[#allocation5 + $0x48] sm:$0xff]
    %v1930 = vld [vmem:[#allocation5 + $0x50] sm:$0xff]
    %v1931 = vld [vmem:[#allocation5 + $0x58] sm:$0xff]
    %v1932 = vld [vmem:[#allocation5 + $0x60] sm:$0xff]
    %v1933 = vld [vmem:[#allocation5 + $0x68] sm:$0xff]
    %v1934 = vld [vmem:[#allocation5 + $0x70] sm:$0xff]
    %v1935 = vld [vmem:[#allocation5 + $0x78] sm:$0xff]
    %v1936 = vld [vmem:[#allocation5 + $0x80] sm:$0xff]
    %v1937 = vld [vmem:[#allocation5 + $0x88] sm:$0xff]
    %v1938 = vld [vmem:[#allocation5 + $0x90] sm:$0xff]
    %v1939 = vld [vmem:[#allocation5 + $0x98] sm:$0xff]
    %v1940 = vld [vmem:[#allocation5 + $0xa0] sm:$0xff]
    %v1941 = vld [vmem:[#allocation5 + $0xa8] sm:$0xff]
    %v1942 = vld [vmem:[#allocation5 + $0xb0] sm:$0xff]
    %v1943 = vld [vmem:[#allocation5 + $0xb8] sm:$0xff]
    %v1944 = vld [vmem:[#allocation5 + $0xc0] sm:$0xff]
    %v1945 = vld [vmem:[#allocation5 + $0xc8] sm:$0xff]
    %v1946 = vld [vmem:[#allocation5 + $0xd0] sm:$0xff]
    %v1947 = vld [vmem:[#allocation5 + $0xd8] sm:$0xff]
    %v1948 = vld [vmem:[#allocation5 + $0xe0] sm:$0xff]
    %v1949 = vld [vmem:[#allocation5 + $0xe8] sm:$0xff]
    %v1950 = vld [vmem:[#allocation5 + $0xf0] sm:$0xff]
    %v1951 = vld [vmem:[#allocation5 + $0xf8] sm:$0xff]
    %v1984 = vunpack.c.l.b16 %v1920
    %v1985 = vunpack.c.h.b16 %v1920
    %v1986 = vunpack.c.l.b16 %v1921
    %v1987 = vunpack.c.h.b16 %v1921
    %v1988 = vunpack.c.l.b16 %v1922
    %v1989 = vunpack.c.h.b16 %v1922
    %v1990 = vunpack.c.l.b16 %v1923
    %v1991 = vunpack.c.h.b16 %v1923
    %v1992 = vunpack.c.l.b16 %v1924
    %v1993 = vunpack.c.h.b16 %v1924
    %v1994 = vunpack.c.l.b16 %v1925
    %v1995 = vunpack.c.h.b16 %v1925
    %v1996 = vunpack.c.l.b16 %v1926
    %v1997 = vunpack.c.h.b16 %v1926
    %v1998 = vunpack.c.l.b16 %v1927
    %v1999 = vunpack.c.h.b16 %v1927
    %v2000 = vunpack.c.l.b16 %v1928
    %v2001 = vunpack.c.h.b16 %v1928
    %v2002 = vunpack.c.l.b16 %v1929
    %v2003 = vunpack.c.h.b16 %v1929
    %v2004 = vunpack.c.l.b16 %v1930
    %v2005 = vunpack.c.h.b16 %v1930
    %v2006 = vunpack.c.l.b16 %v1931
    %v2007 = vunpack.c.h.b16 %v1931
    %v2008 = vunpack.c.l.b16 %v1932
    %v2009 = vunpack.c.h.b16 %v1932
    %v2010 = vunpack.c.l.b16 %v1933
    %v2011 = vunpack.c.h.b16 %v1933
    %v2012 = vunpack.c.l.b16 %v1934
    %v2013 = vunpack.c.h.b16 %v1934
    %v2014 = vunpack.c.l.b16 %v1935
    %v2015 = vunpack.c.h.b16 %v1935
    %v2016 = vunpack.c.l.b16 %v1936
    %v2017 = vunpack.c.h.b16 %v1936
    %v2018 = vunpack.c.l.b16 %v1937
    %v2019 = vunpack.c.h.b16 %v1937
    %v2020 = vunpack.c.l.b16 %v1938
    %v2021 = vunpack.c.h.b16 %v1938
    %v2022 = vunpack.c.l.b16 %v1939
    %v2023 = vunpack.c.h.b16 %v1939
    %v2024 = vunpack.c.l.b16 %v1940
    %v2025 = vunpack.c.h.b16 %v1940
    %v2026 = vunpack.c.l.b16 %v1941
    %v2027 = vunpack.c.h.b16 %v1941
    %v2028 = vunpack.c.l.b16 %v1942
    %v2029 = vunpack.c.h.b16 %v1942
    %v2030 = vunpack.c.l.b16 %v1943
    %v2031 = vunpack.c.h.b16 %v1943
    %v2032 = vunpack.c.l.b16 %v1944
    %v2033 = vunpack.c.h.b16 %v1944
    %v2034 = vunpack.c.l.b16 %v1945
    %v2035 = vunpack.c.h.b16 %v1945
    %v2036 = vunpack.c.l.b16 %v1946
    %v2037 = vunpack.c.h.b16 %v1946
    %v2038 = vunpack.c.l.b16 %v1947
    %v2039 = vunpack.c.h.b16 %v1947
    %v2040 = vunpack.c.l.b16 %v1948
    %v2041 = vunpack.c.h.b16 %v1948
    %v2042 = vunpack.c.l.b16 %v1949
    %v2043 = vunpack.c.h.b16 %v1949
    %v2044 = vunpack.c.l.b16 %v1950
    %v2045 = vunpack.c.h.b16 %v1950
    %v2046 = vunpack.c.l.b16 %v1951
    %v2047 = vunpack.c.h.b16 %v1951
    %v2048 = vpack.c.b16 %v1988, %v1984
    %v2049 = vpack.c.b16 %v1989, %v1985
    %v2050 = vpack.c.b16 %v1990, %v1986
    %v2051 = vpack.c.b16 %v1991, %v1987
    %v2052 = vpack.c.b16 %v1996, %v1992
    %v2053 = vpack.c.b16 %v1997, %v1993
    %v2054 = vpack.c.b16 %v1998, %v1994
    %v2055 = vpack.c.b16 %v1999, %v1995
    %v2056 = vpack.c.b16 %v2004, %v2000
    %v2057 = vpack.c.b16 %v2005, %v2001
    %v2058 = vpack.c.b16 %v2006, %v2002
    %v2059 = vpack.c.b16 %v2007, %v2003
    %v2060 = vpack.c.b16 %v2012, %v2008
    %v2061 = vpack.c.b16 %v2013, %v2009
    %v2062 = vpack.c.b16 %v2014, %v2010
    %v2063 = vpack.c.b16 %v2015, %v2011
    %v2064 = vpack.c.b16 %v2020, %v2016
    %v2065 = vpack.c.b16 %v2021, %v2017
    %v2066 = vpack.c.b16 %v2022, %v2018
    %v2067 = vpack.c.b16 %v2023, %v2019
    %v2068 = vpack.c.b16 %v2028, %v2024
    %v2069 = vpack.c.b16 %v2029, %v2025
    %v2070 = vpack.c.b16 %v2030, %v2026
    %v2071 = vpack.c.b16 %v2031, %v2027
    %v2072 = vpack.c.b16 %v2036, %v2032
    %v2073 = vpack.c.b16 %v2037, %v2033
    %v2074 = vpack.c.b16 %v2038, %v2034
    %v2075 = vpack.c.b16 %v2039, %v2035
    %v2076 = vpack.c.b16 %v2044, %v2040
    %v2077 = vpack.c.b16 %v2045, %v2041
    %v2078 = vpack.c.b16 %v2046, %v2042
    %v2079 = vpack.c.b16 %v2047, %v2043
    %2112 = vmatprep.subr.bf16.mxu0 %v2049
    %2113 = vmatpush1.bf16.msra.mxu0 %v2048
    %2114 = vmatprep.subr.bf16.mxu0 %v2053
    %2115 = vmatpush1.bf16.msra.mxu0 %v2052
    %2116 = vmatprep.subr.bf16.mxu0 %v2057
    %2117 = vmatpush1.bf16.msra.mxu0 %v2056
    %2118 = vmatprep.subr.bf16.mxu0 %v2061
    %2119 = vmatpush1.bf16.msra.mxu0 %v2060
    %2120 = vmatprep.subr.bf16.mxu0 %v2065
    %2121 = vmatpush1.bf16.msra.mxu0 %v2064
    %2122 = vmatprep.subr.bf16.mxu0 %v2069
    %2123 = vmatpush1.bf16.msra.mxu0 %v2068
    %2124 = vmatprep.subr.bf16.mxu0 %v2073
    %2125 = vmatpush1.bf16.msra.mxu0 %v2072
    %2126 = vmatprep.subr.bf16.mxu0 %v2077
    %2127 = vmatpush1.bf16.msra.mxu0 %v2076
    %2128 = vmatprep.subr.bf16.mxu0 0
    %2129 = vmatpush1.bf16.msra.mxu0 0
    %2130 = vmatprep.subr.bf16.mxu0 0
    %2131 = vmatpush1.bf16.msra.mxu0 0
    %2132 = vmatprep.subr.bf16.mxu0 0
    %2133 = vmatpush1.bf16.msra.mxu0 0
    %2134 = vmatprep.subr.bf16.mxu0 0
    %2135 = vmatpush1.bf16.msra.mxu0 0
    %2136 = vmatprep.subr.bf16.mxu0 0
    %2137 = vmatpush1.bf16.msra.mxu0 0
    %2138 = vmatprep.subr.bf16.mxu0 0
    %2139 = vmatpush1.bf16.msra.mxu0 0
    %2140 = vmatprep.subr.bf16.mxu0 0
    %2141 = vmatpush1.bf16.msra.mxu0 0
    %2142 = vmatprep.subr.bf16.mxu0 0
    %2143 = vmatpush1.bf16.msra.mxu0 0
    %2144 = vmatprep.mubr.bf16.mxu0 0
    %2145 = vmatmul.mubr.bf16.gmra.mrb[0].mxu0 %v1919
    %v2146 = vpop.f32.mrb[0].mxu0
    %v2147 = vadd.f32 0.0, %v2146
    %v2148 = vpop.f32.mrb[0].mxu0
    %v2149 = vadd.f32 0.0, %v2148
    %v2150 = vpop.f32.mrb[0].mxu0
    %v2151 = vpop.f32.mrb[0].mxu0
    %2152 = vdwg.mxu0
    %2153 = vmatprep.subr.bf16.mxu0 %v2051
    %2154 = vmatpush1.bf16.msra.mxu0 %v2050
    %2155 = vmatprep.subr.bf16.mxu0 %v2055
    %2156 = vmatpush1.bf16.msra.mxu0 %v2054
    %2157 = vmatprep.subr.bf16.mxu0 %v2059
    %2158 = vmatpush1.bf16.msra.mxu0 %v2058
    %2159 = vmatprep.subr.bf16.mxu0 %v2063
    %2160 = vmatpush1.bf16.msra.mxu0 %v2062
    %2161 = vmatprep.subr.bf16.mxu0 %v2067
    %2162 = vmatpush1.bf16.msra.mxu0 %v2066
    %2163 = vmatprep.subr.bf16.mxu0 %v2071
    %2164 = vmatpush1.bf16.msra.mxu0 %v2070
    %2165 = vmatprep.subr.bf16.mxu0 %v2075
    %2166 = vmatpush1.bf16.msra.mxu0 %v2074
    %2167 = vmatprep.subr.bf16.mxu0 %v2079
    %2168 = vmatpush1.bf16.msra.mxu0 %v2078
    %2169 = vmatprep.subr.bf16.mxu0 0
    %2170 = vmatpush1.bf16.msra.mxu0 0
    %2171 = vmatprep.subr.bf16.mxu0 0
    %2172 = vmatpush1.bf16.msra.mxu0 0
    %2173 = vmatprep.subr.bf16.mxu0 0
    %2174 = vmatpush1.bf16.msra.mxu0 0
    %2175 = vmatprep.subr.bf16.mxu0 0
    %2176 = vmatpush1.bf16.msra.mxu0 0
    %2177 = vmatprep.subr.bf16.mxu0 0
    %2178 = vmatpush1.bf16.msra.mxu0 0
    %2179 = vmatprep.subr.bf16.mxu0 0
    %2180 = vmatpush1.bf16.msra.mxu0 0
    %2181 = vmatprep.subr.bf16.mxu0 0
    %2182 = vmatpush1.bf16.msra.mxu0 0
    %2183 = vmatprep.subr.bf16.mxu0 0
    %2184 = vmatpush1.bf16.msra.mxu0 0
    %2185 = vmatprep.mubr.bf16.mxu0 0
    %2186 = vmatmul.mubr.bf16.gmra.mrb[0].mxu0 %v1919
    %v2187 = vpop.f32.mrb[0].mxu0
    %v2188 = vadd.f32 0.0, %v2187
    %v2189 = vpop.f32.mrb[0].mxu0
    %v2190 = vadd.f32 0.0, %v2189
    %v2191 = vpop.f32.mrb[0].mxu0
    %v2192 = vpop.f32.mrb[0].mxu0
    %2193 = vdwg.mxu0
    %v2194 = vadd.f32 %v1914, %v2147
    %v2195 = vadd.f32 %v1915, %v2149
    %v2196 = vadd.f32 %v1916, %v2188
    %v2197 = vadd.f32 %v1917, %v2190
    %v2198 = vxor.u32 %v2194, 2147483648
    %v2199 = vxor.u32 %v2195, 2147483648
    %v2200 = vxor.u32 %v2196, 2147483648
    %v2201 = vmul.f32 %v2198, 1.442695
    %v2202 = vpow.pop %v2201
    %v2203 = vmul.f32 %v2199, 1.442695
    %v2204 = vpow.pop %v2203
    %v2205 = vmul.f32 %v2200, 1.442695
    %v2206 = vpow.pop %v2205
    %v2207 = vadd.f32 %v2202, 1.0
    %v2208 = vadd.f32 %v2204, 1.0
    %v2209 = vadd.f32 %v2206, 1.0
    %v2210 = vrcp.pop %v2207
    %v2211 = vmul.f32 1.0, %v2210
    %v2212 = vrcp.pop %v2208
    %v2213 = vmul.f32 1.0, %v2212
    %v2214 = vrcp.pop %v2209
    %v2215 = vmul.f32 1.0, %v2214
    %v2216 = vtanh.pop %v2197
    %v2217 = vld [vmem:[#allocation4] sm:$0xff]
    %v2218 = vmul.f32 %v2213, %v2217
    %v2219 = vmul.f32 %v2211, %v2216
    %v2220 = vadd.f32 %v2218, %v2219
    %v2221 = vtanh.pop %v2220
    %v2222 = vmul.f32 %v2215, %v2221
    %2223 = vst [vmem:[#allocation4] sm:$0xff] %v2220
    %2224 = vst [vmem:[#allocation3] sm:$0xff] %v2222
    %2225 = vst [vmem:[%s1913] sm:$0xff] %v2222
    %s2226 = smul.u32 6, 4
    %s2227 = smul.addr %s2226, 8
    %s2228 = scalar_lea.vmem [#allocation2], %s2227
    %v2229 = vld [vmem:[%s2228] sm:$0xff]
    %v2230 = vld [vmem:[%s2228 + $0x8] sm:$0xff]
    %v2231 = vld [vmem:[%s2228 + $0x10] sm:$0xff]
    %v2232 = vld [vmem:[%s2228 + $0x18] sm:$0xff]
    %v2233 = vld [vmem:[#allocation3] sm:$0xff]
    %v2234 = vpack.c.bf16 %v2233, %v2233
    %v2235 = vld [vmem:[#allocation5] sm:$0xff]
    %v2236 = vld [vmem:[#allocation5 + $0x8] sm:$0xff]
    %v2237 = vld [vmem:[#allocation5 + $0x10] sm:$0xff]
    %v2238 = vld [vmem:[#allocation5 + $0x18] sm:$0xff]
    %v2239 = vld [vmem:[#allocation5 + $0x20] sm:$0xff]
    %v2240 = vld [vmem:[#allocation5 + $0x28] sm:$0xff]
    %v2241 = vld [vmem:[#allocation5 + $0x30] sm:$0xff]
    %v2242 = vld [vmem:[#allocation5 + $0x38] sm:$0xff]
    %v2243 = vld [vmem:[#allocation5 + $0x40] sm:$0xff]
    %v2244 = vld [vmem:[#allocation5 + $0x48] sm:$0xff]
    %v2245 = vld [vmem:[#allocation5 + $0x50] sm:$0xff]
    %v2246 = vld [vmem:[#allocation5 + $0x58] sm:$0xff]
    %v2247 = vld [vmem:[#allocation5 + $0x60] sm:$0xff]
    %v2248 = vld [vmem:[#allocation5 + $0x68] sm:$0xff]
    %v2249 = vld [vmem:[#allocation5 + $0x70] sm:$0xff]
    %v2250 = vld [vmem:[#allocation5 + $0x78] sm:$0xff]
    %v2251 = vld [vmem:[#allocation5 + $0x80] sm:$0xff]
    %v2252 = vld [vmem:[#allocation5 + $0x88] sm:$0xff]
    %v2253 = vld [vmem:[#allocation5 + $0x90] sm:$0xff]
    %v2254 = vld [vmem:[#allocation5 + $0x98] sm:$0xff]
    %v2255 = vld [vmem:[#allocation5 + $0xa0] sm:$0xff]
    %v2256 = vld [vmem:[#allocation5 + $0xa8] sm:$0xff]
    %v2257 = vld [vmem:[#allocation5 + $0xb0] sm:$0xff]
    %v2258 = vld [vmem:[#allocation5 + $0xb8] sm:$0xff]
    %v2259 = vld [vmem:[#allocation5 + $0xc0] sm:$0xff]
    %v2260 = vld [vmem:[#allocation5 + $0xc8] sm:$0xff]
    %v2261 = vld [vmem:[#allocation5 + $0xd0] sm:$0xff]
    %v2262 = vld [vmem:[#allocation5 + $0xd8] sm:$0xff]
    %v2263 = vld [vmem:[#allocation5 + $0xe0] sm:$0xff]
    %v2264 = vld [vmem:[#allocation5 + $0xe8] sm:$0xff]
    %v2265 = vld [vmem:[#allocation5 + $0xf0] sm:$0xff]
    %v2266 = vld [vmem:[#allocation5 + $0xf8] sm:$0xff]
    %v2299 = vunpack.c.l.b16 %v2235
    %v2300 = vunpack.c.h.b16 %v2235
    %v2301 = vunpack.c.l.b16 %v2236
    %v2302 = vunpack.c.h.b16 %v2236
    %v2303 = vunpack.c.l.b16 %v2237
    %v2304 = vunpack.c.h.b16 %v2237
    %v2305 = vunpack.c.l.b16 %v2238
    %v2306 = vunpack.c.h.b16 %v2238
    %v2307 = vunpack.c.l.b16 %v2239
    %v2308 = vunpack.c.h.b16 %v2239
    %v2309 = vunpack.c.l.b16 %v2240
    %v2310 = vunpack.c.h.b16 %v2240
    %v2311 = vunpack.c.l.b16 %v2241
    %v2312 = vunpack.c.h.b16 %v2241
    %v2313 = vunpack.c.l.b16 %v2242
    %v2314 = vunpack.c.h.b16 %v2242
    %v2315 = vunpack.c.l.b16 %v2243
    %v2316 = vunpack.c.h.b16 %v2243
    %v2317 = vunpack.c.l.b16 %v2244
    %v2318 = vunpack.c.h.b16 %v2244
    %v2319 = vunpack.c.l.b16 %v2245
    %v2320 = vunpack.c.h.b16 %v2245
    %v2321 = vunpack.c.l.b16 %v2246
    %v2322 = vunpack.c.h.b16 %v2246
    %v2323 = vunpack.c.l.b16 %v2247
    %v2324 = vunpack.c.h.b16 %v2247
    %v2325 = vunpack.c.l.b16 %v2248
    %v2326 = vunpack.c.h.b16 %v2248
    %v2327 = vunpack.c.l.b16 %v2249
    %v2328 = vunpack.c.h.b16 %v2249
    %v2329 = vunpack.c.l.b16 %v2250
    %v2330 = vunpack.c.h.b16 %v2250
    %v2331 = vunpack.c.l.b16 %v2251
    %v2332 = vunpack.c.h.b16 %v2251
    %v2333 = vunpack.c.l.b16 %v2252
    %v2334 = vunpack.c.h.b16 %v2252
    %v2335 = vunpack.c.l.b16 %v2253
    %v2336 = vunpack.c.h.b16 %v2253
    %v2337 = vunpack.c.l.b16 %v2254
    %v2338 = vunpack.c.h.b16 %v2254
    %v2339 = vunpack.c.l.b16 %v2255
    %v2340 = vunpack.c.h.b16 %v2255
    %v2341 = vunpack.c.l.b16 %v2256
    %v2342 = vunpack.c.h.b16 %v2256
    %v2343 = vunpack.c.l.b16 %v2257
    %v2344 = vunpack.c.h.b16 %v2257
    %v2345 = vunpack.c.l.b16 %v2258
    %v2346 = vunpack.c.h.b16 %v2258
    %v2347 = vunpack.c.l.b16 %v2259
    %v2348 = vunpack.c.h.b16 %v2259
    %v2349 = vunpack.c.l.b16 %v2260
    %v2350 = vunpack.c.h.b16 %v2260
    %v2351 = vunpack.c.l.b16 %v2261
    %v2352 = vunpack.c.h.b16 %v2261
    %v2353 = vunpack.c.l.b16 %v2262
    %v2354 = vunpack.c.h.b16 %v2262
    %v2355 = vunpack.c.l.b16 %v2263
    %v2356 = vunpack.c.h.b16 %v2263
    %v2357 = vunpack.c.l.b16 %v2264
    %v2358 = vunpack.c.h.b16 %v2264
    %v2359 = vunpack.c.l.b16 %v2265
    %v2360 = vunpack.c.h.b16 %v2265
    %v2361 = vunpack.c.l.b16 %v2266
    %v2362 = vunpack.c.h.b16 %v2266
    %v2363 = vpack.c.b16 %v2303, %v2299
    %v2364 = vpack.c.b16 %v2304, %v2300
    %v2365 = vpack.c.b16 %v2305, %v2301
    %v2366 = vpack.c.b16 %v2306, %v2302
    %v2367 = vpack.c.b16 %v2311, %v2307
    %v2368 = vpack.c.b16 %v2312, %v2308
    %v2369 = vpack.c.b16 %v2313, %v2309
    %v2370 = vpack.c.b16 %v2314, %v2310
    %v2371 = vpack.c.b16 %v2319, %v2315
    %v2372 = vpack.c.b16 %v2320, %v2316
    %v2373 = vpack.c.b16 %v2321, %v2317
    %v2374 = vpack.c.b16 %v2322, %v2318
    %v2375 = vpack.c.b16 %v2327, %v2323
    %v2376 = vpack.c.b16 %v2328, %v2324
    %v2377 = vpack.c.b16 %v2329, %v2325
    %v2378 = vpack.c.b16 %v2330, %v2326
    %v2379 = vpack.c.b16 %v2335, %v2331
    %v2380 = vpack.c.b16 %v2336, %v2332
    %v2381 = vpack.c.b16 %v2337, %v2333
    %v2382 = vpack.c.b16 %v2338, %v2334
    %v2383 = vpack.c.b16 %v2343, %v2339
    %v2384 = vpack.c.b16 %v2344, %v2340
    %v2385 = vpack.c.b16 %v2345, %v2341
    %v2386 = vpack.c.b16 %v2346, %v2342
    %v2387 = vpack.c.b16 %v2351, %v2347
    %v2388 = vpack.c.b16 %v2352, %v2348
    %v2389 = vpack.c.b16 %v2353, %v2349
    %v2390 = vpack.c.b16 %v2354, %v2350
    %v2391 = vpack.c.b16 %v2359, %v2355
    %v2392 = vpack.c.b16 %v2360, %v2356
    %v2393 = vpack.c.b16 %v2361, %v2357
    %v2394 = vpack.c.b16 %v2362, %v2358
    %2427 = vmatprep.subr.bf16.mxu0 %v2364
    %2428 = vmatpush1.bf16.msra.mxu0 %v2363
    %2429 = vmatprep.subr.bf16.mxu0 %v2368
    %2430 = vmatpush1.bf16.msra.mxu0 %v2367
    %2431 = vmatprep.subr.bf16.mxu0 %v2372
    %2432 = vmatpush1.bf16.msra.mxu0 %v2371
    %2433 = vmatprep.subr.bf16.mxu0 %v2376
    %2434 = vmatpush1.bf16.msra.mxu0 %v2375
    %2435 = vmatprep.subr.bf16.mxu0 %v2380
    %2436 = vmatpush1.bf16.msra.mxu0 %v2379
    %2437 = vmatprep.subr.bf16.mxu0 %v2384
    %2438 = vmatpush1.bf16.msra.mxu0 %v2383
    %2439 = vmatprep.subr.bf16.mxu0 %v2388
    %2440 = vmatpush1.bf16.msra.mxu0 %v2387
    %2441 = vmatprep.subr.bf16.mxu0 %v2392
    %2442 = vmatpush1.bf16.msra.mxu0 %v2391
    %2443 = vmatprep.subr.bf16.mxu0 0
    %2444 = vmatpush1.bf16.msra.mxu0 0
    %2445 = vmatprep.subr.bf16.mxu0 0
    %2446 = vmatpush1.bf16.msra.mxu0 0
    %2447 = vmatprep.subr.bf16.mxu0 0
    %2448 = vmatpush1.bf16.msra.mxu0 0
    %2449 = vmatprep.subr.bf16.mxu0 0
    %2450 = vmatpush1.bf16.msra.mxu0 0
    %2451 = vmatprep.subr.bf16.mxu0 0
    %2452 = vmatpush1.bf16.msra.mxu0 0
    %2453 = vmatprep.subr.bf16.mxu0 0
    %2454 = vmatpush1.bf16.msra.mxu0 0
    %2455 = vmatprep.subr.bf16.mxu0 0
    %2456 = vmatpush1.bf16.msra.mxu0 0
    %2457 = vmatprep.subr.bf16.mxu0 0
    %2458 = vmatpush1.bf16.msra.mxu0 0
    %2459 = vmatprep.mubr.bf16.mxu0 0
    %2460 = vmatmul.mubr.bf16.gmra.mrb[0].mxu0 %v2234
    %v2461 = vpop.f32.mrb[0].mxu0
    %v2462 = vadd.f32 0.0, %v2461
    %v2463 = vpop.f32.mrb[0].mxu0
    %v2464 = vadd.f32 0.0, %v2463
    %v2465 = vpop.f32.mrb[0].mxu0
    %v2466 = vpop.f32.mrb[0].mxu0
    %2467 = vdwg.mxu0
    %2468 = vmatprep.subr.bf16.mxu0 %v2366
    %2469 = vmatpush1.bf16.msra.mxu0 %v2365
    %2470 = vmatprep.subr.bf16.mxu0 %v2370
    %2471 = vmatpush1.bf16.msra.mxu0 %v2369
    %2472 = vmatprep.subr.bf16.mxu0 %v2374
    %2473 = vmatpush1.bf16.msra.mxu0 %v2373
    %2474 = vmatprep.subr.bf16.mxu0 %v2378
    %2475 = vmatpush1.bf16.msra.mxu0 %v2377
    %2476 = vmatprep.subr.bf16.mxu0 %v2382
    %2477 = vmatpush1.bf16.msra.mxu0 %v2381
    %2478 = vmatprep.subr.bf16.mxu0 %v2386
    %2479 = vmatpush1.bf16.msra.mxu0 %v2385
    %2480 = vmatprep.subr.bf16.mxu0 %v2390
    %2481 = vmatpush1.bf16.msra.mxu0 %v2389
    %2482 = vmatprep.subr.bf16.mxu0 %v2394
    %2483 = vmatpush1.bf16.msra.mxu0 %v2393
    %2484 = vmatprep.subr.bf16.mxu0 0
    %2485 = vmatpush1.bf16.msra.mxu0 0
    %2486 = vmatprep.subr.bf16.mxu0 0
    %2487 = vmatpush1.bf16.msra.mxu0 0
    %2488 = vmatprep.subr.bf16.mxu0 0
    %2489 = vmatpush1.bf16.msra.mxu0 0
    %2490 = vmatprep.subr.bf16.mxu0 0
    %2491 = vmatpush1.bf16.msra.mxu0 0
    %2492 = vmatprep.subr.bf16.mxu0 0
    %2493 = vmatpush1.bf16.msra.mxu0 0
    %2494 = vmatprep.subr.bf16.mxu0 0
    %2495 = vmatpush1.bf16.msra.mxu0 0
    %2496 = vmatprep.subr.bf16.mxu0 0
    %2497 = vmatpush1.bf16.msra.mxu0 0
    %2498 = vmatprep.subr.bf16.mxu0 0
    %2499 = vmatpush1.bf16.msra.mxu0 0
    %2500 = vmatprep.mubr.bf16.mxu0 0
    %2501 = vmatmul.mubr.bf16.gmra.mrb[0].mxu0 %v2234
    %v2502 = vpop.f32.mrb[0].mxu0
    %v2503 = vadd.f32 0.0, %v2502
    %v2504 = vpop.f32.mrb[0].mxu0
    %v2505 = vadd.f32 0.0, %v2504
    %v2506 = vpop.f32.mrb[0].mxu0
    %v2507 = vpop.f32.mrb[0].mxu0
    %2508 = vdwg.mxu0
    %v2509 = vadd.f32 %v2229, %v2462
    %v2510 = vadd.f32 %v2230, %v2464
    %v2511 = vadd.f32 %v2231, %v2503
    %v2512 = vadd.f32 %v2232, %v2505
    %v2513 = vxor.u32 %v2509, 2147483648
    %v2514 = vxor.u32 %v2510, 2147483648
    %v2515 = vxor.u32 %v2511, 2147483648
    %v2516 = vmul.f32 %v2513, 1.442695
    %v2517 = vpow.pop %v2516
    %v2518 = vmul.f32 %v2514, 1.442695
    %v2519 = vpow.pop %v2518
    %v2520 = vmul.f32 %v2515, 1.442695
    %v2521 = vpow.pop %v2520
    %v2522 = vadd.f32 %v2517, 1.0
    %v2523 = vadd.f32 %v2519, 1.0
    %v2524 = vadd.f32 %v2521, 1.0
    %v2525 = vrcp.pop %v2522
    %v2526 = vmul.f32 1.0, %v2525
    %v2527 = vrcp.pop %v2523
    %v2528 = vmul.f32 1.0, %v2527
    %v2529 = vrcp.pop %v2524
    %v2530 = vmul.f32 1.0, %v2529
    %v2531 = vtanh.pop %v2512
    %v2532 = vld [vmem:[#allocation4] sm:$0xff]
    %v2533 = vmul.f32 %v2528, %v2532
    %v2534 = vmul.f32 %v2526, %v2531
    %v2535 = vadd.f32 %v2533, %v2534
    %v2536 = vtanh.pop %v2535
    %v2537 = vmul.f32 %v2530, %v2536
    %2538 = vst [vmem:[#allocation4] sm:$0xff] %v2535
    %2539 = vst [vmem:[#allocation3] sm:$0xff] %v2537
    %2540 = vst [vmem:[%s2228] sm:$0xff] %v2537
    %s2541 = smul.u32 7, 4
    %s2542 = smul.addr %s2541, 8
    %s2543 = scalar_lea.vmem [#allocation2], %s2542
    %v2544 = vld [vmem:[%s2543] sm:$0xff]
    %v2545 = vld [vmem:[%s2543 + $0x8] sm:$0xff]
    %v2546 = vld [vmem:[%s2543 + $0x10] sm:$0xff]
    %v2547 = vld [vmem:[%s2543 + $0x18] sm:$0xff]
    %v2548 = vld [vmem:[#allocation3] sm:$0xff]
    %v2549 = vpack.c.bf16 %v2548, %v2548
    %v2550 = vld [vmem:[#allocation5] sm:$0xff]
    %v2551 = vld [vmem:[#allocation5 + $0x8] sm:$0xff]
    %v2552 = vld [vmem:[#allocation5 + $0x10] sm:$0xff]
    %v2553 = vld [vmem:[#allocation5 + $0x18] sm:$0xff]
    %v2554 = vld [vmem:[#allocation5 + $0x20] sm:$0xff]
    %v2555 = vld [vmem:[#allocation5 + $0x28] sm:$0xff]
    %v2556 = vld [vmem:[#allocation5 + $0x30] sm:$0xff]
    %v2557 = vld [vmem:[#allocation5 + $0x38] sm:$0xff]
    %v2558 = vld [vmem:[#allocation5 + $0x40] sm:$0xff]
    %v2559 = vld [vmem:[#allocation5 + $0x48] sm:$0xff]
    %v2560 = vld [vmem:[#allocation5 + $0x50] sm:$0xff]
    %v2561 = vld [vmem:[#allocation5 + $0x58] sm:$0xff]
    %v2562 = vld [vmem:[#allocation5 + $0x60] sm:$0xff]
    %v2563 = vld [vmem:[#allocation5 + $0x68] sm:$0xff]
    %v2564 = vld [vmem:[#allocation5 + $0x70] sm:$0xff]
    %v2565 = vld [vmem:[#allocation5 + $0x78] sm:$0xff]
    %v2566 = vld [vmem:[#allocation5 + $0x80] sm:$0xff]
    %v2567 = vld [vmem:[#allocation5 + $0x88] sm:$0xff]
    %v2568 = vld [vmem:[#allocation5 + $0x90] sm:$0xff]
    %v2569 = vld [vmem:[#allocation5 + $0x98] sm:$0xff]
    %v2570 = vld [vmem:[#allocation5 + $0xa0] sm:$0xff]
    %v2571 = vld [vmem:[#allocation5 + $0xa8] sm:$0xff]
    %v2572 = vld [vmem:[#allocation5 + $0xb0] sm:$0xff]
    %v2573 = vld [vmem:[#allocation5 + $0xb8] sm:$0xff]
    %v2574 = vld [vmem:[#allocation5 + $0xc0] sm:$0xff]
    %v2575 = vld [vmem:[#allocation5 + $0xc8] sm:$0xff]
    %v2576 = vld [vmem:[#allocation5 + $0xd0] sm:$0xff]
    %v2577 = vld [vmem:[#allocation5 + $0xd8] sm:$0xff]
    %v2578 = vld [vmem:[#allocation5 + $0xe0] sm:$0xff]
    %v2579 = vld [vmem:[#allocation5 + $0xe8] sm:$0xff]
    %v2580 = vld [vmem:[#allocation5 + $0xf0] sm:$0xff]
    %v2581 = vld [vmem:[#allocation5 + $0xf8] sm:$0xff]
    %v2614 = vunpack.c.l.b16 %v2550
    %v2615 = vunpack.c.h.b16 %v2550
    %v2616 = vunpack.c.l.b16 %v2551
    %v2617 = vunpack.c.h.b16 %v2551
    %v2618 = vunpack.c.l.b16 %v2552
    %v2619 = vunpack.c.h.b16 %v2552
    %v2620 = vunpack.c.l.b16 %v2553
    %v2621 = vunpack.c.h.b16 %v2553
    %v2622 = vunpack.c.l.b16 %v2554
    %v2623 = vunpack.c.h.b16 %v2554
    %v2624 = vunpack.c.l.b16 %v2555
    %v2625 = vunpack.c.h.b16 %v2555
    %v2626 = vunpack.c.l.b16 %v2556
    %v2627 = vunpack.c.h.b16 %v2556
    %v2628 = vunpack.c.l.b16 %v2557
    %v2629 = vunpack.c.h.b16 %v2557
    %v2630 = vunpack.c.l.b16 %v2558
    %v2631 = vunpack.c.h.b16 %v2558
    %v2632 = vunpack.c.l.b16 %v2559
    %v2633 = vunpack.c.h.b16 %v2559
    %v2634 = vunpack.c.l.b16 %v2560
    %v2635 = vunpack.c.h.b16 %v2560
    %v2636 = vunpack.c.l.b16 %v2561
    %v2637 = vunpack.c.h.b16 %v2561
    %v2638 = vunpack.c.l.b16 %v2562
    %v2639 = vunpack.c.h.b16 %v2562
    %v2640 = vunpack.c.l.b16 %v2563
    %v2641 = vunpack.c.h.b16 %v2563
    %v2642 = vunpack.c.l.b16 %v2564
    %v2643 = vunpack.c.h.b16 %v2564
    %v2644 = vunpack.c.l.b16 %v2565
    %v2645 = vunpack.c.h.b16 %v2565
    %v2646 = vunpack.c.l.b16 %v2566
    %v2647 = vunpack.c.h.b16 %v2566
    %v2648 = vunpack.c.l.b16 %v2567
    %v2649 = vunpack.c.h.b16 %v2567
    %v2650 = vunpack.c.l.b16 %v2568
    %v2651 = vunpack.c.h.b16 %v2568
    %v2652 = vunpack.c.l.b16 %v2569
    %v2653 = vunpack.c.h.b16 %v2569
    %v2654 = vunpack.c.l.b16 %v2570
    %v2655 = vunpack.c.h.b16 %v2570
    %v2656 = vunpack.c.l.b16 %v2571
    %v2657 = vunpack.c.h.b16 %v2571
    %v2658 = vunpack.c.l.b16 %v2572
    %v2659 = vunpack.c.h.b16 %v2572
    %v2660 = vunpack.c.l.b16 %v2573
    %v2661 = vunpack.c.h.b16 %v2573
    %v2662 = vunpack.c.l.b16 %v2574
    %v2663 = vunpack.c.h.b16 %v2574
    %v2664 = vunpack.c.l.b16 %v2575
    %v2665 = vunpack.c.h.b16 %v2575
    %v2666 = vunpack.c.l.b16 %v2576
    %v2667 = vunpack.c.h.b16 %v2576
    %v2668 = vunpack.c.l.b16 %v2577
    %v2669 = vunpack.c.h.b16 %v2577
    %v2670 = vunpack.c.l.b16 %v2578
    %v2671 = vunpack.c.h.b16 %v2578
    %v2672 = vunpack.c.l.b16 %v2579
    %v2673 = vunpack.c.h.b16 %v2579
    %v2674 = vunpack.c.l.b16 %v2580
    %v2675 = vunpack.c.h.b16 %v2580
    %v2676 = vunpack.c.l.b16 %v2581
    %v2677 = vunpack.c.h.b16 %v2581
    %v2678 = vpack.c.b16 %v2618, %v2614
    %v2679 = vpack.c.b16 %v2619, %v2615
    %v2680 = vpack.c.b16 %v2620, %v2616
    %v2681 = vpack.c.b16 %v2621, %v2617
    %v2682 = vpack.c.b16 %v2626, %v2622
    %v2683 = vpack.c.b16 %v2627, %v2623
    %v2684 = vpack.c.b16 %v2628, %v2624
    %v2685 = vpack.c.b16 %v2629, %v2625
    %v2686 = vpack.c.b16 %v2634, %v2630
    %v2687 = vpack.c.b16 %v2635, %v2631
    %v2688 = vpack.c.b16 %v2636, %v2632
    %v2689 = vpack.c.b16 %v2637, %v2633
    %v2690 = vpack.c.b16 %v2642, %v2638
    %v2691 = vpack.c.b16 %v2643, %v2639
    %v2692 = vpack.c.b16 %v2644, %v2640
    %v2693 = vpack.c.b16 %v2645, %v2641
    %v2694 = vpack.c.b16 %v2650, %v2646
    %v2695 = vpack.c.b16 %v2651, %v2647
    %v2696 = vpack.c.b16 %v2652, %v2648
    %v2697 = vpack.c.b16 %v2653, %v2649
    %v2698 = vpack.c.b16 %v2658, %v2654
    %v2699 = vpack.c.b16 %v2659, %v2655
    %v2700 = vpack.c.b16 %v2660, %v2656
    %v2701 = vpack.c.b16 %v2661, %v2657
    %v2702 = vpack.c.b16 %v2666, %v2662
    %v2703 = vpack.c.b16 %v2667, %v2663
    %v2704 = vpack.c.b16 %v2668, %v2664
    %v2705 = vpack.c.b16 %v2669, %v2665
    %v2706 = vpack.c.b16 %v2674, %v2670
    %v2707 = vpack.c.b16 %v2675, %v2671
    %v2708 = vpack.c.b16 %v2676, %v2672
    %v2709 = vpack.c.b16 %v2677, %v2673
    %2742 = vmatprep.subr.bf16.mxu0 %v2679
    %2743 = vmatpush1.bf16.msra.mxu0 %v2678
    %2744 = vmatprep.subr.bf16.mxu0 %v2683
    %2745 = vmatpush1.bf16.msra.mxu0 %v2682
    %2746 = vmatprep.subr.bf16.mxu0 %v2687
    %2747 = vmatpush1.bf16.msra.mxu0 %v2686
    %2748 = vmatprep.subr.bf16.mxu0 %v2691
    %2749 = vmatpush1.bf16.msra.mxu0 %v2690
    %2750 = vmatprep.subr.bf16.mxu0 %v2695
    %2751 = vmatpush1.bf16.msra.mxu0 %v2694
    %2752 = vmatprep.subr.bf16.mxu0 %v2699
    %2753 = vmatpush1.bf16.msra.mxu0 %v2698
    %2754 = vmatprep.subr.bf16.mxu0 %v2703
    %2755 = vmatpush1.bf16.msra.mxu0 %v2702
    %2756 = vmatprep.subr.bf16.mxu0 %v2707
    %2757 = vmatpush1.bf16.msra.mxu0 %v2706
    %2758 = vmatprep.subr.bf16.mxu0 0
    %2759 = vmatpush1.bf16.msra.mxu0 0
    %2760 = vmatprep.subr.bf16.mxu0 0
    %2761 = vmatpush1.bf16.msra.mxu0 0
    %2762 = vmatprep.subr.bf16.mxu0 0
    %2763 = vmatpush1.bf16.msra.mxu0 0
    %2764 = vmatprep.subr.bf16.mxu0 0
    %2765 = vmatpush1.bf16.msra.mxu0 0
    %2766 = vmatprep.subr.bf16.mxu0 0
    %2767 = vmatpush1.bf16.msra.mxu0 0
    %2768 = vmatprep.subr.bf16.mxu0 0
    %2769 = vmatpush1.bf16.msra.mxu0 0
    %2770 = vmatprep.subr.bf16.mxu0 0
    %2771 = vmatpush1.bf16.msra.mxu0 0
    %2772 = vmatprep.subr.bf16.mxu0 0
    %2773 = vmatpush1.bf16.msra.mxu0 0
    %2774 = vmatprep.mubr.bf16.mxu0 0
    %2775 = vmatmul.mubr.bf16.gmra.mrb[0].mxu0 %v2549
    %v2776 = vpop.f32.mrb[0].mxu0
    %v2777 = vadd.f32 0.0, %v2776
    %v2778 = vpop.f32.mrb[0].mxu0
    %v2779 = vadd.f32 0.0, %v2778
    %v2780 = vpop.f32.mrb[0].mxu0
    %v2781 = vpop.f32.mrb[0].mxu0
    %2782 = vdwg.mxu0
    %2783 = vmatprep.subr.bf16.mxu0 %v2681
    %2784 = vmatpush1.bf16.msra.mxu0 %v2680
    %2785 = vmatprep.subr.bf16.mxu0 %v2685
    %2786 = vmatpush1.bf16.msra.mxu0 %v2684
    %2787 = vmatprep.subr.bf16.mxu0 %v2689
    %2788 = vmatpush1.bf16.msra.mxu0 %v2688
    %2789 = vmatprep.subr.bf16.mxu0 %v2693
    %2790 = vmatpush1.bf16.msra.mxu0 %v2692
    %2791 = vmatprep.subr.bf16.mxu0 %v2697
    %2792 = vmatpush1.bf16.msra.mxu0 %v2696
    %2793 = vmatprep.subr.bf16.mxu0 %v2701
    %2794 = vmatpush1.bf16.msra.mxu0 %v2700
    %2795 = vmatprep.subr.bf16.mxu0 %v2705
    %2796 = vmatpush1.bf16.msra.mxu0 %v2704
    %2797 = vmatprep.subr.bf16.mxu0 %v2709
    %2798 = vmatpush1.bf16.msra.mxu0 %v2708
    %2799 = vmatprep.subr.bf16.mxu0 0
    %2800 = vmatpush1.bf16.msra.mxu0 0
    %2801 = vmatprep.subr.bf16.mxu0 0
    %2802 = vmatpush1.bf16.msra.mxu0 0
    %2803 = vmatprep.subr.bf16.mxu0 0
    %2804 = vmatpush1.bf16.msra.mxu0 0
    %2805 = vmatprep.subr.bf16.mxu0 0
    %2806 = vmatpush1.bf16.msra.mxu0 0
    %2807 = vmatprep.subr.bf16.mxu0 0
    %2808 = vmatpush1.bf16.msra.mxu0 0
    %2809 = vmatprep.subr.bf16.mxu0 0
    %2810 = vmatpush1.bf16.msra.mxu0 0
    %2811 = vmatprep.subr.bf16.mxu0 0
    %2812 = vmatpush1.bf16.msra.mxu0 0
    %2813 = vmatprep.subr.bf16.mxu0 0
    %2814 = vmatpush1.bf16.msra.mxu0 0
    %2815 = vmatprep.mubr.bf16.mxu0 0
    %2816 = vmatmul.mubr.bf16.gmra.mrb[0].mxu0 %v2549
    %v2817 = vpop.f32.mrb[0].mxu0
    %v2818 = vadd.f32 0.0, %v2817
    %v2819 = vpop.f32.mrb[0].mxu0
    %v2820 = vadd.f32 0.0, %v2819
    %v2821 = vpop.f32.mrb[0].mxu0
    %v2822 = vpop.f32.mrb[0].mxu0
    %2823 = vdwg.mxu0
    %v2824 = vadd.f32 %v2544, %v2777
    %v2825 = vadd.f32 %v2545, %v2779
    %v2826 = vadd.f32 %v2546, %v2818
    %v2827 = vadd.f32 %v2547, %v2820
    %v2828 = vxor.u32 %v2824, 2147483648
    %v2829 = vxor.u32 %v2825, 2147483648
    %v2830 = vxor.u32 %v2826, 2147483648
    %v2831 = vmul.f32 %v2828, 1.442695
    %v2832 = vpow.pop %v2831
    %v2833 = vmul.f32 %v2829, 1.442695
    %v2834 = vpow.pop %v2833
    %v2835 = vmul.f32 %v2830, 1.442695
    %v2836 = vpow.pop %v2835
    %v2837 = vadd.f32 %v2832, 1.0
    %v2838 = vadd.f32 %v2834, 1.0
    %v2839 = vadd.f32 %v2836, 1.0
    %v2840 = vrcp.pop %v2837
    %v2841 = vmul.f32 1.0, %v2840
    %v2842 = vrcp.pop %v2838
    %v2843 = vmul.f32 1.0, %v2842
    %v2844 = vrcp.pop %v2839
    %v2845 = vmul.f32 1.0, %v2844
    %v2846 = vtanh.pop %v2827
    %v2847 = vld [vmem:[#allocation4] sm:$0xff]
    %v2848 = vmul.f32 %v2843, %v2847
    %v2849 = vmul.f32 %v2841, %v2846
    %v2850 = vadd.f32 %v2848, %v2849
    %v2851 = vtanh.pop %v2850
    %v2852 = vmul.f32 %v2845, %v2851
    %2853 = vst [vmem:[#allocation4] sm:$0xff] %v2850
    %2854 = vst [vmem:[#allocation3] sm:$0xff] %v2852
    %2855 = vst [vmem:[%s2543] sm:$0xff] %v2852
    %v2856 = vld [vmem:[#allocation2] sm:$0xff]
    %v2857 = vld [vmem:[#allocation2 + $0x20] sm:$0xff]
    %v2858 = vld [vmem:[#allocation2 + $0x40] sm:$0xff]
    %v2859 = vld [vmem:[#allocation2 + $0x60] sm:$0xff]
    %v2860 = vld [vmem:[#allocation2 + $0x80] sm:$0xff]
    %v2861 = vld [vmem:[#allocation2 + $0xa0] sm:$0xff]
    %v2862 = vld [vmem:[#allocation2 + $0xc0] sm:$0xff]
    %v2863 = vld [vmem:[#allocation2 + $0xe0] sm:$0xff]
    %v2864 = vpack.c.bf16 %v2857, %v2856
    %v2865 = vpack.c.bf16 %v2859, %v2858
    %v2866 = vpack.c.bf16 %v2861, %v2860
    %v2867 = vpack.c.bf16 %v2863, %v2862
    %v2868 = vld [vmem:[#allocation8] sm:$0xf]
    %v2869 = vld [vmem:[#allocation8 + $0x4] sm:$0xf]
    %v2870 = vld [vmem:[#allocation8 + $0x8] sm:$0xf]
    %v2871 = vld [vmem:[#allocation8 + $0xc] sm:$0xf]
    %v2872 = vld [vmem:[#allocation8 + $0x10] sm:$0xf]
    %v2873 = vld [vmem:[#allocation8 + $0x14] sm:$0xf]
    %v2874 = vld [vmem:[#allocation8 + $0x18] sm:$0xf]
    %v2875 = vld [vmem:[#allocation8 + $0x1c] sm:$0xf]
    %v2876 = vld [vmem:[#allocation8 + $0x20] sm:$0xf]
    %v2877 = vld [vmem:[#allocation8 + $0x24] sm:$0xf]
    %v2878 = vld [vmem:[#allocation8 + $0x28] sm:$0xf]
    %v2879 = vld [vmem:[#allocation8 + $0x2c] sm:$0xf]
    %v2880 = vld [vmem:[#allocation8 + $0x30] sm:$0xf]
    %v2881 = vld [vmem:[#allocation8 + $0x34] sm:$0xf]
    %v2882 = vld [vmem:[#allocation8 + $0x38] sm:$0xf]
    %v2883 = vld [vmem:[#allocation8 + $0x3c] sm:$0xf]
    %v2884 = vld [vmem:[%s5] sm:$0x1]
    %v2886 = vlaneseq
    %v2887 = vshrl.u32 %v2886, 7
    %v2888 = vsub.s32 0, %v2887
    %v2889 = vrot.slane %v2884, %v2888
    %v2907 = vunpack.c.l.b16 %v2868
    %v2908 = vunpack.c.l.b16 %v2869
    %v2909 = vunpack.c.l.b16 %v2870
    %v2910 = vunpack.c.l.b16 %v2871
    %v2911 = vunpack.c.l.b16 %v2872
    %v2912 = vunpack.c.l.b16 %v2873
    %v2913 = vunpack.c.l.b16 %v2874
    %v2914 = vunpack.c.l.b16 %v2875
    %v2915 = vunpack.c.l.b16 %v2876
    %v2916 = vunpack.c.l.b16 %v2877
    %v2917 = vunpack.c.l.b16 %v2878
    %v2918 = vunpack.c.l.b16 %v2879
    %v2919 = vunpack.c.l.b16 %v2880
    %v2920 = vunpack.c.l.b16 %v2881
    %v2921 = vunpack.c.l.b16 %v2882
    %v2922 = vunpack.c.l.b16 %v2883
    %v2923 = vpack.c.b16 %v2908, %v2907
    %v2924 = vpack.c.b16 %v2910, %v2909
    %v2925 = vpack.c.b16 %v2912, %v2911
    %v2926 = vpack.c.b16 %v2914, %v2913
    %v2927 = vpack.c.b16 %v2916, %v2915
    %v2928 = vpack.c.b16 %v2918, %v2917
    %v2929 = vpack.c.b16 %v2920, %v2919
    %v2930 = vpack.c.b16 %v2922, %v2921
    %2939 = vmatprep.subr.bf16.mxu0 0
    %2940 = vmatpush1.bf16.msra.mxu0 %v2923
    %2941 = vmatprep.subr.bf16.mxu0 0
    %2942 = vmatpush1.bf16.msra.mxu0 %v2924
    %2943 = vmatprep.subr.bf16.mxu0 0
    %2944 = vmatpush1.bf16.msra.mxu0 %v2925
    %2945 = vmatprep.subr.bf16.mxu0 0
    %2946 = vmatpush1.bf16.msra.mxu0 %v2926
    %2947 = vmatprep.subr.bf16.mxu0 0
    %2948 = vmatpush1.bf16.msra.mxu0 %v2927
    %2949 = vmatprep.subr.bf16.mxu0 0
    %2950 = vmatpush1.bf16.msra.mxu0 %v2928
    %2951 = vmatprep.subr.bf16.mxu0 0
    %2952 = vmatpush1.bf16.msra.mxu0 %v2929
    %2953 = vmatprep.subr.bf16.mxu0 0
    %2954 = vmatpush1.bf16.msra.mxu0 %v2930
    %2955 = vmatprep.subr.bf16.mxu0 0
    %2956 = vmatpush1.bf16.msra.mxu0 0
    %2957 = vmatprep.subr.bf16.mxu0 0
    %2958 = vmatpush1.bf16.msra.mxu0 0
    %2959 = vmatprep.subr.bf16.mxu0 0
    %2960 = vmatpush1.bf16.msra.mxu0 0
    %2961 = vmatprep.subr.bf16.mxu0 0
    %2962 = vmatpush1.bf16.msra.mxu0 0
    %2963 = vmatprep.subr.bf16.mxu0 0
    %2964 = vmatpush1.bf16.msra.mxu0 0
    %2965 = vmatprep.subr.bf16.mxu0 0
    %2966 = vmatpush1.bf16.msra.mxu0 0
    %2967 = vmatprep.subr.bf16.mxu0 0
    %2968 = vmatpush1.bf16.msra.mxu0 0
    %2969 = vmatprep.subr.bf16.mxu0 0
    %2970 = vmatpush1.bf16.msra.mxu0 0
    %2971 = vmatprep.mubr.bf16.mxu0 0
    %2972 = vmatmul.mubr.bf16.gmra.mrb[0].mxu0 %v2864
    %v2973 = vpop.f32.mrb[0].mxu0
    %v2974 = vadd.f32 %v2889, %v2973
    %v2975 = vpop.f32.mrb[0].mxu0
    %v2976 = vpop.f32.mrb[0].mxu0
    %v2977 = vadd.f32 %v2889, %v2976
    %v2978 = vpop.f32.mrb[0].mxu0
    %2979 = vmatprep.mubr.bf16.mxu0 0
    %2980 = vmatmul.mubr.bf16.gmra.mrb[0].mxu0 %v2865
    %v2981 = vpop.f32.mrb[0].mxu0
    %v2982 = vadd.f32 %v2889, %v2981
    %v2983 = vpop.f32.mrb[0].mxu0
    %v2984 = vpop.f32.mrb[0].mxu0
    %v2985 = vadd.f32 %v2889, %v2984
    %v2986 = vpop.f32.mrb[0].mxu0
    %2987 = vmatprep.mubr.bf16.mxu0 0
    %2988 = vmatmul.mubr.bf16.gmra.mrb[0].mxu0 %v2866
    %v2989 = vpop.f32.mrb[0].mxu0
    %v2990 = vadd.f32 %v2889, %v2989
    %v2991 = vpop.f32.mrb[0].mxu0
    %v2992 = vpop.f32.mrb[0].mxu0
    %v2993 = vadd.f32 %v2889, %v2992
    %v2994 = vpop.f32.mrb[0].mxu0
    %2995 = vmatprep.mubr.bf16.mxu0 0
    %2996 = vmatmul.mubr.bf16.gmra.mrb[0].mxu0 %v2867
    %v2997 = vpop.f32.mrb[0].mxu0
    %v2998 = vadd.f32 %v2889, %v2997
    %v2999 = vpop.f32.mrb[0].mxu0
    %v3000 = vpop.f32.mrb[0].mxu0
    %v3001 = vadd.f32 %v2889, %v3000
    %v3002 = vpop.f32.mrb[0].mxu0
    %3003 = vdwg.mxu0
    %3004 = vst [vmem:[#allocation10] sm:$0xff] %v2974
    %3005 = vst [vmem:[#allocation10 + $0x8] sm:$0xff] %v2977
    %3006 = vst [vmem:[#allocation10 + $0x10] sm:$0xff] %v2982
    %3007 = vst [vmem:[#allocation10 + $0x18] sm:$0xff] %v2985
    %3008 = vst [vmem:[#allocation10 + $0x20] sm:$0xff] %v2990
    %3009 = vst [vmem:[#allocation10 + $0x28] sm:$0xff] %v2993
    %3010 = vst [vmem:[#allocation10 + $0x30] sm:$0xff] %v2998
    %3011 = vst [vmem:[#allocation10 + $0x38] sm:$0xff] %v3001
    // Predicated region
    $region38: #{tpu_custom_call.1} parent=1 // pred_check
      _
    $region39: #{tpu_custom_call.1} parent=1 // pred_check_branch
      %3013 = sbr.rel (0) target = $region41
    $region40: #{tpu_custom_call.1} parent=1 // pred_region
      %s3015 = ssub.s32 1024, 1024
      %3016 = vsyncadd [#allocation7], %s3015
      %s3017 = sshll.u32 [#allocation10], 4
      %s3018 = int_to_ptr.vmem [resolvable:$true] %s3017
      %3023 = dma.vmem_to_hbm [thread:$0]  %s3018, 1024, %s6, [#allocation7], 128, 128, 8
    $region41: #{tpu_custom_call.1} parent=1 // pred_fallthru
      _
    // Predicated region
    $region42: #{tpu_custom_call.1} parent=1 // pred_check
      _
    $region43: #{tpu_custom_call.1} parent=1 // pred_check_branch
      %3025 = sbr.rel (0) target = $region45
    $region44: #{tpu_custom_call.1} parent=1 // pred_region
      %3026 = dma.done [#allocation7], 1024
    $region45: #{tpu_custom_call.1} parent=1 // pred_fallthru
      _
    %3027 = vsyncpa [#allocation6], 1
    %3028 = vsyncpa [#allocation9], 1
    %3029 = vsyncpa [#allocation7], 1

</llo_original>
